<compile_context>
chip_gen: v6e
topology: v6e:2x2x1
jax: 0.10.0
libtpu: 0.0.40
codegen_flags: <defaults>
</compile_context>

<pallas_src>
import functools

import jax
import jax.numpy as jnp
from jax.experimental import pallas as pl
from jax.experimental.pallas import tpu as pltpu

NUM_CLASSES = 10
IN_FEATURES = 28 * 28
H1, H2, H3 = 800, 320, 50
H3_PAD = 128        # 50  -> 128 (lane-dense hidden)
OUT_PAD = 128       # 10  -> 128 (lane-dense output slab)
NEG_INF = -1e30     # baked class mask for padded logits lanes (f32 only)


def _round_up(x, m):
    return (x + m - 1) // m * m


def _chip_config():
    """Heuristic per-chip defaults; falls back to a conservative v7x-safe setup."""
    kind = ""
    try:
        kind = jax.devices()[0].device_kind.lower()
    except Exception:
        pass
    is_v5 = "v5" in kind
    is_v6 = "v6" in kind
    single_tc = (is_v5 and ("lite" in kind or "v5e" in kind)) or is_v6
    if single_tc:
        # v5e / v6e: one TensorCore, 128 MiB physical VMEM -> bigger tiles.
        return {"tb_max": 1024, "vmem": 64 * 1024 * 1024, "min_tiles": 1,
                "bf16_epilogue": not is_v5}
    # v7x (2 TCs, 64 MiB physical / 32 MiB scoped VMEM) and unknown chips.
    return {"tb_max": 512, "vmem": 32 * 1024 * 1024, "min_tiles": 2,
            "bf16_epilogue": not is_v5}


def _mlp_kernel(x_ref, w1_ref, b1_ref, w2_ref, b2_ref,
                w3_ref, b3_ref, w4_ref, b4_ref, out_ref, *, bf16_epilogue):
    """One batch tile per grid step; weights/biases stay VMEM-resident."""
    cdt = w1_ref.dtype                       # MXU input dtype (bf16)
    edt = cdt if bf16_epilogue else jnp.float32   # elementwise epilogue dtype

    # f32 tile -> bf16 inside the kernel (fused; no wrapper-side HBM pass).
    x = x_ref[...].astype(cdt)                                       # (TB, 784)

    h = jnp.dot(x, w1_ref[...], preferred_element_type=jnp.float32) + b1_ref[...]
    h = jnp.maximum(h.astype(edt), 0)                                # (TB, 800)

    h = jnp.dot(h.astype(cdt), w2_ref[...],
                preferred_element_type=jnp.float32) + b2_ref[...]
    h = jnp.maximum(h.astype(edt), 0)                                # (TB, 320)

    h = jnp.dot(h.astype(cdt), w3_ref[...],
                preferred_element_type=jnp.float32) + b3_ref[...]
    h = jnp.maximum(h, 0.0)                                          # (TB, 128) f32 (50 real)

    # Padded class lanes of b4 hold -1e30 and the padded w4 columns are zero,
    # so padded logits lanes are exactly -1e30 (exp underflows to 0 below).
    logits = jnp.dot(h.astype(cdt), w4_ref[...],
                     preferred_element_type=jnp.float32) + b4_ref[...]  # (TB, 128)

    m = jnp.max(logits, axis=1, keepdims=True)
    z = logits - m
    lse = jnp.log(jnp.sum(jnp.exp(z), axis=1, keepdims=True))
    out_ref[...] = (z - lse).astype(out_ref.dtype)


def _prepare_params(params, compute_dtype):
    """Zero-pad narrow layers to 128 lanes, bake the class mask into b4, cast to bf16."""
    (w1, b1), (w2, b2), (w3, b3), (w4, b4) = params
    w3p = jnp.pad(w3, ((0, 0), (0, H3_PAD - H3)))
    b3p = jnp.pad(b3, ((0, 0), (0, H3_PAD - H3)))
    w4p = jnp.pad(w4, ((0, H3_PAD - H3), (0, OUT_PAD - NUM_CLASSES)))
    # Baked mask: padded class lanes get -1e30 via the (f32) bias.
    b4p = jnp.pad(b4, ((0, 0), (0, OUT_PAD - NUM_CLASSES)), constant_values=NEG_INF)
    ws = tuple(w.astype(compute_dtype) for w in (w1, w2, w3p, w4p))
    bs = tuple(b.astype(jnp.float32) for b in (b1, b2, b3p, b4p))
    return ws, bs


def mlp_forward(x_nchw, params, *, compute_dtype=jnp.bfloat16, tb_max=None):
    """x_nchw: (B, 1, 28, 28) float32. Returns (B, 10) log-probabilities."""
    cfg = _chip_config()
    if tb_max is None:
        tb_max = cfg["tb_max"]

    b = x_nchw.shape[0]
    # Reshape is metadata-only; the bf16 cast happens inside the kernel.
    x = x_nchw.reshape(b, IN_FEATURES)

    # Adaptive tiling: minimize zero-row padding (< 8 rows per tile) and, when
    # the batch is big enough, guarantee >= min_tiles grid steps so dual-TC
    # chips (v7x) split the "parallel" batch axis across both cores.
    min_tiles = cfg["min_tiles"] if b >= 16 else 1
    n_tiles = max(pl.cdiv(b, tb_max), min_tiles)
    tb = _round_up(pl.cdiv(b, n_tiles), 8)
    padded_b = n_tiles * tb
    if padded_b != b:
        x = jnp.pad(x, ((0, padded_b - b), (0, 0)))

    (w1, w2, w3, w4), (b1, b2, b3, b4) = _prepare_params(params, compute_dtype)

    def full(shape):
        # Same block every grid step -> DMA'd once, stays resident in VMEM.
        return pl.BlockSpec(shape, lambda i: (0, 0))

    w_itemsize = jnp.dtype(compute_dtype).itemsize
    x_itemsize = jnp.dtype(x.dtype).itemsize
    flops = 2 * padded_b * (IN_FEATURES * H1 + H1 * H2 + H2 * H3_PAD + H3_PAD * OUT_PAD)
    bytes_accessed = (
        padded_b * IN_FEATURES * x_itemsize
        + sum(int(w.size) * w_itemsize for w in (w1, w2, w3, w4))
        + sum(int(v.size) * 4 for v in (b1, b2, b3, b4))
        + padded_b * OUT_PAD * 4
    )

    kernel = functools.partial(_mlp_kernel, bf16_epilogue=cfg["bf16_epilogue"])

    out = pl.pallas_call(
        kernel,
        out_shape=jax.ShapeDtypeStruct((padded_b, OUT_PAD), jnp.float32),
        grid=(n_tiles,),
        in_specs=[
            pl.BlockSpec((tb, IN_FEATURES), lambda i: (i, 0)),   # x tile (f32)
            full(w1.shape), full(b1.shape),
            full(w2.shape), full(b2.shape),
            full(w3.shape), full(b3.shape),
            full(w4.shape), full(b4.shape),
        ],
        out_specs=pl.BlockSpec((tb, OUT_PAD), lambda i: (i, 0)),
        compiler_params=pltpu.CompilerParams(
            dimension_semantics=("parallel",),          # megacore split on v7x
            vmem_limit_bytes=cfg["vmem"],
        ),
        cost_estimate=pl.CostEstimate(
            flops=flops,
            transcendentals=padded_b * (OUT_PAD + 1),
            bytes_accessed=bytes_accessed,
        ),
    )(x, w1, b1, w2, b2, w3, b3, w4, b4)

    return out[:b, :NUM_CLASSES]


def _init_linear(key, fan_in, fan_out):
    # Mimics torch.nn.Linear default init: U(-1/sqrt(fan_in), 1/sqrt(fan_in)).
    kw, kb = jax.random.split(key)
    bound = 1.0 / (fan_in ** 0.5)
    # Stored transposed relative to torch ((in, out) instead of (out, in)) so
    # the kernel does x @ W directly; semantics identical.
    w = jax.random.uniform(kw, (fan_in, fan_out), jnp.float32, -bound, bound)
    b = jax.random.uniform(kb, (1, fan_out), jnp.float32, -bound, bound)
    return w, b


def init_params(key):
    k1, k2, k3, k4 = jax.random.split(key, 4)
    return (
        _init_linear(k1, IN_FEATURES, H1),
        _init_linear(k2, H1, H2),
        _init_linear(k3, H2, H3),
        _init_linear(k4, H3, NUM_CLASSES),
    )


def _reference(x_nchw, params, compute_dtype=jnp.float32):
    """Pure-JAX reference; optionally emulates the kernel's bf16 matmul inputs."""
    x = x_nchw.reshape(x_nchw.shape[0], -1)
    (w1, b1), (w2, b2), (w3, b3), (w4, b4) = params

    def lin(h, w, bias):
        return jnp.dot(h.astype(compute_dtype), w.astype(compute_dtype),
                       preferred_element_type=jnp.float32) + bias

    h = jnp.maximum(lin(x, w1, b1), 0.0)
    h = jnp.maximum(lin(h, w2, b2), 0.0)
    h = jnp.maximum(lin(h, w3, b3), 0.0)
    logits = lin(h, w4, b4)
    return jax.nn.log_softmax(logits, axis=1)


if __name__ == "__main__":
    key = jax.random.PRNGKey(0)
    kx, kp = jax.random.split(key)

    x = jax.random.normal(kx, (2, 1, 28, 28), jnp.float32)   # small batch = 2
    params = init_params(kp)

    out = mlp_forward(x, params)
    jax.block_until_ready(out)

    assert out.shape == (2, NUM_CLASSES)
    assert bool(jnp.all(jnp.isfinite(out)))

    # Check vs a reference using the same bf16-in / f32-accumulate matmul dtypes
    # as the kernel (the bf16 epilogue rounds at the same points, modulo
    # accumulation order).
    ref_bf16 = _reference(x, params, compute_dtype=jnp.bfloat16)
    assert jnp.allclose(out, ref_bf16, atol=3e-3, rtol=3e-3), "mismatch vs bf16 reference"

    # Sanity check vs the full-f32 PyTorch-equivalent math (loose tolerance for
    # the bf16 weight/activation cast).
    ref_f32 = _reference(x, params, compute_dtype=jnp.float32)
    assert jnp.allclose(out, ref_f32, atol=5e-2, rtol=5e-2), "mismatch vs f32 reference"

    print("KERNEL_OK")
</pallas_src>

<mosaic_0001>
module attributes {stable_mosaic.version = 11 : i64} {
  func.func @_mlp_kernel(%arg0: i32, %arg1: memref<8x784xf32, #tpu.memory_space<vmem>>, %arg2: memref<784x800xbf16, #tpu.memory_space<vmem>>, %arg3: memref<1x800xf32, #tpu.memory_space<vmem>>, %arg4: memref<800x320xbf16, #tpu.memory_space<vmem>>, %arg5: memref<1x320xf32, #tpu.memory_space<vmem>>, %arg6: memref<320x128xbf16, #tpu.memory_space<vmem>>, %arg7: memref<1x128xf32, #tpu.memory_space<vmem>>, %arg8: memref<128x128xbf16, #tpu.memory_space<vmem>>, %arg9: memref<1x128xf32, #tpu.memory_space<vmem>>, %arg10: memref<8x128xf32, #tpu.memory_space<vmem>>) attributes {dimension_semantics = [#tpu.dimension_semantics<parallel>], iteration_bounds = array<i64: 1>, scalar_prefetch = 0 : i64, scratch_operands = 0 : i64, tpu.core_type = #tpu.core_type<tc>, window_params = [{transform_indices = @transform_0, window_bounds = array<i64: 8, 784>}, {pipeline_mode = #tpu.pipeline_mode<synchronous>, transform_indices = @transform_1, window_bounds = array<i64: 784, 800>}, {pipeline_mode = #tpu.pipeline_mode<synchronous>, transform_indices = @transform_2, window_bounds = array<i64: 1, 800>}, {pipeline_mode = #tpu.pipeline_mode<synchronous>, transform_indices = @transform_3, window_bounds = array<i64: 800, 320>}, {pipeline_mode = #tpu.pipeline_mode<synchronous>, transform_indices = @transform_4, window_bounds = array<i64: 1, 320>}, {pipeline_mode = #tpu.pipeline_mode<synchronous>, transform_indices = @transform_5, window_bounds = array<i64: 320, 128>}, {pipeline_mode = #tpu.pipeline_mode<synchronous>, transform_indices = @transform_6, window_bounds = array<i64: 1, 128>}, {pipeline_mode = #tpu.pipeline_mode<synchronous>, transform_indices = @transform_7, window_bounds = array<i64: 128, 128>}, {pipeline_mode = #tpu.pipeline_mode<synchronous>, transform_indices = @transform_8, window_bounds = array<i64: 1, 128>}, {transform_indices = @transform_9, window_bounds = array<i64: 8, 128>}]} {
    %c0 = arith.constant 0 : index
    %c0_0 = arith.constant 0 : index
    %0 = vector.load %arg1[%c0, %c0_0] : memref<8x784xf32, #tpu.memory_space<vmem>>, vector<8x784xf32>
    %1 = arith.truncf %0 : vector<8x784xf32> to vector<8x784xbf16>
    %c0_1 = arith.constant 0 : index
    %c0_2 = arith.constant 0 : index
    %2 = vector.load %arg2[%c0_1, %c0_2] : memref<784x800xbf16, #tpu.memory_space<vmem>>, vector<784x800xbf16>
    %cst = arith.constant dense<0.000000e+00> : vector<8x800xf32>
    %3 = tpu.matmul %1, %2, %cst {dimension_numbers = #tpu.dot_dimension_numbers<[1], [0], [0], [1], [0, 0, 1, 1], [], []>} : vector<8x784xbf16>, vector<784x800xbf16>, vector<8x800xf32> -> vector<8x800xf32>
    %c0_3 = arith.constant 0 : index
    %c0_4 = arith.constant 0 : index
    %4 = vector.load %arg3[%c0_3, %c0_4] : memref<1x800xf32, #tpu.memory_space<vmem>>, vector<1x800xf32>
    %5 = vector.broadcast %4 : vector<1x800xf32> to vector<8x800xf32>
    %6 = arith.addf %3, %5 : vector<8x800xf32>
    %7 = arith.truncf %6 : vector<8x800xf32> to vector<8x800xbf16>
    %cst_5 = arith.constant 0.000000e+00 : bf16
    %8 = vector.broadcast %cst_5 : bf16 to vector<8x800xbf16>
    %9 = arith.maximumf %7, %8 : vector<8x800xbf16>
    %c0_6 = arith.constant 0 : index
    %c0_7 = arith.constant 0 : index
    %10 = vector.load %arg4[%c0_6, %c0_7] : memref<800x320xbf16, #tpu.memory_space<vmem>>, vector<800x320xbf16>
    %cst_8 = arith.constant dense<0.000000e+00> : vector<8x320xf32>
    %11 = tpu.matmul %9, %10, %cst_8 {dimension_numbers = #tpu.dot_dimension_numbers<[1], [0], [0], [1], [0, 0, 1, 1], [], []>} : vector<8x800xbf16>, vector<800x320xbf16>, vector<8x320xf32> -> vector<8x320xf32>
    %c0_9 = arith.constant 0 : index
    %c0_10 = arith.constant 0 : index
    %12 = vector.load %arg5[%c0_9, %c0_10] : memref<1x320xf32, #tpu.memory_space<vmem>>, vector<1x320xf32>
    %13 = vector.broadcast %12 : vector<1x320xf32> to vector<8x320xf32>
    %14 = arith.addf %11, %13 : vector<8x320xf32>
    %15 = arith.truncf %14 : vector<8x320xf32> to vector<8x320xbf16>
    %cst_11 = arith.constant 0.000000e+00 : bf16
    %16 = vector.broadcast %cst_11 : bf16 to vector<8x320xbf16>
    %17 = arith.maximumf %15, %16 : vector<8x320xbf16>
    %c0_12 = arith.constant 0 : index
    %c0_13 = arith.constant 0 : index
    %18 = vector.load %arg6[%c0_12, %c0_13] : memref<320x128xbf16, #tpu.memory_space<vmem>>, vector<320x128xbf16>
    %cst_14 = arith.constant dense<0.000000e+00> : vector<8x128xf32>
    %19 = tpu.matmul %17, %18, %cst_14 {dimension_numbers = #tpu.dot_dimension_numbers<[1], [0], [0], [1], [0, 0, 1, 1], [], []>} : vector<8x320xbf16>, vector<320x128xbf16>, vector<8x128xf32> -> vector<8x128xf32>
    %c0_15 = arith.constant 0 : index
    %c0_16 = arith.constant 0 : index
    %20 = vector.load %arg7[%c0_15, %c0_16] : memref<1x128xf32, #tpu.memory_space<vmem>>, vector<1x128xf32>
    %21 = vector.broadcast %20 : vector<1x128xf32> to vector<8x128xf32>
    %22 = arith.addf %19, %21 : vector<8x128xf32>
    %cst_17 = arith.constant 0.000000e+00 : f32
    %23 = vector.broadcast %cst_17 : f32 to vector<8x128xf32>
    %24 = arith.maximumf %22, %23 : vector<8x128xf32>
    %25 = arith.truncf %24 : vector<8x128xf32> to vector<8x128xbf16>
    %c0_18 = arith.constant 0 : index
    %c0_19 = arith.constant 0 : index
    %26 = vector.load %arg8[%c0_18, %c0_19] : memref<128x128xbf16, #tpu.memory_space<vmem>>, vector<128x128xbf16>
    %cst_20 = arith.constant dense<0.000000e+00> : vector<8x128xf32>
    %27 = tpu.matmul %25, %26, %cst_20 {dimension_numbers = #tpu.dot_dimension_numbers<[1], [0], [0], [1], [0, 0, 1, 1], [], []>} : vector<8x128xbf16>, vector<128x128xbf16>, vector<8x128xf32> -> vector<8x128xf32>
    %c0_21 = arith.constant 0 : index
    %c0_22 = arith.constant 0 : index
    %28 = vector.load %arg9[%c0_21, %c0_22] : memref<1x128xf32, #tpu.memory_space<vmem>>, vector<1x128xf32>
    %29 = vector.broadcast %28 : vector<1x128xf32> to vector<8x128xf32>
    %30 = arith.addf %27, %29 : vector<8x128xf32>
    %cst_23 = arith.constant dense<0xFF800000> : vector<8xf32>
    %31 = vector.multi_reduction <maximumf>, %30, %cst_23 [1] : vector<8x128xf32> to vector<8xf32>
    %32 = vector.shape_cast %31 : vector<8xf32> to vector<8x1xf32>
    %33 = vector.broadcast %32 : vector<8x1xf32> to vector<8x128xf32>
    %34 = arith.subf %30, %33 : vector<8x128xf32>
    %35 = math.exp %34 : vector<8x128xf32>
    %cst_24 = arith.constant dense<0.000000e+00> : vector<8xf32>
    %36 = vector.multi_reduction <add>, %35, %cst_24 [1] : vector<8x128xf32> to vector<8xf32>
    %37 = vector.shape_cast %36 : vector<8xf32> to vector<8x1xf32>
    %38 = math.log %37 : vector<8x1xf32>
    %39 = vector.broadcast %38 : vector<8x1xf32> to vector<8x128xf32>
    %40 = arith.subf %34, %39 : vector<8x128xf32>
    %c0_25 = arith.constant 0 : index
    %c0_26 = arith.constant 0 : index
    %41 = vector.load %arg10[%c0_25, %c0_26] : memref<8x128xf32, #tpu.memory_space<vmem>>, vector<8x128xf32>
    tpu.vector_store %arg10[%c0_25, %c0_26], %40 {strides = array<i32>} : memref<8x128xf32, #tpu.memory_space<vmem>>, vector<8x128xf32>,
    return
  }
  func.func @transform_0(%arg0: i32) -> (i32, i32) {
    %c0_i32 = arith.constant 0 : i32
    %c0_i32_0 = arith.constant 0 : i32
    return %arg0, %c0_i32 : i32, i32
  }
  func.func @transform_1(%arg0: i32) -> (i32, i32) {
    %c0_i32 = arith.constant 0 : i32
    %c0_i32_0 = arith.constant 0 : i32
    %c0_i32_1 = arith.constant 0 : i32
    return %c0_i32, %c0_i32_0 : i32, i32
  }
  func.func @transform_2(%arg0: i32) -> (i32, i32) {
    %c0_i32 = arith.constant 0 : i32
    %c0_i32_0 = arith.constant 0 : i32
    %c0_i32_1 = arith.constant 0 : i32
    return %c0_i32, %c0_i32_0 : i32, i32
  }
  func.func @transform_3(%arg0: i32) -> (i32, i32) {
    %c0_i32 = arith.constant 0 : i32
    %c0_i32_0 = arith.constant 0 : i32
    %c0_i32_1 = arith.constant 0 : i32
    return %c0_i32, %c0_i32_0 : i32, i32
  }
  func.func @transform_4(%arg0: i32) -> (i32, i32) {
    %c0_i32 = arith.constant 0 : i32
    %c0_i32_0 = arith.constant 0 : i32
    %c0_i32_1 = arith.constant 0 : i32
    return %c0_i32, %c0_i32_0 : i32, i32
  }
  func.func @transform_5(%arg0: i32) -> (i32, i32) {
    %c0_i32 = arith.constant 0 : i32
    %c0_i32_0 = arith.constant 0 : i32
    %c0_i32_1 = arith.constant 0 : i32
    return %c0_i32, %c0_i32_0 : i32, i32
  }
  func.func @transform_6(%arg0: i32) -> (i32, i32) {
    %c0_i32 = arith.constant 0 : i32
    %c0_i32_0 = arith.constant 0 : i32
    %c0_i32_1 = arith.constant 0 : i32
    return %c0_i32, %c0_i32_0 : i32, i32
  }
  func.func @transform_7(%arg0: i32) -> (i32, i32) {
    %c0_i32 = arith.constant 0 : i32
    %c0_i32_0 = arith.constant 0 : i32
    %c0_i32_1 = arith.constant 0 : i32
    return %c0_i32, %c0_i32_0 : i32, i32
  }
  func.func @transform_8(%arg0: i32) -> (i32, i32) {
    %c0_i32 = arith.constant 0 : i32
    %c0_i32_0 = arith.constant 0 : i32
    %c0_i32_1 = arith.constant 0 : i32
    return %c0_i32, %c0_i32_0 : i32, i32
  }
  func.func @transform_9(%arg0: i32) -> (i32, i32) {
    %c0_i32 = arith.constant 0 : i32
    %c0_i32_0 = arith.constant 0 : i32
    return %arg0, %c0_i32 : i32, i32
  }
}

</mosaic_0001>

<llo_original>
// kernel: tpu_custom_call.1
$region0: #{tpu_custom_call.1}
  #allocation0 [shape = 'u32[]', space=smem, size = 0x4, offset = 0x4, fixed_abs, tag = 'smem constant byte address 0x4 - core index']
  #allocation1 [shape = 'u32[144,128]{1,0:T(1,128)}', space=vmem, size = 0x12000, scoped, tag = 'internal scratch']
  %s0 = inlined_call_operand.hbm [shape: f32[8,784], index: 0, kind: input, shape index: {}]
  %s1 = inlined_call_operand.hbm [shape: bf16[784,800], index: 1, kind: input, shape index: {}]
  %s2 = inlined_call_operand.hbm [shape: f32[1,800], index: 2, kind: input, shape index: {}]
  %s3 = inlined_call_operand.vmem [shape: bf16[800,320], index: 3, kind: input, shape index: {}]
  %s4 = inlined_call_operand.hbm [shape: f32[1,320], index: 4, kind: input, shape index: {}]
  %s5 = inlined_call_operand.hbm [shape: bf16[320,128], index: 5, kind: input, shape index: {}]
  %s6 = inlined_call_operand.hbm [shape: f32[1,128], index: 6, kind: input, shape index: {}]
  %s7 = inlined_call_operand.hbm [shape: bf16[128,128], index: 7, kind: input, shape index: {}]
  %s8 = inlined_call_operand.hbm [shape: f32[1,128], index: 8, kind: input, shape index: {}]
  %s9 = inlined_call_operand.hbm [shape: f32[8,128], index: 9, kind: output, shape index: {}]
  %s10 = sld [smem:[#allocation0]]
  $region78: #{tpu_custom_call.1} parent=0
    _
  %s12 = ssub.s32 1, %s10
  %s13 = scalar_select 0, %s12, %s10
  $region1: #{tpu_custom_call.1} parent=0
    #allocation2 [shape = 'u8[28672]{0}', space=vmem, size = 0x7000, scoped, tag = 'input window, operand 0, single buffered']
    #allocation3 [shape = 's32[1]{0}', space=sflag, size = 0x4, scoped, tag = 'scoped memory for tpu_custom_call.1']
    #allocation4 [shape = 's32[1]{0}', space=sflag, size = 0x4, scoped, tag = 'scoped memory for tpu_custom_call.1']
    #allocation5 [shape = 'u8[1404928]{0}', space=vmem, size = 0x157000, scoped, tag = 'input window, operand 1, single buffered']
    #allocation6 [shape = 's32[1]{0}', space=sflag, size = 0x4, scoped, tag = 'scoped memory for tpu_custom_call.1']
    #allocation7 [shape = 'u8[3584]{0}', space=vmem, size = 0x1000, scoped, tag = 'input window, operand 2, single buffered']
    #allocation8 [shape = 'u8[1536]{0}', space=vmem, size = 0x800, scoped, tag = 'input window, operand 4, single buffered']
    #allocation9 [shape = 's32[1]{0}', space=sflag, size = 0x4, scoped, tag = 'scoped memory for tpu_custom_call.1']
    #allocation10 [shape = 'u8[81920]{0}', space=vmem, size = 0x14000, scoped, tag = 'input window, operand 5, single buffered']
    #allocation11 [shape = 'u8[512]{0}', space=vmem, size = 0x400, scoped, tag = 'input window, operand 6, single buffered']
    #allocation12 [shape = 's32[1]{0}', space=sflag, size = 0x4, scoped, tag = 'scoped memory for tpu_custom_call.1']
    #allocation13 [shape = 'u8[32768]{0}', space=vmem, size = 0x8000, scoped, tag = 'input window, operand 7, single buffered']
    #allocation14 [shape = 'u8[512]{0}', space=vmem, size = 0x400, scoped, tag = 'input window, operand 8, single buffered']
    #allocation15 [shape = 's32[1]{0}', space=sflag, size = 0x4, scoped, tag = 'scoped memory for tpu_custom_call.1']
    #allocation16 [shape = 'u8[4096]{0}', space=vmem, size = 0x1000, scoped, tag = 'output window, operand 0, single buffered']
    %14 = vsyncpa [#allocation3], 0
    %15 = vsyncpa [#allocation6], 0
    %16 = vsyncpa [#allocation9], 0
    %17 = vsyncpa [#allocation12], 0
    %18 = vsyncpa [#allocation15], 0
    %19 = vsyncpa [#allocation4], 0
    // Predicated region
    $region2: #{tpu_custom_call.1} parent=1 // pred_check
      _
    $region3: #{tpu_custom_call.1} parent=1 // pred_check_branch
      %21 = sbr.rel (0) target = $region5
    $region4: #{tpu_custom_call.1} parent=1 // pred_region
      %s23 = ssub.s32 896, 896
      %24 = vsyncadd [#allocation3], %s23
      %s26 = sshll.u32 [#allocation2], 4
      %s27 = int_to_ptr.vmem [resolvable:$true] %s26
      %29 = dma.hbm_to_vmem [thread:$0]  %s0, 896, %s27, [#allocation3]
    $region5: #{tpu_custom_call.1} parent=1 // pred_fallthru
      _
    // Predicated region
    $region6: #{tpu_custom_call.1} parent=1 // pred_check
      _
    $region7: #{tpu_custom_call.1} parent=1 // pred_check_branch
      %31 = sbr.rel (0) target = $region9
    $region8: #{tpu_custom_call.1} parent=1 // pred_region
      %s33 = ssub.s32 43904, 43904
      %34 = vsyncadd [#allocation6], %s33
      %s35 = sshll.u32 [#allocation5], 4
      %s36 = int_to_ptr.vmem [resolvable:$true] %s35
      %41 = dma.hbm_to_vmem [thread:$0]  %s1, 43904, %s36, [#allocation6], 448, 448, 28
    $region9: #{tpu_custom_call.1} parent=1 // pred_fallthru
      _
    // Predicated region
    $region10: #{tpu_custom_call.1} parent=1 // pred_check
      _
    $region11: #{tpu_custom_call.1} parent=1 // pred_check_branch
      %43 = sbr.rel (0) target = $region13
    $region12: #{tpu_custom_call.1} parent=1 // pred_region
      %s45 = ssub.s32 112, 112
      %46 = vsyncadd [#allocation6], %s45
      %s48 = sshll.u32 [#allocation7], 4
      %s49 = int_to_ptr.vmem [resolvable:$true] %s48
      %51 = dma.hbm_to_vmem [thread:$0]  %s2, 112, %s49, [#allocation6]
    $region13: #{tpu_custom_call.1} parent=1 // pred_fallthru
      _
    // Predicated region
    $region14: #{tpu_custom_call.1} parent=1 // pred_check
      _
    $region15: #{tpu_custom_call.1} parent=1 // pred_check_branch
      %53 = sbr.rel (0) target = $region17
    $region16: #{tpu_custom_call.1} parent=1 // pred_region
      _
    $region17: #{tpu_custom_call.1} parent=1 // pred_fallthru
      _
    // Predicated region
    $region18: #{tpu_custom_call.1} parent=1 // pred_check
      _
    $region19: #{tpu_custom_call.1} parent=1 // pred_check_branch
      %55 = sbr.rel (0) target = $region21
    $region20: #{tpu_custom_call.1} parent=1 // pred_region
      %s57 = ssub.s32 48, 48
      %58 = vsyncadd [#allocation9], %s57
      %s60 = sshll.u32 [#allocation8], 4
      %s61 = int_to_ptr.vmem [resolvable:$true] %s60
      %63 = dma.hbm_to_vmem [thread:$0]  %s4, 48, %s61, [#allocation9]
    $region21: #{tpu_custom_call.1} parent=1 // pred_fallthru
      _
    // Predicated region
    $region22: #{tpu_custom_call.1} parent=1 // pred_check
      _
    $region23: #{tpu_custom_call.1} parent=1 // pred_check_branch
      %65 = sbr.rel (0) target = $region25
    $region24: #{tpu_custom_call.1} parent=1 // pred_region
      %s67 = ssub.s32 2560, 2560
      %68 = vsyncadd [#allocation9], %s67
      %s69 = sshll.u32 [#allocation10], 4
      %s70 = int_to_ptr.vmem [resolvable:$true] %s69
      %75 = dma.hbm_to_vmem [thread:$0]  %s5, 2560, %s70, [#allocation9], 64, 64, 4
    $region25: #{tpu_custom_call.1} parent=1 // pred_fallthru
      _
    // Predicated region
    $region26: #{tpu_custom_call.1} parent=1 // pred_check
      _
    $region27: #{tpu_custom_call.1} parent=1 // pred_check_branch
      %77 = sbr.rel (0) target = $region29
    $region28: #{tpu_custom_call.1} parent=1 // pred_region
      %s79 = ssub.s32 16, 16
      %80 = vsyncadd [#allocation12], %s79
      %s82 = sshll.u32 [#allocation11], 4
      %s83 = int_to_ptr.vmem [resolvable:$true] %s82
      %85 = dma.hbm_to_vmem [thread:$0]  %s6, 16, %s83, [#allocation12]
    $region29: #{tpu_custom_call.1} parent=1 // pred_fallthru
      _
    // Predicated region
    $region30: #{tpu_custom_call.1} parent=1 // pred_check
      _
    $region31: #{tpu_custom_call.1} parent=1 // pred_check_branch
      %87 = sbr.rel (0) target = $region33
    $region32: #{tpu_custom_call.1} parent=1 // pred_region
      %s89 = ssub.s32 1024, 1024
      %90 = vsyncadd [#allocation12], %s89
      %s91 = sshll.u32 [#allocation13], 4
      %s92 = int_to_ptr.vmem [resolvable:$true] %s91
      %97 = dma.hbm_to_vmem [thread:$0]  %s7, 1024, %s92, [#allocation12], 64, 64, 4
    $region33: #{tpu_custom_call.1} parent=1 // pred_fallthru
      _
    // Predicated region
    $region34: #{tpu_custom_call.1} parent=1 // pred_check
      _
    $region35: #{tpu_custom_call.1} parent=1 // pred_check_branch
      %99 = sbr.rel (0) target = $region37
    $region36: #{tpu_custom_call.1} parent=1 // pred_region
      %s101 = ssub.s32 16, 16
      %102 = vsyncadd [#allocation15], %s101
      %s104 = sshll.u32 [#allocation14], 4
      %s105 = int_to_ptr.vmem [resolvable:$true] %s104
      %107 = dma.hbm_to_vmem [thread:$0]  %s8, 16, %s105, [#allocation15]
    $region37: #{tpu_custom_call.1} parent=1 // pred_fallthru
      _
    // Predicated region
    $region38: #{tpu_custom_call.1} parent=1 // pred_check
      _
    $region39: #{tpu_custom_call.1} parent=1 // pred_check_branch
      %109 = sbr.rel (0) target = $region41
    $region40: #{tpu_custom_call.1} parent=1 // pred_region
      %110 = dma.done [#allocation3], 896
    $region41: #{tpu_custom_call.1} parent=1 // pred_fallthru
      _
    // Predicated region
    $region42: #{tpu_custom_call.1} parent=1 // pred_check
      _
    $region43: #{tpu_custom_call.1} parent=1 // pred_check_branch
      %112 = sbr.rel (0) target = $region45
    $region44: #{tpu_custom_call.1} parent=1 // pred_region
      %113 = dma.done [#allocation6], 43904
    $region45: #{tpu_custom_call.1} parent=1 // pred_fallthru
      _
    // Predicated region
    $region46: #{tpu_custom_call.1} parent=1 // pred_check
      _
    $region47: #{tpu_custom_call.1} parent=1 // pred_check_branch
      %115 = sbr.rel (0) target = $region49
    $region48: #{tpu_custom_call.1} parent=1 // pred_region
      %116 = dma.done [#allocation6], 112
    $region49: #{tpu_custom_call.1} parent=1 // pred_fallthru
      _
    // Predicated region
    $region50: #{tpu_custom_call.1} parent=1 // pred_check
      _
    $region51: #{tpu_custom_call.1} parent=1 // pred_check_branch
      %118 = sbr.rel (0) target = $region53
    $region52: #{tpu_custom_call.1} parent=1 // pred_region
      %119 = dma.done [#allocation9], 48
    $region53: #{tpu_custom_call.1} parent=1 // pred_fallthru
      _
    // Predicated region
    $region54: #{tpu_custom_call.1} parent=1 // pred_check
      _
    $region55: #{tpu_custom_call.1} parent=1 // pred_check_branch
      %121 = sbr.rel (0) target = $region57
    $region56: #{tpu_custom_call.1} parent=1 // pred_region
      %122 = dma.done [#allocation9], 2560
    $region57: #{tpu_custom_call.1} parent=1 // pred_fallthru
      _
    // Predicated region
    $region58: #{tpu_custom_call.1} parent=1 // pred_check
      _
    $region59: #{tpu_custom_call.1} parent=1 // pred_check_branch
      %124 = sbr.rel (0) target = $region61
    $region60: #{tpu_custom_call.1} parent=1 // pred_region
      %125 = dma.done [#allocation12], 16
    $region61: #{tpu_custom_call.1} parent=1 // pred_fallthru
      _
    // Predicated region
    $region62: #{tpu_custom_call.1} parent=1 // pred_check
      _
    $region63: #{tpu_custom_call.1} parent=1 // pred_check_branch
      %127 = sbr.rel (0) target = $region65
    $region64: #{tpu_custom_call.1} parent=1 // pred_region
      %128 = dma.done [#allocation12], 1024
    $region65: #{tpu_custom_call.1} parent=1 // pred_fallthru
      _
    // Predicated region
    $region66: #{tpu_custom_call.1} parent=1 // pred_check
      _
    $region67: #{tpu_custom_call.1} parent=1 // pred_check_branch
      %130 = sbr.rel (0) target = $region69
    $region68: #{tpu_custom_call.1} parent=1 // pred_region
      %131 = dma.done [#allocation15], 16
    $region69: #{tpu_custom_call.1} parent=1 // pred_fallthru
      _
    %v133 = vld [vmem:[#allocation2] sm:$0xff]
    %v134 = vld [vmem:[#allocation2 + $0x8] sm:$0xff]
    %v135 = vld [vmem:[#allocation2 + $0x10] sm:$0xff]
    %v136 = vld [vmem:[#allocation2 + $0x18] sm:$0xff]
    %v137 = vld [vmem:[#allocation2 + $0x20] sm:$0xff]
    %v138 = vld [vmem:[#allocation2 + $0x28] sm:$0xff]
    %v139 = vld [vmem:[#allocation2 + $0x30] sm:$0xff]
    %v140 = vpack.c.bf16 %v133, %v133
    %v141 = vpack.c.bf16 %v134, %v134
    %v142 = vpack.c.bf16 %v135, %v135
    %v143 = vpack.c.bf16 %v136, %v136
    %v144 = vpack.c.bf16 %v137, %v137
    %v145 = vpack.c.bf16 %v138, %v138
    %v146 = vpack.c.bf16 %v139, %v139
    %v147 = vld [vmem:[#allocation5] sm:$0xff]
    %v148 = vld [vmem:[#allocation5 + $0x8] sm:$0xff]
    %v149 = vld [vmem:[#allocation5 + $0x10] sm:$0xff]
    %v150 = vld [vmem:[#allocation5 + $0x18] sm:$0xf]
    %v151 = vld [vmem:[#allocation5 + $0x1c] sm:$0xff]
    %v152 = vld [vmem:[#allocation5 + $0x24] sm:$0xff]
    %v153 = vld [vmem:[#allocation5 + $0x2c] sm:$0xff]
    %v154 = vld [vmem:[#allocation5 + $0x34] sm:$0xf]
    %v155 = vld [vmem:[#allocation5 + $0x38] sm:$0xff]
    %v156 = vld [vmem:[#allocation5 + $0x40] sm:$0xff]
    %v157 = vld [vmem:[#allocation5 + $0x48] sm:$0xff]
    %v158 = vld [vmem:[#allocation5 + $0x50] sm:$0xf]
    %v159 = vld [vmem:[#allocation5 + $0x54] sm:$0xff]
    %v160 = vld [vmem:[#allocation5 + $0x5c] sm:$0xff]
    %v161 = vld [vmem:[#allocation5 + $0x64] sm:$0xff]
    %v162 = vld [vmem:[#allocation5 + $0x6c] sm:$0xf]
    %v163 = vld [vmem:[#allocation5 + $0x70] sm:$0xff]
    %v164 = vld [vmem:[#allocation5 + $0x78] sm:$0xff]
    %v165 = vld [vmem:[#allocation5 + $0x80] sm:$0xff]
    %v166 = vld [vmem:[#allocation5 + $0x88] sm:$0xf]
    %v167 = vld [vmem:[#allocation5 + $0x8c] sm:$0xff]
    %v168 = vld [vmem:[#allocation5 + $0x94] sm:$0xff]
    %v169 = vld [vmem:[#allocation5 + $0x9c] sm:$0xff]
    %v170 = vld [vmem:[#allocation5 + $0xa4] sm:$0xf]
    %v171 = vld [vmem:[#allocation5 + $0xa8] sm:$0xff]
    %v172 = vld [vmem:[#allocation5 + $0xb0] sm:$0xff]
    %v173 = vld [vmem:[#allocation5 + $0xb8] sm:$0xff]
    %v174 = vld [vmem:[#allocation5 + $0xc0] sm:$0xf]
    %v175 = vld [vmem:[#allocation5 + $0xc4] sm:$0xff]
    %v176 = vld [vmem:[#allocation5 + $0xcc] sm:$0xff]
    %v177 = vld [vmem:[#allocation5 + $0xd4] sm:$0xff]
    %v178 = vld [vmem:[#allocation5 + $0xdc] sm:$0xf]
    %v179 = vld [vmem:[#allocation5 + $0xe0] sm:$0xff]
    %v180 = vld [vmem:[#allocation5 + $0xe8] sm:$0xff]
    %v181 = vld [vmem:[#allocation5 + $0xf0] sm:$0xff]
    %v182 = vld [vmem:[#allocation5 + $0xf8] sm:$0xf]
    %v183 = vld [vmem:[#allocation5 + $0xfc] sm:$0xff]
    %v184 = vld [vmem:[#allocation5 + $0x104] sm:$0xff]
    %v185 = vld [vmem:[#allocation5 + $0x10c] sm:$0xff]
    %v186 = vld [vmem:[#allocation5 + $0x114] sm:$0xf]
    %v187 = vld [vmem:[#allocation5 + $0x118] sm:$0xff]
    %v188 = vld [vmem:[#allocation5 + $0x120] sm:$0xff]
    %v189 = vld [vmem:[#allocation5 + $0x128] sm:$0xff]
    %v190 = vld [vmem:[#allocation5 + $0x130] sm:$0xf]
    %v191 = vld [vmem:[#allocation5 + $0x134] sm:$0xff]
    %v192 = vld [vmem:[#allocation5 + $0x13c] sm:$0xff]
    %v193 = vld [vmem:[#allocation5 + $0x144] sm:$0xff]
    %v194 = vld [vmem:[#allocation5 + $0x14c] sm:$0xf]
    %v195 = vld [vmem:[#allocation5 + $0x150] sm:$0xff]
    %v196 = vld [vmem:[#allocation5 + $0x158] sm:$0xff]
    %v197 = vld [vmem:[#allocation5 + $0x160] sm:$0xff]
    %v198 = vld [vmem:[#allocation5 + $0x168] sm:$0xf]
    %v199 = vld [vmem:[#allocation5 + $0x16c] sm:$0xff]
    %v200 = vld [vmem:[#allocation5 + $0x174] sm:$0xff]
    %v201 = vld [vmem:[#allocation5 + $0x17c] sm:$0xff]
    %v202 = vld [vmem:[#allocation5 + $0x184] sm:$0xf]
    %v203 = vld [vmem:[#allocation5 + $0x188] sm:$0xff]
    %v204 = vld [vmem:[#allocation5 + $0x190] sm:$0xff]
    %v205 = vld [vmem:[#allocation5 + $0x198] sm:$0xff]
    %v206 = vld [vmem:[#allocation5 + $0x1a0] sm:$0xf]
    %v207 = vld [vmem:[#allocation5 + $0x1a4] sm:$0xff]
    %v208 = vld [vmem:[#allocation5 + $0x1ac] sm:$0xff]
    %v209 = vld [vmem:[#allocation5 + $0x1b4] sm:$0xff]
    %v210 = vld [vmem:[#allocation5 + $0x1bc] sm:$0xf]
    %v211 = vld [vmem:[#allocation5 + $0x1c0] sm:$0xff]
    %v212 = vld [vmem:[#allocation5 + $0x1c8] sm:$0xff]
    %v213 = vld [vmem:[#allocation5 + $0x1d0] sm:$0xff]
    %v214 = vld [vmem:[#allocation5 + $0x1d8] sm:$0xf]
    %v215 = vld [vmem:[#allocation5 + $0x1dc] sm:$0xff]
    %v216 = vld [vmem:[#allocation5 + $0x1e4] sm:$0xff]
    %v217 = vld [vmem:[#allocation5 + $0x1ec] sm:$0xff]
    %v218 = vld [vmem:[#allocation5 + $0x1f4] sm:$0xf]
    %v219 = vld [vmem:[#allocation5 + $0x1f8] sm:$0xff]
    %v220 = vld [vmem:[#allocation5 + $0x200] sm:$0xff]
    %v221 = vld [vmem:[#allocation5 + $0x208] sm:$0xff]
    %v222 = vld [vmem:[#allocation5 + $0x210] sm:$0xf]
    %v223 = vld [vmem:[#allocation5 + $0x214] sm:$0xff]
    %v224 = vld [vmem:[#allocation5 + $0x21c] sm:$0xff]
    %v225 = vld [vmem:[#allocation5 + $0x224] sm:$0xff]
    %v226 = vld [vmem:[#allocation5 + $0x22c] sm:$0xf]
    %v227 = vld [vmem:[#allocation5 + $0x230] sm:$0xff]
    %v228 = vld [vmem:[#allocation5 + $0x238] sm:$0xff]
    %v229 = vld [vmem:[#allocation5 + $0x240] sm:$0xff]
    %v230 = vld [vmem:[#allocation5 + $0x248] sm:$0xf]
    %v231 = vld [vmem:[#allocation5 + $0x24c] sm:$0xff]
    %v232 = vld [vmem:[#allocation5 + $0x254] sm:$0xff]
    %v233 = vld [vmem:[#allocation5 + $0x25c] sm:$0xff]
    %v234 = vld [vmem:[#allocation5 + $0x264] sm:$0xf]
    %v235 = vld [vmem:[#allocation5 + $0x268] sm:$0xff]
    %v236 = vld [vmem:[#allocation5 + $0x270] sm:$0xff]
    %v237 = vld [vmem:[#allocation5 + $0x278] sm:$0xff]
    %v238 = vld [vmem:[#allocation5 + $0x280] sm:$0xf]
    %v239 = vld [vmem:[#allocation5 + $0x284] sm:$0xff]
    %v240 = vld [vmem:[#allocation5 + $0x28c] sm:$0xff]
    %v241 = vld [vmem:[#allocation5 + $0x294] sm:$0xff]
    %v242 = vld [vmem:[#allocation5 + $0x29c] sm:$0xf]
    %v243 = vld [vmem:[#allocation5 + $0x2a0] sm:$0xff]
    %v244 = vld [vmem:[#allocation5 + $0x2a8] sm:$0xff]
    %v245 = vld [vmem:[#allocation5 + $0x2b0] sm:$0xff]
    %v246 = vld [vmem:[#allocation5 + $0x2b8] sm:$0xf]
    %v247 = vld [vmem:[#allocation5 + $0x2bc] sm:$0xff]
    %v248 = vld [vmem:[#allocation5 + $0x2c4] sm:$0xff]
    %v249 = vld [vmem:[#allocation5 + $0x2cc] sm:$0xff]
    %v250 = vld [vmem:[#allocation5 + $0x2d4] sm:$0xf]
    %v251 = vld [vmem:[#allocation5 + $0x2d8] sm:$0xff]
    %v252 = vld [vmem:[#allocation5 + $0x2e0] sm:$0xff]
    %v253 = vld [vmem:[#allocation5 + $0x2e8] sm:$0xff]
    %v254 = vld [vmem:[#allocation5 + $0x2f0] sm:$0xf]
    %v255 = vld [vmem:[#allocation5 + $0x2f4] sm:$0xff]
    %v256 = vld [vmem:[#allocation5 + $0x2fc] sm:$0xff]
    %v257 = vld [vmem:[#allocation5 + $0x304] sm:$0xff]
    %v258 = vld [vmem:[#allocation5 + $0x30c] sm:$0xf]
    %v259 = vld [vmem:[#allocation5 + $0x310] sm:$0xff]
    %v260 = vld [vmem:[#allocation5 + $0x318] sm:$0xff]
    %v261 = vld [vmem:[#allocation5 + $0x320] sm:$0xff]
    %v262 = vld [vmem:[#allocation5 + $0x328] sm:$0xf]
    %v263 = vld [vmem:[#allocation5 + $0x32c] sm:$0xff]
    %v264 = vld [vmem:[#allocation5 + $0x334] sm:$0xff]
    %v265 = vld [vmem:[#allocation5 + $0x33c] sm:$0xff]
    %v266 = vld [vmem:[#allocation5 + $0x344] sm:$0xf]
    %v267 = vld [vmem:[#allocation5 + $0x348] sm:$0xff]
    %v268 = vld [vmem:[#allocation5 + $0x350] sm:$0xff]
    %v269 = vld [vmem:[#allocation5 + $0x358] sm:$0xff]
    %v270 = vld [vmem:[#allocation5 + $0x360] sm:$0xf]
    %v271 = vld [vmem:[#allocation5 + $0x364] sm:$0xff]
    %v272 = vld [vmem:[#allocation5 + $0x36c] sm:$0xff]
    %v273 = vld [vmem:[#allocation5 + $0x374] sm:$0xff]
    %v274 = vld [vmem:[#allocation5 + $0x37c] sm:$0xf]
    %v275 = vld [vmem:[#allocation5 + $0x380] sm:$0xff]
    %v276 = vld [vmem:[#allocation5 + $0x388] sm:$0xff]
    %v277 = vld [vmem:[#allocation5 + $0x390] sm:$0xff]
    %v278 = vld [vmem:[#allocation5 + $0x398] sm:$0xf]
    %v279 = vld [vmem:[#allocation5 + $0x39c] sm:$0xff]
    %v280 = vld [vmem:[#allocation5 + $0x3a4] sm:$0xff]
    %v281 = vld [vmem:[#allocation5 + $0x3ac] sm:$0xff]
    %v282 = vld [vmem:[#allocation5 + $0x3b4] sm:$0xf]
    %v283 = vld [vmem:[#allocation5 + $0x3b8] sm:$0xff]
    %v284 = vld [vmem:[#allocation5 + $0x3c0] sm:$0xff]
    %v285 = vld [vmem:[#allocation5 + $0x3c8] sm:$0xff]
    %v286 = vld [vmem:[#allocation5 + $0x3d0] sm:$0xf]
    %v287 = vld [vmem:[#allocation5 + $0x3d4] sm:$0xff]
    %v288 = vld [vmem:[#allocation5 + $0x3dc] sm:$0xff]
    %v289 = vld [vmem:[#allocation5 + $0x3e4] sm:$0xff]
    %v290 = vld [vmem:[#allocation5 + $0x3ec] sm:$0xf]
    %v291 = vld [vmem:[#allocation5 + $0x3f0] sm:$0xff]
    %v292 = vld [vmem:[#allocation5 + $0x3f8] sm:$0xff]
    %v293 = vld [vmem:[#allocation5 + $0x400] sm:$0xff]
    %v294 = vld [vmem:[#allocation5 + $0x408] sm:$0xf]
    %v295 = vld [vmem:[#allocation5 + $0x40c] sm:$0xff]
    %v296 = vld [vmem:[#allocation5 + $0x414] sm:$0xff]
    %v297 = vld [vmem:[#allocation5 + $0x41c] sm:$0xff]
    %v298 = vld [vmem:[#allocation5 + $0x424] sm:$0xf]
    %v299 = vld [vmem:[#allocation5 + $0x428] sm:$0xff]
    %v300 = vld [vmem:[#allocation5 + $0x430] sm:$0xff]
    %v301 = vld [vmem:[#allocation5 + $0x438] sm:$0xff]
    %v302 = vld [vmem:[#allocation5 + $0x440] sm:$0xf]
    %v303 = vld [vmem:[#allocation5 + $0x444] sm:$0xff]
    %v304 = vld [vmem:[#allocation5 + $0x44c] sm:$0xff]
    %v305 = vld [vmem:[#allocation5 + $0x454] sm:$0xff]
    %v306 = vld [vmem:[#allocation5 + $0x45c] sm:$0xf]
    %v307 = vld [vmem:[#allocation5 + $0x460] sm:$0xff]
    %v308 = vld [vmem:[#allocation5 + $0x468] sm:$0xff]
    %v309 = vld [vmem:[#allocation5 + $0x470] sm:$0xff]
    %v310 = vld [vmem:[#allocation5 + $0x478] sm:$0xf]
    %v311 = vld [vmem:[#allocation5 + $0x47c] sm:$0xff]
    %v312 = vld [vmem:[#allocation5 + $0x484] sm:$0xff]
    %v313 = vld [vmem:[#allocation5 + $0x48c] sm:$0xff]
    %v314 = vld [vmem:[#allocation5 + $0x494] sm:$0xf]
    %v315 = vld [vmem:[#allocation5 + $0x498] sm:$0xff]
    %v316 = vld [vmem:[#allocation5 + $0x4a0] sm:$0xff]
    %v317 = vld [vmem:[#allocation5 + $0x4a8] sm:$0xff]
    %v318 = vld [vmem:[#allocation5 + $0x4b0] sm:$0xf]
    %v319 = vld [vmem:[#allocation5 + $0x4b4] sm:$0xff]
    %v320 = vld [vmem:[#allocation5 + $0x4bc] sm:$0xff]
    %v321 = vld [vmem:[#allocation5 + $0x4c4] sm:$0xff]
    %v322 = vld [vmem:[#allocation5 + $0x4cc] sm:$0xf]
    %v323 = vld [vmem:[#allocation5 + $0x4d0] sm:$0xff]
    %v324 = vld [vmem:[#allocation5 + $0x4d8] sm:$0xff]
    %v325 = vld [vmem:[#allocation5 + $0x4e0] sm:$0xff]
    %v326 = vld [vmem:[#allocation5 + $0x4e8] sm:$0xf]
    %v327 = vld [vmem:[#allocation5 + $0x4ec] sm:$0xff]
    %v328 = vld [vmem:[#allocation5 + $0x4f4] sm:$0xff]
    %v329 = vld [vmem:[#allocation5 + $0x4fc] sm:$0xff]
    %v330 = vld [vmem:[#allocation5 + $0x504] sm:$0xf]
    %v331 = vld [vmem:[#allocation5 + $0x508] sm:$0xff]
    %v332 = vld [vmem:[#allocation5 + $0x510] sm:$0xff]
    %v333 = vld [vmem:[#allocation5 + $0x518] sm:$0xff]
    %v334 = vld [vmem:[#allocation5 + $0x520] sm:$0xf]
    %v335 = vld [vmem:[#allocation5 + $0x524] sm:$0xff]
    %v336 = vld [vmem:[#allocation5 + $0x52c] sm:$0xff]
    %v337 = vld [vmem:[#allocation5 + $0x534] sm:$0xff]
    %v338 = vld [vmem:[#allocation5 + $0x53c] sm:$0xf]
    %v339 = vld [vmem:[#allocation5 + $0x540] sm:$0xff]
    %v340 = vld [vmem:[#allocation5 + $0x548] sm:$0xff]
    %v341 = vld [vmem:[#allocation5 + $0x550] sm:$0xff]
    %v342 = vld [vmem:[#allocation5 + $0x558] sm:$0xf]
    %v343 = vld [vmem:[#allocation5 + $0x55c] sm:$0xff]
    %v344 = vld [vmem:[#allocation5 + $0x564] sm:$0xff]
    %v345 = vld [vmem:[#allocation5 + $0x56c] sm:$0xff]
    %v346 = vld [vmem:[#allocation5 + $0x574] sm:$0xf]
    %v347 = vld [vmem:[#allocation5 + $0x578] sm:$0xff]
    %v348 = vld [vmem:[#allocation5 + $0x580] sm:$0xff]
    %v349 = vld [vmem:[#allocation5 + $0x588] sm:$0xff]
    %v350 = vld [vmem:[#allocation5 + $0x590] sm:$0xf]
    %v351 = vld [vmem:[#allocation5 + $0x594] sm:$0xff]
    %v352 = vld [vmem:[#allocation5 + $0x59c] sm:$0xff]
    %v353 = vld [vmem:[#allocation5 + $0x5a4] sm:$0xff]
    %v354 = vld [vmem:[#allocation5 + $0x5ac] sm:$0xf]
    %v355 = vld [vmem:[#allocation5 + $0x5b0] sm:$0xff]
    %v356 = vld [vmem:[#allocation5 + $0x5b8] sm:$0xff]
    %v357 = vld [vmem:[#allocation5 + $0x5c0] sm:$0xff]
    %v358 = vld [vmem:[#allocation5 + $0x5c8] sm:$0xf]
    %v359 = vld [vmem:[#allocation5 + $0x5cc] sm:$0xff]
    %v360 = vld [vmem:[#allocation5 + $0x5d4] sm:$0xff]
    %v361 = vld [vmem:[#allocation5 + $0x5dc] sm:$0xff]
    %v362 = vld [vmem:[#allocation5 + $0x5e4] sm:$0xf]
    %v363 = vld [vmem:[#allocation5 + $0x5e8] sm:$0xff]
    %v364 = vld [vmem:[#allocation5 + $0x5f0] sm:$0xff]
    %v365 = vld [vmem:[#allocation5 + $0x5f8] sm:$0xff]
    %v366 = vld [vmem:[#allocation5 + $0x600] sm:$0xf]
    %v367 = vld [vmem:[#allocation5 + $0x604] sm:$0xff]
    %v368 = vld [vmem:[#allocation5 + $0x60c] sm:$0xff]
    %v369 = vld [vmem:[#allocation5 + $0x614] sm:$0xff]
    %v370 = vld [vmem:[#allocation5 + $0x61c] sm:$0xf]
    %v371 = vld [vmem:[#allocation5 + $0x620] sm:$0xff]
    %v372 = vld [vmem:[#allocation5 + $0x628] sm:$0xff]
    %v373 = vld [vmem:[#allocation5 + $0x630] sm:$0xff]
    %v374 = vld [vmem:[#allocation5 + $0x638] sm:$0xf]
    %v375 = vld [vmem:[#allocation5 + $0x63c] sm:$0xff]
    %v376 = vld [vmem:[#allocation5 + $0x644] sm:$0xff]
    %v377 = vld [vmem:[#allocation5 + $0x64c] sm:$0xff]
    %v378 = vld [vmem:[#allocation5 + $0x654] sm:$0xf]
    %v379 = vld [vmem:[#allocation5 + $0x658] sm:$0xff]
    %v380 = vld [vmem:[#allocation5 + $0x660] sm:$0xff]
    %v381 = vld [vmem:[#allocation5 + $0x668] sm:$0xff]
    %v382 = vld [vmem:[#allocation5 + $0x670] sm:$0xf]
    %v383 = vld [vmem:[#allocation5 + $0x674] sm:$0xff]
    %v384 = vld [vmem:[#allocation5 + $0x67c] sm:$0xff]
    %v385 = vld [vmem:[#allocation5 + $0x684] sm:$0xff]
    %v386 = vld [vmem:[#allocation5 + $0x68c] sm:$0xf]
    %v387 = vld [vmem:[#allocation5 + $0x690] sm:$0xff]
    %v388 = vld [vmem:[#allocation5 + $0x698] sm:$0xff]
    %v389 = vld [vmem:[#allocation5 + $0x6a0] sm:$0xff]
    %v390 = vld [vmem:[#allocation5 + $0x6a8] sm:$0xf]
    %v391 = vld [vmem:[#allocation5 + $0x6ac] sm:$0xff]
    %v392 = vld [vmem:[#allocation5 + $0x6b4] sm:$0xff]
    %v393 = vld [vmem:[#allocation5 + $0x6bc] sm:$0xff]
    %v394 = vld [vmem:[#allocation5 + $0x6c4] sm:$0xf]
    %v395 = vld [vmem:[#allocation5 + $0x6c8] sm:$0xff]
    %v396 = vld [vmem:[#allocation5 + $0x6d0] sm:$0xff]
    %v397 = vld [vmem:[#allocation5 + $0x6d8] sm:$0xff]
    %v398 = vld [vmem:[#allocation5 + $0x6e0] sm:$0xf]
    %v399 = vld [vmem:[#allocation5 + $0x6e4] sm:$0xff]
    %v400 = vld [vmem:[#allocation5 + $0x6ec] sm:$0xff]
    %v401 = vld [vmem:[#allocation5 + $0x6f4] sm:$0xff]
    %v402 = vld [vmem:[#allocation5 + $0x6fc] sm:$0xf]
    %v403 = vld [vmem:[#allocation5 + $0x700] sm:$0xff]
    %v404 = vld [vmem:[#allocation5 + $0x708] sm:$0xff]
    %v405 = vld [vmem:[#allocation5 + $0x710] sm:$0xff]
    %v406 = vld [vmem:[#allocation5 + $0x718] sm:$0xf]
    %v407 = vld [vmem:[#allocation5 + $0x71c] sm:$0xff]
    %v408 = vld [vmem:[#allocation5 + $0x724] sm:$0xff]
    %v409 = vld [vmem:[#allocation5 + $0x72c] sm:$0xff]
    %v410 = vld [vmem:[#allocation5 + $0x734] sm:$0xf]
    %v411 = vld [vmem:[#allocation5 + $0x738] sm:$0xff]
    %v412 = vld [vmem:[#allocation5 + $0x740] sm:$0xff]
    %v413 = vld [vmem:[#allocation5 + $0x748] sm:$0xff]
    %v414 = vld [vmem:[#allocation5 + $0x750] sm:$0xf]
    %v415 = vld [vmem:[#allocation5 + $0x754] sm:$0xff]
    %v416 = vld [vmem:[#allocation5 + $0x75c] sm:$0xff]
    %v417 = vld [vmem:[#allocation5 + $0x764] sm:$0xff]
    %v418 = vld [vmem:[#allocation5 + $0x76c] sm:$0xf]
    %v419 = vld [vmem:[#allocation5 + $0x770] sm:$0xff]
    %v420 = vld [vmem:[#allocation5 + $0x778] sm:$0xff]
    %v421 = vld [vmem:[#allocation5 + $0x780] sm:$0xff]
    %v422 = vld [vmem:[#allocation5 + $0x788] sm:$0xf]
    %v423 = vld [vmem:[#allocation5 + $0x78c] sm:$0xff]
    %v424 = vld [vmem:[#allocation5 + $0x794] sm:$0xff]
    %v425 = vld [vmem:[#allocation5 + $0x79c] sm:$0xff]
    %v426 = vld [vmem:[#allocation5 + $0x7a4] sm:$0xf]
    %v427 = vld [vmem:[#allocation5 + $0x7a8] sm:$0xff]
    %v428 = vld [vmem:[#allocation5 + $0x7b0] sm:$0xff]
    %v429 = vld [vmem:[#allocation5 + $0x7b8] sm:$0xff]
    %v430 = vld [vmem:[#allocation5 + $0x7c0] sm:$0xf]
    %v431 = vld [vmem:[#allocation5 + $0x7c4] sm:$0xff]
    %v432 = vld [vmem:[#allocation5 + $0x7cc] sm:$0xff]
    %v433 = vld [vmem:[#allocation5 + $0x7d4] sm:$0xff]
    %v434 = vld [vmem:[#allocation5 + $0x7dc] sm:$0xf]
    %v435 = vld [vmem:[#allocation5 + $0x7e0] sm:$0xff]
    %v436 = vld [vmem:[#allocation5 + $0x7e8] sm:$0xff]
    %v437 = vld [vmem:[#allocation5 + $0x7f0] sm:$0xff]
    %v438 = vld [vmem:[#allocation5 + $0x7f8] sm:$0xf]
    %v439 = vld [vmem:[#allocation5 + $0x7fc] sm:$0xff]
    %v440 = vld [vmem:[#allocation5 + $0x804] sm:$0xff]
    %v441 = vld [vmem:[#allocation5 + $0x80c] sm:$0xff]
    %v442 = vld [vmem:[#allocation5 + $0x814] sm:$0xf]
    %v443 = vld [vmem:[#allocation5 + $0x818] sm:$0xff]
    %v444 = vld [vmem:[#allocation5 + $0x820] sm:$0xff]
    %v445 = vld [vmem:[#allocation5 + $0x828] sm:$0xff]
    %v446 = vld [vmem:[#allocation5 + $0x830] sm:$0xf]
    %v447 = vld [vmem:[#allocation5 + $0x834] sm:$0xff]
    %v448 = vld [vmem:[#allocation5 + $0x83c] sm:$0xff]
    %v449 = vld [vmem:[#allocation5 + $0x844] sm:$0xff]
    %v450 = vld [vmem:[#allocation5 + $0x84c] sm:$0xf]
    %v451 = vld [vmem:[#allocation5 + $0x850] sm:$0xff]
    %v452 = vld [vmem:[#allocation5 + $0x858] sm:$0xff]
    %v453 = vld [vmem:[#allocation5 + $0x860] sm:$0xff]
    %v454 = vld [vmem:[#allocation5 + $0x868] sm:$0xf]
    %v455 = vld [vmem:[#allocation5 + $0x86c] sm:$0xff]
    %v456 = vld [vmem:[#allocation5 + $0x874] sm:$0xff]
    %v457 = vld [vmem:[#allocation5 + $0x87c] sm:$0xff]
    %v458 = vld [vmem:[#allocation5 + $0x884] sm:$0xf]
    %v459 = vld [vmem:[#allocation5 + $0x888] sm:$0xff]
    %v460 = vld [vmem:[#allocation5 + $0x890] sm:$0xff]
    %v461 = vld [vmem:[#allocation5 + $0x898] sm:$0xff]
    %v462 = vld [vmem:[#allocation5 + $0x8a0] sm:$0xf]
    %v463 = vld [vmem:[#allocation5 + $0x8a4] sm:$0xff]
    %v464 = vld [vmem:[#allocation5 + $0x8ac] sm:$0xff]
    %v465 = vld [vmem:[#allocation5 + $0x8b4] sm:$0xff]
    %v466 = vld [vmem:[#allocation5 + $0x8bc] sm:$0xf]
    %v467 = vld [vmem:[#allocation5 + $0x8c0] sm:$0xff]
    %v468 = vld [vmem:[#allocation5 + $0x8c8] sm:$0xff]
    %v469 = vld [vmem:[#allocation5 + $0x8d0] sm:$0xff]
    %v470 = vld [vmem:[#allocation5 + $0x8d8] sm:$0xf]
    %v471 = vld [vmem:[#allocation5 + $0x8dc] sm:$0xff]
    %v472 = vld [vmem:[#allocation5 + $0x8e4] sm:$0xff]
    %v473 = vld [vmem:[#allocation5 + $0x8ec] sm:$0xff]
    %v474 = vld [vmem:[#allocation5 + $0x8f4] sm:$0xf]
    %v475 = vld [vmem:[#allocation5 + $0x8f8] sm:$0xff]
    %v476 = vld [vmem:[#allocation5 + $0x900] sm:$0xff]
    %v477 = vld [vmem:[#allocation5 + $0x908] sm:$0xff]
    %v478 = vld [vmem:[#allocation5 + $0x910] sm:$0xf]
    %v479 = vld [vmem:[#allocation5 + $0x914] sm:$0xff]
    %v480 = vld [vmem:[#allocation5 + $0x91c] sm:$0xff]
    %v481 = vld [vmem:[#allocation5 + $0x924] sm:$0xff]
    %v482 = vld [vmem:[#allocation5 + $0x92c] sm:$0xf]
    %v483 = vld [vmem:[#allocation5 + $0x930] sm:$0xff]
    %v484 = vld [vmem:[#allocation5 + $0x938] sm:$0xff]
    %v485 = vld [vmem:[#allocation5 + $0x940] sm:$0xff]
    %v486 = vld [vmem:[#allocation5 + $0x948] sm:$0xf]
    %v487 = vld [vmem:[#allocation5 + $0x94c] sm:$0xff]
    %v488 = vld [vmem:[#allocation5 + $0x954] sm:$0xff]
    %v489 = vld [vmem:[#allocation5 + $0x95c] sm:$0xff]
    %v490 = vld [vmem:[#allocation5 + $0x964] sm:$0xf]
    %v491 = vld [vmem:[#allocation5 + $0x968] sm:$0xff]
    %v492 = vld [vmem:[#allocation5 + $0x970] sm:$0xff]
    %v493 = vld [vmem:[#allocation5 + $0x978] sm:$0xff]
    %v494 = vld [vmem:[#allocation5 + $0x980] sm:$0xf]
    %v495 = vld [vmem:[#allocation5 + $0x984] sm:$0xff]
    %v496 = vld [vmem:[#allocation5 + $0x98c] sm:$0xff]
    %v497 = vld [vmem:[#allocation5 + $0x994] sm:$0xff]
    %v498 = vld [vmem:[#allocation5 + $0x99c] sm:$0xf]
    %v499 = vld [vmem:[#allocation5 + $0x9a0] sm:$0xff]
    %v500 = vld [vmem:[#allocation5 + $0x9a8] sm:$0xff]
    %v501 = vld [vmem:[#allocation5 + $0x9b0] sm:$0xff]
    %v502 = vld [vmem:[#allocation5 + $0x9b8] sm:$0xf]
    %v503 = vld [vmem:[#allocation5 + $0x9bc] sm:$0xff]
    %v504 = vld [vmem:[#allocation5 + $0x9c4] sm:$0xff]
    %v505 = vld [vmem:[#allocation5 + $0x9cc] sm:$0xff]
    %v506 = vld [vmem:[#allocation5 + $0x9d4] sm:$0xf]
    %v507 = vld [vmem:[#allocation5 + $0x9d8] sm:$0xff]
    %v508 = vld [vmem:[#allocation5 + $0x9e0] sm:$0xff]
    %v509 = vld [vmem:[#allocation5 + $0x9e8] sm:$0xff]
    %v510 = vld [vmem:[#allocation5 + $0x9f0] sm:$0xf]
    %v511 = vld [vmem:[#allocation5 + $0x9f4] sm:$0xff]
    %v512 = vld [vmem:[#allocation5 + $0x9fc] sm:$0xff]
    %v513 = vld [vmem:[#allocation5 + $0xa04] sm:$0xff]
    %v514 = vld [vmem:[#allocation5 + $0xa0c] sm:$0xf]
    %v515 = vld [vmem:[#allocation5 + $0xa10] sm:$0xff]
    %v516 = vld [vmem:[#allocation5 + $0xa18] sm:$0xff]
    %v517 = vld [vmem:[#allocation5 + $0xa20] sm:$0xff]
    %v518 = vld [vmem:[#allocation5 + $0xa28] sm:$0xf]
    %v519 = vld [vmem:[#allocation5 + $0xa2c] sm:$0xff]
    %v520 = vld [vmem:[#allocation5 + $0xa34] sm:$0xff]
    %v521 = vld [vmem:[#allocation5 + $0xa3c] sm:$0xff]
    %v522 = vld [vmem:[#allocation5 + $0xa44] sm:$0xf]
    %v523 = vld [vmem:[#allocation5 + $0xa48] sm:$0xff]
    %v524 = vld [vmem:[#allocation5 + $0xa50] sm:$0xff]
    %v525 = vld [vmem:[#allocation5 + $0xa58] sm:$0xff]
    %v526 = vld [vmem:[#allocation5 + $0xa60] sm:$0xf]
    %v527 = vld [vmem:[#allocation5 + $0xa64] sm:$0xff]
    %v528 = vld [vmem:[#allocation5 + $0xa6c] sm:$0xff]
    %v529 = vld [vmem:[#allocation5 + $0xa74] sm:$0xff]
    %v530 = vld [vmem:[#allocation5 + $0xa7c] sm:$0xf]
    %v531 = vld [vmem:[#allocation5 + $0xa80] sm:$0xff]
    %v532 = vld [vmem:[#allocation5 + $0xa88] sm:$0xff]
    %v533 = vld [vmem:[#allocation5 + $0xa90] sm:$0xff]
    %v534 = vld [vmem:[#allocation5 + $0xa98] sm:$0xf]
    %v535 = vld [vmem:[#allocation5 + $0xa9c] sm:$0xff]
    %v536 = vld [vmem:[#allocation5 + $0xaa4] sm:$0xff]
    %v537 = vld [vmem:[#allocation5 + $0xaac] sm:$0xff]
    %v538 = vld [vmem:[#allocation5 + $0xab4] sm:$0xf]
    %v539 = vld [vmem:[#allocation7] sm:$0x7f]
    %v541 = vlaneseq
    %v542 = vshrl.u32 %v541, 7
    %v543 = vsub.s32 0, %v542
    %v544 = vrot.slane %v539, %v543
    %v545 = vlaneseq
    %v546 = vshrl.u32 %v545, 7
    %v547 = vsub.s32 1, %v546
    %v548 = vrot.slane %v539, %v547
    %v549 = vlaneseq
    %v550 = vshrl.u32 %v549, 7
    %v551 = vsub.s32 2, %v550
    %v552 = vrot.slane %v539, %v551
    %v553 = vlaneseq
    %v554 = vshrl.u32 %v553, 7
    %v555 = vsub.s32 3, %v554
    %v556 = vrot.slane %v539, %v555
    %v557 = vlaneseq
    %v558 = vshrl.u32 %v557, 7
    %v559 = vsub.s32 4, %v558
    %v560 = vrot.slane %v539, %v559
    %v561 = vlaneseq
    %v562 = vshrl.u32 %v561, 7
    %v563 = vsub.s32 5, %v562
    %v564 = vrot.slane %v539, %v563
    %v565 = vlaneseq
    %v566 = vshrl.u32 %v565, 7
    %v567 = vsub.s32 6, %v566
    %v568 = vrot.slane %v539, %v567
    %v968 = vunpack.c.l.b16 %v147
    %v969 = vunpack.c.h.b16 %v147
    %v970 = vunpack.c.l.b16 %v148
    %v971 = vunpack.c.h.b16 %v148
    %v972 = vunpack.c.l.b16 %v149
    %v973 = vunpack.c.h.b16 %v149
    %v974 = vunpack.c.l.b16 %v150
    %v975 = vunpack.c.l.b16 %v151
    %v976 = vunpack.c.h.b16 %v151
    %v977 = vunpack.c.l.b16 %v152
    %v978 = vunpack.c.h.b16 %v152
    %v979 = vunpack.c.l.b16 %v153
    %v980 = vunpack.c.h.b16 %v153
    %v981 = vunpack.c.l.b16 %v154
    %v982 = vunpack.c.l.b16 %v155
    %v983 = vunpack.c.h.b16 %v155
    %v984 = vunpack.c.l.b16 %v156
    %v985 = vunpack.c.h.b16 %v156
    %v986 = vunpack.c.l.b16 %v157
    %v987 = vunpack.c.h.b16 %v157
    %v988 = vunpack.c.l.b16 %v158
    %v989 = vunpack.c.l.b16 %v159
    %v990 = vunpack.c.h.b16 %v159
    %v991 = vunpack.c.l.b16 %v160
    %v992 = vunpack.c.h.b16 %v160
    %v993 = vunpack.c.l.b16 %v161
    %v994 = vunpack.c.h.b16 %v161
    %v995 = vunpack.c.l.b16 %v162
    %v996 = vunpack.c.l.b16 %v163
    %v997 = vunpack.c.h.b16 %v163
    %v998 = vunpack.c.l.b16 %v164
    %v999 = vunpack.c.h.b16 %v164
    %v1000 = vunpack.c.l.b16 %v165
    %v1001 = vunpack.c.h.b16 %v165
    %v1002 = vunpack.c.l.b16 %v166
    %v1003 = vunpack.c.l.b16 %v167
    %v1004 = vunpack.c.h.b16 %v167
    %v1005 = vunpack.c.l.b16 %v168
    %v1006 = vunpack.c.h.b16 %v168
    %v1007 = vunpack.c.l.b16 %v169
    %v1008 = vunpack.c.h.b16 %v169
    %v1009 = vunpack.c.l.b16 %v170
    %v1010 = vunpack.c.l.b16 %v171
    %v1011 = vunpack.c.h.b16 %v171
    %v1012 = vunpack.c.l.b16 %v172
    %v1013 = vunpack.c.h.b16 %v172
    %v1014 = vunpack.c.l.b16 %v173
    %v1015 = vunpack.c.h.b16 %v173
    %v1016 = vunpack.c.l.b16 %v174
    %v1017 = vunpack.c.l.b16 %v175
    %v1018 = vunpack.c.h.b16 %v175
    %v1019 = vunpack.c.l.b16 %v176
    %v1020 = vunpack.c.h.b16 %v176
    %v1021 = vunpack.c.l.b16 %v177
    %v1022 = vunpack.c.h.b16 %v177
    %v1023 = vunpack.c.l.b16 %v178
    %v1024 = vunpack.c.l.b16 %v179
    %v1025 = vunpack.c.h.b16 %v179
    %v1026 = vunpack.c.l.b16 %v180
    %v1027 = vunpack.c.h.b16 %v180
    %v1028 = vunpack.c.l.b16 %v181
    %v1029 = vunpack.c.h.b16 %v181
    %v1030 = vunpack.c.l.b16 %v182
    %v1031 = vunpack.c.l.b16 %v183
    %v1032 = vunpack.c.h.b16 %v183
    %v1033 = vunpack.c.l.b16 %v184
    %v1034 = vunpack.c.h.b16 %v184
    %v1035 = vunpack.c.l.b16 %v185
    %v1036 = vunpack.c.h.b16 %v185
    %v1037 = vunpack.c.l.b16 %v186
    %v1038 = vunpack.c.l.b16 %v187
    %v1039 = vunpack.c.h.b16 %v187
    %v1040 = vunpack.c.l.b16 %v188
    %v1041 = vunpack.c.h.b16 %v188
    %v1042 = vunpack.c.l.b16 %v189
    %v1043 = vunpack.c.h.b16 %v189
    %v1044 = vunpack.c.l.b16 %v190
    %v1045 = vunpack.c.l.b16 %v191
    %v1046 = vunpack.c.h.b16 %v191
    %v1047 = vunpack.c.l.b16 %v192
    %v1048 = vunpack.c.h.b16 %v192
    %v1049 = vunpack.c.l.b16 %v193
    %v1050 = vunpack.c.h.b16 %v193
    %v1051 = vunpack.c.l.b16 %v194
    %v1052 = vunpack.c.l.b16 %v195
    %v1053 = vunpack.c.h.b16 %v195
    %v1054 = vunpack.c.l.b16 %v196
    %v1055 = vunpack.c.h.b16 %v196
    %v1056 = vunpack.c.l.b16 %v197
    %v1057 = vunpack.c.h.b16 %v197
    %v1058 = vunpack.c.l.b16 %v198
    %v1059 = vunpack.c.l.b16 %v199
    %v1060 = vunpack.c.h.b16 %v199
    %v1061 = vunpack.c.l.b16 %v200
    %v1062 = vunpack.c.h.b16 %v200
    %v1063 = vunpack.c.l.b16 %v201
    %v1064 = vunpack.c.h.b16 %v201
    %v1065 = vunpack.c.l.b16 %v202
    %v1066 = vunpack.c.l.b16 %v203
    %v1067 = vunpack.c.h.b16 %v203
    %v1068 = vunpack.c.l.b16 %v204
    %v1069 = vunpack.c.h.b16 %v204
    %v1070 = vunpack.c.l.b16 %v205
    %v1071 = vunpack.c.h.b16 %v205
    %v1072 = vunpack.c.l.b16 %v206
    %v1073 = vunpack.c.l.b16 %v207
    %v1074 = vunpack.c.h.b16 %v207
    %v1075 = vunpack.c.l.b16 %v208
    %v1076 = vunpack.c.h.b16 %v208
    %v1077 = vunpack.c.l.b16 %v209
    %v1078 = vunpack.c.h.b16 %v209
    %v1079 = vunpack.c.l.b16 %v210
    %v1080 = vunpack.c.l.b16 %v211
    %v1081 = vunpack.c.h.b16 %v211
    %v1082 = vunpack.c.l.b16 %v212
    %v1083 = vunpack.c.h.b16 %v212
    %v1084 = vunpack.c.l.b16 %v213
    %v1085 = vunpack.c.h.b16 %v213
    %v1086 = vunpack.c.l.b16 %v214
    %v1087 = vunpack.c.l.b16 %v215
    %v1088 = vunpack.c.h.b16 %v215
    %v1089 = vunpack.c.l.b16 %v216
    %v1090 = vunpack.c.h.b16 %v216
    %v1091 = vunpack.c.l.b16 %v217
    %v1092 = vunpack.c.h.b16 %v217
    %v1093 = vunpack.c.l.b16 %v218
    %v1094 = vunpack.c.l.b16 %v219
    %v1095 = vunpack.c.h.b16 %v219
    %v1096 = vunpack.c.l.b16 %v220
    %v1097 = vunpack.c.h.b16 %v220
    %v1098 = vunpack.c.l.b16 %v221
    %v1099 = vunpack.c.h.b16 %v221
    %v1100 = vunpack.c.l.b16 %v222
    %v1101 = vunpack.c.l.b16 %v223
    %v1102 = vunpack.c.h.b16 %v223
    %v1103 = vunpack.c.l.b16 %v224
    %v1104 = vunpack.c.h.b16 %v224
    %v1105 = vunpack.c.l.b16 %v225
    %v1106 = vunpack.c.h.b16 %v225
    %v1107 = vunpack.c.l.b16 %v226
    %v1108 = vunpack.c.l.b16 %v227
    %v1109 = vunpack.c.h.b16 %v227
    %v1110 = vunpack.c.l.b16 %v228
    %v1111 = vunpack.c.h.b16 %v228
    %v1112 = vunpack.c.l.b16 %v229
    %v1113 = vunpack.c.h.b16 %v229
    %v1114 = vunpack.c.l.b16 %v230
    %v1115 = vunpack.c.l.b16 %v231
    %v1116 = vunpack.c.h.b16 %v231
    %v1117 = vunpack.c.l.b16 %v232
    %v1118 = vunpack.c.h.b16 %v232
    %v1119 = vunpack.c.l.b16 %v233
    %v1120 = vunpack.c.h.b16 %v233
    %v1121 = vunpack.c.l.b16 %v234
    %v1122 = vunpack.c.l.b16 %v235
    %v1123 = vunpack.c.h.b16 %v235
    %v1124 = vunpack.c.l.b16 %v236
    %v1125 = vunpack.c.h.b16 %v236
    %v1126 = vunpack.c.l.b16 %v237
    %v1127 = vunpack.c.h.b16 %v237
    %v1128 = vunpack.c.l.b16 %v238
    %v1129 = vunpack.c.l.b16 %v239
    %v1130 = vunpack.c.h.b16 %v239
    %v1131 = vunpack.c.l.b16 %v240
    %v1132 = vunpack.c.h.b16 %v240
    %v1133 = vunpack.c.l.b16 %v241
    %v1134 = vunpack.c.h.b16 %v241
    %v1135 = vunpack.c.l.b16 %v242
    %v1136 = vunpack.c.l.b16 %v243
    %v1137 = vunpack.c.h.b16 %v243
    %v1138 = vunpack.c.l.b16 %v244
    %v1139 = vunpack.c.h.b16 %v244
    %v1140 = vunpack.c.l.b16 %v245
    %v1141 = vunpack.c.h.b16 %v245
    %v1142 = vunpack.c.l.b16 %v246
    %v1143 = vunpack.c.l.b16 %v247
    %v1144 = vunpack.c.h.b16 %v247
    %v1145 = vunpack.c.l.b16 %v248
    %v1146 = vunpack.c.h.b16 %v248
    %v1147 = vunpack.c.l.b16 %v249
    %v1148 = vunpack.c.h.b16 %v249
    %v1149 = vunpack.c.l.b16 %v250
    %v1150 = vunpack.c.l.b16 %v251
    %v1151 = vunpack.c.h.b16 %v251
    %v1152 = vunpack.c.l.b16 %v252
    %v1153 = vunpack.c.h.b16 %v252
    %v1154 = vunpack.c.l.b16 %v253
    %v1155 = vunpack.c.h.b16 %v253
    %v1156 = vunpack.c.l.b16 %v254
    %v1157 = vunpack.c.l.b16 %v255
    %v1158 = vunpack.c.h.b16 %v255
    %v1159 = vunpack.c.l.b16 %v256
    %v1160 = vunpack.c.h.b16 %v256
    %v1161 = vunpack.c.l.b16 %v257
    %v1162 = vunpack.c.h.b16 %v257
    %v1163 = vunpack.c.l.b16 %v258
    %v1164 = vunpack.c.l.b16 %v259
    %v1165 = vunpack.c.h.b16 %v259
    %v1166 = vunpack.c.l.b16 %v260
    %v1167 = vunpack.c.h.b16 %v260
    %v1168 = vunpack.c.l.b16 %v261
    %v1169 = vunpack.c.h.b16 %v261
    %v1170 = vunpack.c.l.b16 %v262
    %v1171 = vunpack.c.l.b16 %v263
    %v1172 = vunpack.c.h.b16 %v263
    %v1173 = vunpack.c.l.b16 %v264
    %v1174 = vunpack.c.h.b16 %v264
    %v1175 = vunpack.c.l.b16 %v265
    %v1176 = vunpack.c.h.b16 %v265
    %v1177 = vunpack.c.l.b16 %v266
    %v1178 = vunpack.c.l.b16 %v267
    %v1179 = vunpack.c.h.b16 %v267
    %v1180 = vunpack.c.l.b16 %v268
    %v1181 = vunpack.c.h.b16 %v268
    %v1182 = vunpack.c.l.b16 %v269
    %v1183 = vunpack.c.h.b16 %v269
    %v1184 = vunpack.c.l.b16 %v270
    %v1185 = vunpack.c.l.b16 %v271
    %v1186 = vunpack.c.h.b16 %v271
    %v1187 = vunpack.c.l.b16 %v272
    %v1188 = vunpack.c.h.b16 %v272
    %v1189 = vunpack.c.l.b16 %v273
    %v1190 = vunpack.c.h.b16 %v273
    %v1191 = vunpack.c.l.b16 %v274
    %v1192 = vunpack.c.l.b16 %v275
    %v1193 = vunpack.c.h.b16 %v275
    %v1194 = vunpack.c.l.b16 %v276
    %v1195 = vunpack.c.h.b16 %v276
    %v1196 = vunpack.c.l.b16 %v277
    %v1197 = vunpack.c.h.b16 %v277
    %v1198 = vunpack.c.l.b16 %v278
    %v1199 = vunpack.c.l.b16 %v279
    %v1200 = vunpack.c.h.b16 %v279
    %v1201 = vunpack.c.l.b16 %v280
    %v1202 = vunpack.c.h.b16 %v280
    %v1203 = vunpack.c.l.b16 %v281
    %v1204 = vunpack.c.h.b16 %v281
    %v1205 = vunpack.c.l.b16 %v282
    %v1206 = vunpack.c.l.b16 %v283
    %v1207 = vunpack.c.h.b16 %v283
    %v1208 = vunpack.c.l.b16 %v284
    %v1209 = vunpack.c.h.b16 %v284
    %v1210 = vunpack.c.l.b16 %v285
    %v1211 = vunpack.c.h.b16 %v285
    %v1212 = vunpack.c.l.b16 %v286
    %v1213 = vunpack.c.l.b16 %v287
    %v1214 = vunpack.c.h.b16 %v287
    %v1215 = vunpack.c.l.b16 %v288
    %v1216 = vunpack.c.h.b16 %v288
    %v1217 = vunpack.c.l.b16 %v289
    %v1218 = vunpack.c.h.b16 %v289
    %v1219 = vunpack.c.l.b16 %v290
    %v1220 = vunpack.c.l.b16 %v291
    %v1221 = vunpack.c.h.b16 %v291
    %v1222 = vunpack.c.l.b16 %v292
    %v1223 = vunpack.c.h.b16 %v292
    %v1224 = vunpack.c.l.b16 %v293
    %v1225 = vunpack.c.h.b16 %v293
    %v1226 = vunpack.c.l.b16 %v294
    %v1227 = vunpack.c.l.b16 %v295
    %v1228 = vunpack.c.h.b16 %v295
    %v1229 = vunpack.c.l.b16 %v296
    %v1230 = vunpack.c.h.b16 %v296
    %v1231 = vunpack.c.l.b16 %v297
    %v1232 = vunpack.c.h.b16 %v297
    %v1233 = vunpack.c.l.b16 %v298
    %v1234 = vunpack.c.l.b16 %v299
    %v1235 = vunpack.c.h.b16 %v299
    %v1236 = vunpack.c.l.b16 %v300
    %v1237 = vunpack.c.h.b16 %v300
    %v1238 = vunpack.c.l.b16 %v301
    %v1239 = vunpack.c.h.b16 %v301
    %v1240 = vunpack.c.l.b16 %v302
    %v1241 = vunpack.c.l.b16 %v303
    %v1242 = vunpack.c.h.b16 %v303
    %v1243 = vunpack.c.l.b16 %v304
    %v1244 = vunpack.c.h.b16 %v304
    %v1245 = vunpack.c.l.b16 %v305
    %v1246 = vunpack.c.h.b16 %v305
    %v1247 = vunpack.c.l.b16 %v306
    %v1248 = vunpack.c.l.b16 %v307
    %v1249 = vunpack.c.h.b16 %v307
    %v1250 = vunpack.c.l.b16 %v308
    %v1251 = vunpack.c.h.b16 %v308
    %v1252 = vunpack.c.l.b16 %v309
    %v1253 = vunpack.c.h.b16 %v309
    %v1254 = vunpack.c.l.b16 %v310
    %v1255 = vunpack.c.l.b16 %v311
    %v1256 = vunpack.c.h.b16 %v311
    %v1257 = vunpack.c.l.b16 %v312
    %v1258 = vunpack.c.h.b16 %v312
    %v1259 = vunpack.c.l.b16 %v313
    %v1260 = vunpack.c.h.b16 %v313
    %v1261 = vunpack.c.l.b16 %v314
    %v1262 = vunpack.c.l.b16 %v315
    %v1263 = vunpack.c.h.b16 %v315
    %v1264 = vunpack.c.l.b16 %v316
    %v1265 = vunpack.c.h.b16 %v316
    %v1266 = vunpack.c.l.b16 %v317
    %v1267 = vunpack.c.h.b16 %v317
    %v1268 = vunpack.c.l.b16 %v318
    %v1269 = vunpack.c.l.b16 %v319
    %v1270 = vunpack.c.h.b16 %v319
    %v1271 = vunpack.c.l.b16 %v320
    %v1272 = vunpack.c.h.b16 %v320
    %v1273 = vunpack.c.l.b16 %v321
    %v1274 = vunpack.c.h.b16 %v321
    %v1275 = vunpack.c.l.b16 %v322
    %v1276 = vunpack.c.l.b16 %v323
    %v1277 = vunpack.c.h.b16 %v323
    %v1278 = vunpack.c.l.b16 %v324
    %v1279 = vunpack.c.h.b16 %v324
    %v1280 = vunpack.c.l.b16 %v325
    %v1281 = vunpack.c.h.b16 %v325
    %v1282 = vunpack.c.l.b16 %v326
    %v1283 = vunpack.c.l.b16 %v327
    %v1284 = vunpack.c.h.b16 %v327
    %v1285 = vunpack.c.l.b16 %v328
    %v1286 = vunpack.c.h.b16 %v328
    %v1287 = vunpack.c.l.b16 %v329
    %v1288 = vunpack.c.h.b16 %v329
    %v1289 = vunpack.c.l.b16 %v330
    %v1290 = vunpack.c.l.b16 %v331
    %v1291 = vunpack.c.h.b16 %v331
    %v1292 = vunpack.c.l.b16 %v332
    %v1293 = vunpack.c.h.b16 %v332
    %v1294 = vunpack.c.l.b16 %v333
    %v1295 = vunpack.c.h.b16 %v333
    %v1296 = vunpack.c.l.b16 %v334
    %v1297 = vunpack.c.l.b16 %v335
    %v1298 = vunpack.c.h.b16 %v335
    %v1299 = vunpack.c.l.b16 %v336
    %v1300 = vunpack.c.h.b16 %v336
    %v1301 = vunpack.c.l.b16 %v337
    %v1302 = vunpack.c.h.b16 %v337
    %v1303 = vunpack.c.l.b16 %v338
    %v1304 = vunpack.c.l.b16 %v339
    %v1305 = vunpack.c.h.b16 %v339
    %v1306 = vunpack.c.l.b16 %v340
    %v1307 = vunpack.c.h.b16 %v340
    %v1308 = vunpack.c.l.b16 %v341
    %v1309 = vunpack.c.h.b16 %v341
    %v1310 = vunpack.c.l.b16 %v342
    %v1311 = vunpack.c.l.b16 %v343
    %v1312 = vunpack.c.h.b16 %v343
    %v1313 = vunpack.c.l.b16 %v344
    %v1314 = vunpack.c.h.b16 %v344
    %v1315 = vunpack.c.l.b16 %v345
    %v1316 = vunpack.c.h.b16 %v345
    %v1317 = vunpack.c.l.b16 %v346
    %v1318 = vunpack.c.l.b16 %v347
    %v1319 = vunpack.c.h.b16 %v347
    %v1320 = vunpack.c.l.b16 %v348
    %v1321 = vunpack.c.h.b16 %v348
    %v1322 = vunpack.c.l.b16 %v349
    %v1323 = vunpack.c.h.b16 %v349
    %v1324 = vunpack.c.l.b16 %v350
    %v1325 = vunpack.c.l.b16 %v351
    %v1326 = vunpack.c.h.b16 %v351
    %v1327 = vunpack.c.l.b16 %v352
    %v1328 = vunpack.c.h.b16 %v352
    %v1329 = vunpack.c.l.b16 %v353
    %v1330 = vunpack.c.h.b16 %v353
    %v1331 = vunpack.c.l.b16 %v354
    %v1332 = vunpack.c.l.b16 %v355
    %v1333 = vunpack.c.h.b16 %v355
    %v1334 = vunpack.c.l.b16 %v356
    %v1335 = vunpack.c.h.b16 %v356
    %v1336 = vunpack.c.l.b16 %v357
    %v1337 = vunpack.c.h.b16 %v357
    %v1338 = vunpack.c.l.b16 %v358
    %v1339 = vunpack.c.l.b16 %v359
    %v1340 = vunpack.c.h.b16 %v359
    %v1341 = vunpack.c.l.b16 %v360
    %v1342 = vunpack.c.h.b16 %v360
    %v1343 = vunpack.c.l.b16 %v361
    %v1344 = vunpack.c.h.b16 %v361
    %v1345 = vunpack.c.l.b16 %v362
    %v1346 = vunpack.c.l.b16 %v363
    %v1347 = vunpack.c.h.b16 %v363
    %v1348 = vunpack.c.l.b16 %v364
    %v1349 = vunpack.c.h.b16 %v364
    %v1350 = vunpack.c.l.b16 %v365
    %v1351 = vunpack.c.h.b16 %v365
    %v1352 = vunpack.c.l.b16 %v366
    %v1353 = vunpack.c.l.b16 %v367
    %v1354 = vunpack.c.h.b16 %v367
    %v1355 = vunpack.c.l.b16 %v368
    %v1356 = vunpack.c.h.b16 %v368
    %v1357 = vunpack.c.l.b16 %v369
    %v1358 = vunpack.c.h.b16 %v369
    %v1359 = vunpack.c.l.b16 %v370
    %v1360 = vunpack.c.l.b16 %v371
    %v1361 = vunpack.c.h.b16 %v371
    %v1362 = vunpack.c.l.b16 %v372
    %v1363 = vunpack.c.h.b16 %v372
    %v1364 = vunpack.c.l.b16 %v373
    %v1365 = vunpack.c.h.b16 %v373
    %v1366 = vunpack.c.l.b16 %v374
    %v1367 = vunpack.c.l.b16 %v375
    %v1368 = vunpack.c.h.b16 %v375
    %v1369 = vunpack.c.l.b16 %v376
    %v1370 = vunpack.c.h.b16 %v376
    %v1371 = vunpack.c.l.b16 %v377
    %v1372 = vunpack.c.h.b16 %v377
    %v1373 = vunpack.c.l.b16 %v378
    %v1374 = vunpack.c.l.b16 %v379
    %v1375 = vunpack.c.h.b16 %v379
    %v1376 = vunpack.c.l.b16 %v380
    %v1377 = vunpack.c.h.b16 %v380
    %v1378 = vunpack.c.l.b16 %v381
    %v1379 = vunpack.c.h.b16 %v381
    %v1380 = vunpack.c.l.b16 %v382
    %v1381 = vunpack.c.l.b16 %v383
    %v1382 = vunpack.c.h.b16 %v383
    %v1383 = vunpack.c.l.b16 %v384
    %v1384 = vunpack.c.h.b16 %v384
    %v1385 = vunpack.c.l.b16 %v385
    %v1386 = vunpack.c.h.b16 %v385
    %v1387 = vunpack.c.l.b16 %v386
    %v1388 = vunpack.c.l.b16 %v387
    %v1389 = vunpack.c.h.b16 %v387
    %v1390 = vunpack.c.l.b16 %v388
    %v1391 = vunpack.c.h.b16 %v388
    %v1392 = vunpack.c.l.b16 %v389
    %v1393 = vunpack.c.h.b16 %v389
    %v1394 = vunpack.c.l.b16 %v390
    %v1395 = vunpack.c.l.b16 %v391
    %v1396 = vunpack.c.h.b16 %v391
    %v1397 = vunpack.c.l.b16 %v392
    %v1398 = vunpack.c.h.b16 %v392
    %v1399 = vunpack.c.l.b16 %v393
    %v1400 = vunpack.c.h.b16 %v393
    %v1401 = vunpack.c.l.b16 %v394
    %v1402 = vunpack.c.l.b16 %v395
    %v1403 = vunpack.c.h.b16 %v395
    %v1404 = vunpack.c.l.b16 %v396
    %v1405 = vunpack.c.h.b16 %v396
    %v1406 = vunpack.c.l.b16 %v397
    %v1407 = vunpack.c.h.b16 %v397
    %v1408 = vunpack.c.l.b16 %v398
    %v1409 = vunpack.c.l.b16 %v399
    %v1410 = vunpack.c.h.b16 %v399
    %v1411 = vunpack.c.l.b16 %v400
    %v1412 = vunpack.c.h.b16 %v400
    %v1413 = vunpack.c.l.b16 %v401
    %v1414 = vunpack.c.h.b16 %v401
    %v1415 = vunpack.c.l.b16 %v402
    %v1416 = vunpack.c.l.b16 %v403
    %v1417 = vunpack.c.h.b16 %v403
    %v1418 = vunpack.c.l.b16 %v404
    %v1419 = vunpack.c.h.b16 %v404
    %v1420 = vunpack.c.l.b16 %v405
    %v1421 = vunpack.c.h.b16 %v405
    %v1422 = vunpack.c.l.b16 %v406
    %v1423 = vunpack.c.l.b16 %v407
    %v1424 = vunpack.c.h.b16 %v407
    %v1425 = vunpack.c.l.b16 %v408
    %v1426 = vunpack.c.h.b16 %v408
    %v1427 = vunpack.c.l.b16 %v409
    %v1428 = vunpack.c.h.b16 %v409
    %v1429 = vunpack.c.l.b16 %v410
    %v1430 = vunpack.c.l.b16 %v411
    %v1431 = vunpack.c.h.b16 %v411
    %v1432 = vunpack.c.l.b16 %v412
    %v1433 = vunpack.c.h.b16 %v412
    %v1434 = vunpack.c.l.b16 %v413
    %v1435 = vunpack.c.h.b16 %v413
    %v1436 = vunpack.c.l.b16 %v414
    %v1437 = vunpack.c.l.b16 %v415
    %v1438 = vunpack.c.h.b16 %v415
    %v1439 = vunpack.c.l.b16 %v416
    %v1440 = vunpack.c.h.b16 %v416
    %v1441 = vunpack.c.l.b16 %v417
    %v1442 = vunpack.c.h.b16 %v417
    %v1443 = vunpack.c.l.b16 %v418
    %v1444 = vunpack.c.l.b16 %v419
    %v1445 = vunpack.c.h.b16 %v419
    %v1446 = vunpack.c.l.b16 %v420
    %v1447 = vunpack.c.h.b16 %v420
    %v1448 = vunpack.c.l.b16 %v421
    %v1449 = vunpack.c.h.b16 %v421
    %v1450 = vunpack.c.l.b16 %v422
    %v1451 = vunpack.c.l.b16 %v423
    %v1452 = vunpack.c.h.b16 %v423
    %v1453 = vunpack.c.l.b16 %v424
    %v1454 = vunpack.c.h.b16 %v424
    %v1455 = vunpack.c.l.b16 %v425
    %v1456 = vunpack.c.h.b16 %v425
    %v1457 = vunpack.c.l.b16 %v426
    %v1458 = vunpack.c.l.b16 %v427
    %v1459 = vunpack.c.h.b16 %v427
    %v1460 = vunpack.c.l.b16 %v428
    %v1461 = vunpack.c.h.b16 %v428
    %v1462 = vunpack.c.l.b16 %v429
    %v1463 = vunpack.c.h.b16 %v429
    %v1464 = vunpack.c.l.b16 %v430
    %v1465 = vunpack.c.l.b16 %v431
    %v1466 = vunpack.c.h.b16 %v431
    %v1467 = vunpack.c.l.b16 %v432
    %v1468 = vunpack.c.h.b16 %v432
    %v1469 = vunpack.c.l.b16 %v433
    %v1470 = vunpack.c.h.b16 %v433
    %v1471 = vunpack.c.l.b16 %v434
    %v1472 = vunpack.c.l.b16 %v435
    %v1473 = vunpack.c.h.b16 %v435
    %v1474 = vunpack.c.l.b16 %v436
    %v1475 = vunpack.c.h.b16 %v436
    %v1476 = vunpack.c.l.b16 %v437
    %v1477 = vunpack.c.h.b16 %v437
    %v1478 = vunpack.c.l.b16 %v438
    %v1479 = vunpack.c.l.b16 %v439
    %v1480 = vunpack.c.h.b16 %v439
    %v1481 = vunpack.c.l.b16 %v440
    %v1482 = vunpack.c.h.b16 %v440
    %v1483 = vunpack.c.l.b16 %v441
    %v1484 = vunpack.c.h.b16 %v441
    %v1485 = vunpack.c.l.b16 %v442
    %v1486 = vunpack.c.l.b16 %v443
    %v1487 = vunpack.c.h.b16 %v443
    %v1488 = vunpack.c.l.b16 %v444
    %v1489 = vunpack.c.h.b16 %v444
    %v1490 = vunpack.c.l.b16 %v445
    %v1491 = vunpack.c.h.b16 %v445
    %v1492 = vunpack.c.l.b16 %v446
    %v1493 = vunpack.c.l.b16 %v447
    %v1494 = vunpack.c.h.b16 %v447
    %v1495 = vunpack.c.l.b16 %v448
    %v1496 = vunpack.c.h.b16 %v448
    %v1497 = vunpack.c.l.b16 %v449
    %v1498 = vunpack.c.h.b16 %v449
    %v1499 = vunpack.c.l.b16 %v450
    %v1500 = vunpack.c.l.b16 %v451
    %v1501 = vunpack.c.h.b16 %v451
    %v1502 = vunpack.c.l.b16 %v452
    %v1503 = vunpack.c.h.b16 %v452
    %v1504 = vunpack.c.l.b16 %v453
    %v1505 = vunpack.c.h.b16 %v453
    %v1506 = vunpack.c.l.b16 %v454
    %v1507 = vunpack.c.l.b16 %v455
    %v1508 = vunpack.c.h.b16 %v455
    %v1509 = vunpack.c.l.b16 %v456
    %v1510 = vunpack.c.h.b16 %v456
    %v1511 = vunpack.c.l.b16 %v457
    %v1512 = vunpack.c.h.b16 %v457
    %v1513 = vunpack.c.l.b16 %v458
    %v1514 = vunpack.c.l.b16 %v459
    %v1515 = vunpack.c.h.b16 %v459
    %v1516 = vunpack.c.l.b16 %v460
    %v1517 = vunpack.c.h.b16 %v460
    %v1518 = vunpack.c.l.b16 %v461
    %v1519 = vunpack.c.h.b16 %v461
    %v1520 = vunpack.c.l.b16 %v462
    %v1521 = vunpack.c.l.b16 %v463
    %v1522 = vunpack.c.h.b16 %v463
    %v1523 = vunpack.c.l.b16 %v464
    %v1524 = vunpack.c.h.b16 %v464
    %v1525 = vunpack.c.l.b16 %v465
    %v1526 = vunpack.c.h.b16 %v465
    %v1527 = vunpack.c.l.b16 %v466
    %v1528 = vunpack.c.l.b16 %v467
    %v1529 = vunpack.c.h.b16 %v467
    %v1530 = vunpack.c.l.b16 %v468
    %v1531 = vunpack.c.h.b16 %v468
    %v1532 = vunpack.c.l.b16 %v469
    %v1533 = vunpack.c.h.b16 %v469
    %v1534 = vunpack.c.l.b16 %v470
    %v1535 = vunpack.c.l.b16 %v471
    %v1536 = vunpack.c.h.b16 %v471
    %v1537 = vunpack.c.l.b16 %v472
    %v1538 = vunpack.c.h.b16 %v472
    %v1539 = vunpack.c.l.b16 %v473
    %v1540 = vunpack.c.h.b16 %v473
    %v1541 = vunpack.c.l.b16 %v474
    %v1542 = vunpack.c.l.b16 %v475
    %v1543 = vunpack.c.h.b16 %v475
    %v1544 = vunpack.c.l.b16 %v476
    %v1545 = vunpack.c.h.b16 %v476
    %v1546 = vunpack.c.l.b16 %v477
    %v1547 = vunpack.c.h.b16 %v477
    %v1548 = vunpack.c.l.b16 %v478
    %v1549 = vunpack.c.l.b16 %v479
    %v1550 = vunpack.c.h.b16 %v479
    %v1551 = vunpack.c.l.b16 %v480
    %v1552 = vunpack.c.h.b16 %v480
    %v1553 = vunpack.c.l.b16 %v481
    %v1554 = vunpack.c.h.b16 %v481
    %v1555 = vunpack.c.l.b16 %v482
    %v1556 = vunpack.c.l.b16 %v483
    %v1557 = vunpack.c.h.b16 %v483
    %v1558 = vunpack.c.l.b16 %v484
    %v1559 = vunpack.c.h.b16 %v484
    %v1560 = vunpack.c.l.b16 %v485
    %v1561 = vunpack.c.h.b16 %v485
    %v1562 = vunpack.c.l.b16 %v486
    %v1563 = vunpack.c.l.b16 %v487
    %v1564 = vunpack.c.h.b16 %v487
    %v1565 = vunpack.c.l.b16 %v488
    %v1566 = vunpack.c.h.b16 %v488
    %v1567 = vunpack.c.l.b16 %v489
    %v1568 = vunpack.c.h.b16 %v489
    %v1569 = vunpack.c.l.b16 %v490
    %v1570 = vunpack.c.l.b16 %v491
    %v1571 = vunpack.c.h.b16 %v491
    %v1572 = vunpack.c.l.b16 %v492
    %v1573 = vunpack.c.h.b16 %v492
    %v1574 = vunpack.c.l.b16 %v493
    %v1575 = vunpack.c.h.b16 %v493
    %v1576 = vunpack.c.l.b16 %v494
    %v1577 = vunpack.c.l.b16 %v495
    %v1578 = vunpack.c.h.b16 %v495
    %v1579 = vunpack.c.l.b16 %v496
    %v1580 = vunpack.c.h.b16 %v496
    %v1581 = vunpack.c.l.b16 %v497
    %v1582 = vunpack.c.h.b16 %v497
    %v1583 = vunpack.c.l.b16 %v498
    %v1584 = vunpack.c.l.b16 %v499
    %v1585 = vunpack.c.h.b16 %v499
    %v1586 = vunpack.c.l.b16 %v500
    %v1587 = vunpack.c.h.b16 %v500
    %v1588 = vunpack.c.l.b16 %v501
    %v1589 = vunpack.c.h.b16 %v501
    %v1590 = vunpack.c.l.b16 %v502
    %v1591 = vunpack.c.l.b16 %v503
    %v1592 = vunpack.c.h.b16 %v503
    %v1593 = vunpack.c.l.b16 %v504
    %v1594 = vunpack.c.h.b16 %v504
    %v1595 = vunpack.c.l.b16 %v505
    %v1596 = vunpack.c.h.b16 %v505
    %v1597 = vunpack.c.l.b16 %v506
    %v1598 = vunpack.c.l.b16 %v507
    %v1599 = vunpack.c.h.b16 %v507
    %v1600 = vunpack.c.l.b16 %v508
    %v1601 = vunpack.c.h.b16 %v508
    %v1602 = vunpack.c.l.b16 %v509
    %v1603 = vunpack.c.h.b16 %v509
    %v1604 = vunpack.c.l.b16 %v510
    %v1605 = vunpack.c.l.b16 %v511
    %v1606 = vunpack.c.h.b16 %v511
    %v1607 = vunpack.c.l.b16 %v512
    %v1608 = vunpack.c.h.b16 %v512
    %v1609 = vunpack.c.l.b16 %v513
    %v1610 = vunpack.c.h.b16 %v513
    %v1611 = vunpack.c.l.b16 %v514
    %v1612 = vunpack.c.l.b16 %v515
    %v1613 = vunpack.c.h.b16 %v515
    %v1614 = vunpack.c.l.b16 %v516
    %v1615 = vunpack.c.h.b16 %v516
    %v1616 = vunpack.c.l.b16 %v517
    %v1617 = vunpack.c.h.b16 %v517
    %v1618 = vunpack.c.l.b16 %v518
    %v1619 = vunpack.c.l.b16 %v519
    %v1620 = vunpack.c.h.b16 %v519
    %v1621 = vunpack.c.l.b16 %v520
    %v1622 = vunpack.c.h.b16 %v520
    %v1623 = vunpack.c.l.b16 %v521
    %v1624 = vunpack.c.h.b16 %v521
    %v1625 = vunpack.c.l.b16 %v522
    %v1626 = vunpack.c.l.b16 %v523
    %v1627 = vunpack.c.h.b16 %v523
    %v1628 = vunpack.c.l.b16 %v524
    %v1629 = vunpack.c.h.b16 %v524
    %v1630 = vunpack.c.l.b16 %v525
    %v1631 = vunpack.c.h.b16 %v525
    %v1632 = vunpack.c.l.b16 %v526
    %v1633 = vunpack.c.l.b16 %v527
    %v1634 = vunpack.c.h.b16 %v527
    %v1635 = vunpack.c.l.b16 %v528
    %v1636 = vunpack.c.h.b16 %v528
    %v1637 = vunpack.c.l.b16 %v529
    %v1638 = vunpack.c.h.b16 %v529
    %v1639 = vunpack.c.l.b16 %v530
    %v1640 = vunpack.c.l.b16 %v531
    %v1641 = vunpack.c.h.b16 %v531
    %v1642 = vunpack.c.l.b16 %v532
    %v1643 = vunpack.c.h.b16 %v532
    %v1644 = vunpack.c.l.b16 %v533
    %v1645 = vunpack.c.h.b16 %v533
    %v1646 = vunpack.c.l.b16 %v534
    %v1647 = vunpack.c.l.b16 %v535
    %v1648 = vunpack.c.h.b16 %v535
    %v1649 = vunpack.c.l.b16 %v536
    %v1650 = vunpack.c.h.b16 %v536
    %v1651 = vunpack.c.l.b16 %v537
    %v1652 = vunpack.c.h.b16 %v537
    %v1653 = vunpack.c.l.b16 %v538
    %v1654 = vpack.c.b16 %v975, %v968
    %v1655 = vpack.c.b16 %v976, %v969
    %v1656 = vpack.c.b16 %v977, %v970
    %v1657 = vpack.c.b16 %v978, %v971
    %v1658 = vpack.c.b16 %v979, %v972
    %v1659 = vpack.c.b16 %v980, %v973
    %v1660 = vpack.c.b16 %v981, %v974
    %v1661 = vpack.c.b16 %v989, %v982
    %v1662 = vpack.c.b16 %v990, %v983
    %v1663 = vpack.c.b16 %v991, %v984
    %v1664 = vpack.c.b16 %v992, %v985
    %v1665 = vpack.c.b16 %v993, %v986
    %v1666 = vpack.c.b16 %v994, %v987
    %v1667 = vpack.c.b16 %v995, %v988
    %v1668 = vpack.c.b16 %v1003, %v996
    %v1669 = vpack.c.b16 %v1004, %v997
    %v1670 = vpack.c.b16 %v1005, %v998
    %v1671 = vpack.c.b16 %v1006, %v999
    %v1672 = vpack.c.b16 %v1007, %v1000
    %v1673 = vpack.c.b16 %v1008, %v1001
    %v1674 = vpack.c.b16 %v1009, %v1002
    %v1675 = vpack.c.b16 %v1017, %v1010
    %v1676 = vpack.c.b16 %v1018, %v1011
    %v1677 = vpack.c.b16 %v1019, %v1012
    %v1678 = vpack.c.b16 %v1020, %v1013
    %v1679 = vpack.c.b16 %v1021, %v1014
    %v1680 = vpack.c.b16 %v1022, %v1015
    %v1681 = vpack.c.b16 %v1023, %v1016
    %v1682 = vpack.c.b16 %v1031, %v1024
    %v1683 = vpack.c.b16 %v1032, %v1025
    %v1684 = vpack.c.b16 %v1033, %v1026
    %v1685 = vpack.c.b16 %v1034, %v1027
    %v1686 = vpack.c.b16 %v1035, %v1028
    %v1687 = vpack.c.b16 %v1036, %v1029
    %v1688 = vpack.c.b16 %v1037, %v1030
    %v1689 = vpack.c.b16 %v1045, %v1038
    %v1690 = vpack.c.b16 %v1046, %v1039
    %v1691 = vpack.c.b16 %v1047, %v1040
    %v1692 = vpack.c.b16 %v1048, %v1041
    %v1693 = vpack.c.b16 %v1049, %v1042
    %v1694 = vpack.c.b16 %v1050, %v1043
    %v1695 = vpack.c.b16 %v1051, %v1044
    %v1696 = vpack.c.b16 %v1059, %v1052
    %v1697 = vpack.c.b16 %v1060, %v1053
    %v1698 = vpack.c.b16 %v1061, %v1054
    %v1699 = vpack.c.b16 %v1062, %v1055
    %v1700 = vpack.c.b16 %v1063, %v1056
    %v1701 = vpack.c.b16 %v1064, %v1057
    %v1702 = vpack.c.b16 %v1065, %v1058
    %v1703 = vpack.c.b16 %v1073, %v1066
    %v1704 = vpack.c.b16 %v1074, %v1067
    %v1705 = vpack.c.b16 %v1075, %v1068
    %v1706 = vpack.c.b16 %v1076, %v1069
    %v1707 = vpack.c.b16 %v1077, %v1070
    %v1708 = vpack.c.b16 %v1078, %v1071
    %v1709 = vpack.c.b16 %v1079, %v1072
    %v1710 = vpack.c.b16 %v1087, %v1080
    %v1711 = vpack.c.b16 %v1088, %v1081
    %v1712 = vpack.c.b16 %v1089, %v1082
    %v1713 = vpack.c.b16 %v1090, %v1083
    %v1714 = vpack.c.b16 %v1091, %v1084
    %v1715 = vpack.c.b16 %v1092, %v1085
    %v1716 = vpack.c.b16 %v1093, %v1086
    %v1717 = vpack.c.b16 %v1101, %v1094
    %v1718 = vpack.c.b16 %v1102, %v1095
    %v1719 = vpack.c.b16 %v1103, %v1096
    %v1720 = vpack.c.b16 %v1104, %v1097
    %v1721 = vpack.c.b16 %v1105, %v1098
    %v1722 = vpack.c.b16 %v1106, %v1099
    %v1723 = vpack.c.b16 %v1107, %v1100
    %v1724 = vpack.c.b16 %v1115, %v1108
    %v1725 = vpack.c.b16 %v1116, %v1109
    %v1726 = vpack.c.b16 %v1117, %v1110
    %v1727 = vpack.c.b16 %v1118, %v1111
    %v1728 = vpack.c.b16 %v1119, %v1112
    %v1729 = vpack.c.b16 %v1120, %v1113
    %v1730 = vpack.c.b16 %v1121, %v1114
    %v1731 = vpack.c.b16 %v1129, %v1122
    %v1732 = vpack.c.b16 %v1130, %v1123
    %v1733 = vpack.c.b16 %v1131, %v1124
    %v1734 = vpack.c.b16 %v1132, %v1125
    %v1735 = vpack.c.b16 %v1133, %v1126
    %v1736 = vpack.c.b16 %v1134, %v1127
    %v1737 = vpack.c.b16 %v1135, %v1128
    %v1738 = vpack.c.b16 %v1143, %v1136
    %v1739 = vpack.c.b16 %v1144, %v1137
    %v1740 = vpack.c.b16 %v1145, %v1138
    %v1741 = vpack.c.b16 %v1146, %v1139
    %v1742 = vpack.c.b16 %v1147, %v1140
    %v1743 = vpack.c.b16 %v1148, %v1141
    %v1744 = vpack.c.b16 %v1149, %v1142
    %v1745 = vpack.c.b16 %v1157, %v1150
    %v1746 = vpack.c.b16 %v1158, %v1151
    %v1747 = vpack.c.b16 %v1159, %v1152
    %v1748 = vpack.c.b16 %v1160, %v1153
    %v1749 = vpack.c.b16 %v1161, %v1154
    %v1750 = vpack.c.b16 %v1162, %v1155
    %v1751 = vpack.c.b16 %v1163, %v1156
    %v1752 = vpack.c.b16 %v1171, %v1164
    %v1753 = vpack.c.b16 %v1172, %v1165
    %v1754 = vpack.c.b16 %v1173, %v1166
    %v1755 = vpack.c.b16 %v1174, %v1167
    %v1756 = vpack.c.b16 %v1175, %v1168
    %v1757 = vpack.c.b16 %v1176, %v1169
    %v1758 = vpack.c.b16 %v1177, %v1170
    %v1759 = vpack.c.b16 %v1185, %v1178
    %v1760 = vpack.c.b16 %v1186, %v1179
    %v1761 = vpack.c.b16 %v1187, %v1180
    %v1762 = vpack.c.b16 %v1188, %v1181
    %v1763 = vpack.c.b16 %v1189, %v1182
    %v1764 = vpack.c.b16 %v1190, %v1183
    %v1765 = vpack.c.b16 %v1191, %v1184
    %v1766 = vpack.c.b16 %v1199, %v1192
    %v1767 = vpack.c.b16 %v1200, %v1193
    %v1768 = vpack.c.b16 %v1201, %v1194
    %v1769 = vpack.c.b16 %v1202, %v1195
    %v1770 = vpack.c.b16 %v1203, %v1196
    %v1771 = vpack.c.b16 %v1204, %v1197
    %v1772 = vpack.c.b16 %v1205, %v1198
    %v1773 = vpack.c.b16 %v1213, %v1206
    %v1774 = vpack.c.b16 %v1214, %v1207
    %v1775 = vpack.c.b16 %v1215, %v1208
    %v1776 = vpack.c.b16 %v1216, %v1209
    %v1777 = vpack.c.b16 %v1217, %v1210
    %v1778 = vpack.c.b16 %v1218, %v1211
    %v1779 = vpack.c.b16 %v1219, %v1212
    %v1780 = vpack.c.b16 %v1227, %v1220
    %v1781 = vpack.c.b16 %v1228, %v1221
    %v1782 = vpack.c.b16 %v1229, %v1222
    %v1783 = vpack.c.b16 %v1230, %v1223
    %v1784 = vpack.c.b16 %v1231, %v1224
    %v1785 = vpack.c.b16 %v1232, %v1225
    %v1786 = vpack.c.b16 %v1233, %v1226
    %v1787 = vpack.c.b16 %v1241, %v1234
    %v1788 = vpack.c.b16 %v1242, %v1235
    %v1789 = vpack.c.b16 %v1243, %v1236
    %v1790 = vpack.c.b16 %v1244, %v1237
    %v1791 = vpack.c.b16 %v1245, %v1238
    %v1792 = vpack.c.b16 %v1246, %v1239
    %v1793 = vpack.c.b16 %v1247, %v1240
    %v1794 = vpack.c.b16 %v1255, %v1248
    %v1795 = vpack.c.b16 %v1256, %v1249
    %v1796 = vpack.c.b16 %v1257, %v1250
    %v1797 = vpack.c.b16 %v1258, %v1251
    %v1798 = vpack.c.b16 %v1259, %v1252
    %v1799 = vpack.c.b16 %v1260, %v1253
    %v1800 = vpack.c.b16 %v1261, %v1254
    %v1801 = vpack.c.b16 %v1269, %v1262
    %v1802 = vpack.c.b16 %v1270, %v1263
    %v1803 = vpack.c.b16 %v1271, %v1264
    %v1804 = vpack.c.b16 %v1272, %v1265
    %v1805 = vpack.c.b16 %v1273, %v1266
    %v1806 = vpack.c.b16 %v1274, %v1267
    %v1807 = vpack.c.b16 %v1275, %v1268
    %v1808 = vpack.c.b16 %v1283, %v1276
    %v1809 = vpack.c.b16 %v1284, %v1277
    %v1810 = vpack.c.b16 %v1285, %v1278
    %v1811 = vpack.c.b16 %v1286, %v1279
    %v1812 = vpack.c.b16 %v1287, %v1280
    %v1813 = vpack.c.b16 %v1288, %v1281
    %v1814 = vpack.c.b16 %v1289, %v1282
    %v1815 = vpack.c.b16 %v1297, %v1290
    %v1816 = vpack.c.b16 %v1298, %v1291
    %v1817 = vpack.c.b16 %v1299, %v1292
    %v1818 = vpack.c.b16 %v1300, %v1293
    %v1819 = vpack.c.b16 %v1301, %v1294
    %v1820 = vpack.c.b16 %v1302, %v1295
    %v1821 = vpack.c.b16 %v1303, %v1296
    %v1822 = vpack.c.b16 %v1311, %v1304
    %v1823 = vpack.c.b16 %v1312, %v1305
    %v1824 = vpack.c.b16 %v1313, %v1306
    %v1825 = vpack.c.b16 %v1314, %v1307
    %v1826 = vpack.c.b16 %v1315, %v1308
    %v1827 = vpack.c.b16 %v1316, %v1309
    %v1828 = vpack.c.b16 %v1317, %v1310
    %v1829 = vpack.c.b16 %v1325, %v1318
    %v1830 = vpack.c.b16 %v1326, %v1319
    %v1831 = vpack.c.b16 %v1327, %v1320
    %v1832 = vpack.c.b16 %v1328, %v1321
    %v1833 = vpack.c.b16 %v1329, %v1322
    %v1834 = vpack.c.b16 %v1330, %v1323
    %v1835 = vpack.c.b16 %v1331, %v1324
    %v1836 = vpack.c.b16 %v1339, %v1332
    %v1837 = vpack.c.b16 %v1340, %v1333
    %v1838 = vpack.c.b16 %v1341, %v1334
    %v1839 = vpack.c.b16 %v1342, %v1335
    %v1840 = vpack.c.b16 %v1343, %v1336
    %v1841 = vpack.c.b16 %v1344, %v1337
    %v1842 = vpack.c.b16 %v1345, %v1338
    %v1843 = vpack.c.b16 %v1353, %v1346
    %v1844 = vpack.c.b16 %v1354, %v1347
    %v1845 = vpack.c.b16 %v1355, %v1348
    %v1846 = vpack.c.b16 %v1356, %v1349
    %v1847 = vpack.c.b16 %v1357, %v1350
    %v1848 = vpack.c.b16 %v1358, %v1351
    %v1849 = vpack.c.b16 %v1359, %v1352
    %v1850 = vpack.c.b16 %v1367, %v1360
    %v1851 = vpack.c.b16 %v1368, %v1361
    %v1852 = vpack.c.b16 %v1369, %v1362
    %v1853 = vpack.c.b16 %v1370, %v1363
    %v1854 = vpack.c.b16 %v1371, %v1364
    %v1855 = vpack.c.b16 %v1372, %v1365
    %v1856 = vpack.c.b16 %v1373, %v1366
    %v1857 = vpack.c.b16 %v1381, %v1374
    %v1858 = vpack.c.b16 %v1382, %v1375
    %v1859 = vpack.c.b16 %v1383, %v1376
    %v1860 = vpack.c.b16 %v1384, %v1377
    %v1861 = vpack.c.b16 %v1385, %v1378
    %v1862 = vpack.c.b16 %v1386, %v1379
    %v1863 = vpack.c.b16 %v1387, %v1380
    %v1864 = vpack.c.b16 %v1395, %v1388
    %v1865 = vpack.c.b16 %v1396, %v1389
    %v1866 = vpack.c.b16 %v1397, %v1390
    %v1867 = vpack.c.b16 %v1398, %v1391
    %v1868 = vpack.c.b16 %v1399, %v1392
    %v1869 = vpack.c.b16 %v1400, %v1393
    %v1870 = vpack.c.b16 %v1401, %v1394
    %v1871 = vpack.c.b16 %v1409, %v1402
    %v1872 = vpack.c.b16 %v1410, %v1403
    %v1873 = vpack.c.b16 %v1411, %v1404
    %v1874 = vpack.c.b16 %v1412, %v1405
    %v1875 = vpack.c.b16 %v1413, %v1406
    %v1876 = vpack.c.b16 %v1414, %v1407
    %v1877 = vpack.c.b16 %v1415, %v1408
    %v1878 = vpack.c.b16 %v1423, %v1416
    %v1879 = vpack.c.b16 %v1424, %v1417
    %v1880 = vpack.c.b16 %v1425, %v1418
    %v1881 = vpack.c.b16 %v1426, %v1419
    %v1882 = vpack.c.b16 %v1427, %v1420
    %v1883 = vpack.c.b16 %v1428, %v1421
    %v1884 = vpack.c.b16 %v1429, %v1422
    %v1885 = vpack.c.b16 %v1437, %v1430
    %v1886 = vpack.c.b16 %v1438, %v1431
    %v1887 = vpack.c.b16 %v1439, %v1432
    %v1888 = vpack.c.b16 %v1440, %v1433
    %v1889 = vpack.c.b16 %v1441, %v1434
    %v1890 = vpack.c.b16 %v1442, %v1435
    %v1891 = vpack.c.b16 %v1443, %v1436
    %v1892 = vpack.c.b16 %v1451, %v1444
    %v1893 = vpack.c.b16 %v1452, %v1445
    %v1894 = vpack.c.b16 %v1453, %v1446
    %v1895 = vpack.c.b16 %v1454, %v1447
    %v1896 = vpack.c.b16 %v1455, %v1448
    %v1897 = vpack.c.b16 %v1456, %v1449
    %v1898 = vpack.c.b16 %v1457, %v1450
    %v1899 = vpack.c.b16 %v1465, %v1458
    %v1900 = vpack.c.b16 %v1466, %v1459
    %v1901 = vpack.c.b16 %v1467, %v1460
    %v1902 = vpack.c.b16 %v1468, %v1461
    %v1903 = vpack.c.b16 %v1469, %v1462
    %v1904 = vpack.c.b16 %v1470, %v1463
    %v1905 = vpack.c.b16 %v1471, %v1464
    %v1906 = vpack.c.b16 %v1479, %v1472
    %v1907 = vpack.c.b16 %v1480, %v1473
    %v1908 = vpack.c.b16 %v1481, %v1474
    %v1909 = vpack.c.b16 %v1482, %v1475
    %v1910 = vpack.c.b16 %v1483, %v1476
    %v1911 = vpack.c.b16 %v1484, %v1477
    %v1912 = vpack.c.b16 %v1485, %v1478
    %v1913 = vpack.c.b16 %v1493, %v1486
    %v1914 = vpack.c.b16 %v1494, %v1487
    %v1915 = vpack.c.b16 %v1495, %v1488
    %v1916 = vpack.c.b16 %v1496, %v1489
    %v1917 = vpack.c.b16 %v1497, %v1490
    %v1918 = vpack.c.b16 %v1498, %v1491
    %v1919 = vpack.c.b16 %v1499, %v1492
    %v1920 = vpack.c.b16 %v1507, %v1500
    %v1921 = vpack.c.b16 %v1508, %v1501
    %v1922 = vpack.c.b16 %v1509, %v1502
    %v1923 = vpack.c.b16 %v1510, %v1503
    %v1924 = vpack.c.b16 %v1511, %v1504
    %v1925 = vpack.c.b16 %v1512, %v1505
    %v1926 = vpack.c.b16 %v1513, %v1506
    %v1927 = vpack.c.b16 %v1521, %v1514
    %v1928 = vpack.c.b16 %v1522, %v1515
    %v1929 = vpack.c.b16 %v1523, %v1516
    %v1930 = vpack.c.b16 %v1524, %v1517
    %v1931 = vpack.c.b16 %v1525, %v1518
    %v1932 = vpack.c.b16 %v1526, %v1519
    %v1933 = vpack.c.b16 %v1527, %v1520
    %v1934 = vpack.c.b16 %v1535, %v1528
    %v1935 = vpack.c.b16 %v1536, %v1529
    %v1936 = vpack.c.b16 %v1537, %v1530
    %v1937 = vpack.c.b16 %v1538, %v1531
    %v1938 = vpack.c.b16 %v1539, %v1532
    %v1939 = vpack.c.b16 %v1540, %v1533
    %v1940 = vpack.c.b16 %v1541, %v1534
    %v1941 = vpack.c.b16 %v1549, %v1542
    %v1942 = vpack.c.b16 %v1550, %v1543
    %v1943 = vpack.c.b16 %v1551, %v1544
    %v1944 = vpack.c.b16 %v1552, %v1545
    %v1945 = vpack.c.b16 %v1553, %v1546
    %v1946 = vpack.c.b16 %v1554, %v1547
    %v1947 = vpack.c.b16 %v1555, %v1548
    %v1948 = vpack.c.b16 %v1563, %v1556
    %v1949 = vpack.c.b16 %v1564, %v1557
    %v1950 = vpack.c.b16 %v1565, %v1558
    %v1951 = vpack.c.b16 %v1566, %v1559
    %v1952 = vpack.c.b16 %v1567, %v1560
    %v1953 = vpack.c.b16 %v1568, %v1561
    %v1954 = vpack.c.b16 %v1569, %v1562
    %v1955 = vpack.c.b16 %v1577, %v1570
    %v1956 = vpack.c.b16 %v1578, %v1571
    %v1957 = vpack.c.b16 %v1579, %v1572
    %v1958 = vpack.c.b16 %v1580, %v1573
    %v1959 = vpack.c.b16 %v1581, %v1574
    %v1960 = vpack.c.b16 %v1582, %v1575
    %v1961 = vpack.c.b16 %v1583, %v1576
    %v1962 = vpack.c.b16 %v1591, %v1584
    %v1963 = vpack.c.b16 %v1592, %v1585
    %v1964 = vpack.c.b16 %v1593, %v1586
    %v1965 = vpack.c.b16 %v1594, %v1587
    %v1966 = vpack.c.b16 %v1595, %v1588
    %v1967 = vpack.c.b16 %v1596, %v1589
    %v1968 = vpack.c.b16 %v1597, %v1590
    %v1969 = vpack.c.b16 %v1605, %v1598
    %v1970 = vpack.c.b16 %v1606, %v1599
    %v1971 = vpack.c.b16 %v1607, %v1600
    %v1972 = vpack.c.b16 %v1608, %v1601
    %v1973 = vpack.c.b16 %v1609, %v1602
    %v1974 = vpack.c.b16 %v1610, %v1603
    %v1975 = vpack.c.b16 %v1611, %v1604
    %v1976 = vpack.c.b16 %v1619, %v1612
    %v1977 = vpack.c.b16 %v1620, %v1613
    %v1978 = vpack.c.b16 %v1621, %v1614
    %v1979 = vpack.c.b16 %v1622, %v1615
    %v1980 = vpack.c.b16 %v1623, %v1616
    %v1981 = vpack.c.b16 %v1624, %v1617
    %v1982 = vpack.c.b16 %v1625, %v1618
    %v1983 = vpack.c.b16 %v1633, %v1626
    %v1984 = vpack.c.b16 %v1634, %v1627
    %v1985 = vpack.c.b16 %v1635, %v1628
    %v1986 = vpack.c.b16 %v1636, %v1629
    %v1987 = vpack.c.b16 %v1637, %v1630
    %v1988 = vpack.c.b16 %v1638, %v1631
    %v1989 = vpack.c.b16 %v1639, %v1632
    %v1990 = vpack.c.b16 %v1647, %v1640
    %v1991 = vpack.c.b16 %v1648, %v1641
    %v1992 = vpack.c.b16 %v1649, %v1642
    %v1993 = vpack.c.b16 %v1650, %v1643
    %v1994 = vpack.c.b16 %v1651, %v1644
    %v1995 = vpack.c.b16 %v1652, %v1645
    %v1996 = vpack.c.b16 %v1653, %v1646
    %vm2340 = vcmask 130048
    %v2342 = vsel %vm2340, %v146, 0
    %2344 = vmatprep.subr.bf16.mxu0 %v1704
    %2345 = vmatpush1.bf16.msra.mxu0 %v1703
    %2346 = vmatprep.subr.bf16.mxu0 %v1697
    %2347 = vmatpush1.bf16.msra.mxu0 %v1696
    %2348 = vmatprep.subr.bf16.mxu0 %v1690
    %2349 = vmatpush1.bf16.msra.mxu0 %v1689
    %2350 = vmatprep.subr.bf16.mxu0 %v1683
    %2351 = vmatpush1.bf16.msra.mxu0 %v1682
    %2352 = vmatprep.subr.bf16.mxu0 %v1676
    %2353 = vmatpush1.bf16.msra.mxu0 %v1675
    %2354 = vmatprep.subr.bf16.mxu0 %v1669
    %2355 = vmatpush1.bf16.msra.mxu0 %v1668
    %2356 = vmatprep.subr.bf16.mxu0 %v1662
    %2357 = vmatpush1.bf16.msra.mxu0 %v1661
    %2358 = vmatprep.subr.bf16.mxu0 %v1655
    %2359 = vmatpush1.bf16.msra.mxu0 %v1654
    %2360 = vmatprep.subr.bf16.mxu0 %v1760
    %2361 = vmatpush2.bf16.msra.mxu0 %v1759
    %2362 = vmatprep.subr.bf16.mxu0 %v1753
    %2363 = vmatpush2.bf16.msra.mxu0 %v1752
    %2364 = vmatprep.subr.bf16.mxu0 %v1746
    %2365 = vmatpush2.bf16.msra.mxu0 %v1745
    %2366 = vmatprep.subr.bf16.mxu0 %v1739
    %2367 = vmatpush2.bf16.msra.mxu0 %v1738
    %2368 = vmatprep.subr.bf16.mxu0 %v1732
    %2369 = vmatpush2.bf16.msra.mxu0 %v1731
    %2370 = vmatprep.subr.bf16.mxu0 %v1725
    %2371 = vmatpush2.bf16.msra.mxu0 %v1724
    %2372 = vmatprep.subr.bf16.mxu0 %v1718
    %2373 = vmatpush2.bf16.msra.mxu0 %v1717
    %2374 = vmatprep.subr.bf16.mxu0 %v1711
    %2375 = vmatpush2.bf16.msra.mxu0 %v1710
    %2376 = vmatprep.mubr.bf16.mxu0 %v141
    %2377 = vmatmul.mubr.bf16.gmra.mxu0 %v140
    %v2378 = vpop.f32.mrf.mxu0
    %v2379 = vadd.f32 %v544, %v2378
    %v2380 = vpop.f32.mrf.mxu0
    %v2381 = vadd.f32 %v548, %v2380
    %v2382 = vpop.f32.mrf.mxu0
    %v2383 = vpop.f32.mrf.mxu0
    %2384 = vdwg.mxu0
    %2385 = vmatprep.subr.bf16.mxu0 %v1816
    %2386 = vmatpush1.bf16.msra.mxu0 %v1815
    %2387 = vmatprep.subr.bf16.mxu0 %v1809
    %2388 = vmatpush1.bf16.msra.mxu0 %v1808
    %2389 = vmatprep.subr.bf16.mxu0 %v1802
    %2390 = vmatpush1.bf16.msra.mxu0 %v1801
    %2391 = vmatprep.subr.bf16.mxu0 %v1795
    %2392 = vmatpush1.bf16.msra.mxu0 %v1794
    %2393 = vmatprep.subr.bf16.mxu0 %v1788
    %2394 = vmatpush1.bf16.msra.mxu0 %v1787
    %2395 = vmatprep.subr.bf16.mxu0 %v1781
    %2396 = vmatpush1.bf16.msra.mxu0 %v1780
    %2397 = vmatprep.subr.bf16.mxu0 %v1774
    %2398 = vmatpush1.bf16.msra.mxu0 %v1773
    %2399 = vmatprep.subr.bf16.mxu0 %v1767
    %2400 = vmatpush1.bf16.msra.mxu0 %v1766
    %2401 = vmatprep.subr.bf16.mxu0 %v1872
    %2402 = vmatpush2.bf16.msra.mxu0 %v1871
    %2403 = vmatprep.subr.bf16.mxu0 %v1865
    %2404 = vmatpush2.bf16.msra.mxu0 %v1864
    %2405 = vmatprep.subr.bf16.mxu0 %v1858
    %2406 = vmatpush2.bf16.msra.mxu0 %v1857
    %2407 = vmatprep.subr.bf16.mxu0 %v1851
    %2408 = vmatpush2.bf16.msra.mxu0 %v1850
    %2409 = vmatprep.subr.bf16.mxu0 %v1844
    %2410 = vmatpush2.bf16.msra.mxu0 %v1843
    %2411 = vmatprep.subr.bf16.mxu0 %v1837
    %2412 = vmatpush2.bf16.msra.mxu0 %v1836
    %2413 = vmatprep.subr.bf16.mxu0 %v1830
    %2414 = vmatpush2.bf16.msra.mxu0 %v1829
    %2415 = vmatprep.subr.bf16.mxu0 %v1823
    %2416 = vmatpush2.bf16.msra.mxu0 %v1822
    %2417 = vmatprep.mubr.bf16.mxu0 %v143
    %2418 = vmatmul.mubr.bf16.gmra.mxu0 %v142
    %v2419 = vpop.f32.mrf.mxu0
    %v2420 = vadd.f32 %v2379, %v2419
    %v2421 = vpop.f32.mrf.mxu0
    %v2422 = vadd.f32 %v2381, %v2421
    %v2423 = vpop.f32.mrf.mxu0
    %v2424 = vpop.f32.mrf.mxu0
    %2425 = vdwg.mxu0
    %2426 = vmatprep.subr.bf16.mxu0 %v1928
    %2427 = vmatpush1.bf16.msra.mxu0 %v1927
    %2428 = vmatprep.subr.bf16.mxu0 %v1921
    %2429 = vmatpush1.bf16.msra.mxu0 %v1920
    %2430 = vmatprep.subr.bf16.mxu0 %v1914
    %2431 = vmatpush1.bf16.msra.mxu0 %v1913
    %2432 = vmatprep.subr.bf16.mxu0 %v1907
    %2433 = vmatpush1.bf16.msra.mxu0 %v1906
    %2434 = vmatprep.subr.bf16.mxu0 %v1900
    %2435 = vmatpush1.bf16.msra.mxu0 %v1899
    %2436 = vmatprep.subr.bf16.mxu0 %v1893
    %2437 = vmatpush1.bf16.msra.mxu0 %v1892
    %2438 = vmatprep.subr.bf16.mxu0 %v1886
    %2439 = vmatpush1.bf16.msra.mxu0 %v1885
    %2440 = vmatprep.subr.bf16.mxu0 %v1879
    %2441 = vmatpush1.bf16.msra.mxu0 %v1878
    %2442 = vmatprep.subr.bf16.mxu0 %v1984
    %2443 = vmatpush2.bf16.msra.mxu0 %v1983
    %2444 = vmatprep.subr.bf16.mxu0 %v1977
    %2445 = vmatpush2.bf16.msra.mxu0 %v1976
    %2446 = vmatprep.subr.bf16.mxu0 %v1970
    %2447 = vmatpush2.bf16.msra.mxu0 %v1969
    %2448 = vmatprep.subr.bf16.mxu0 %v1963
    %2449 = vmatpush2.bf16.msra.mxu0 %v1962
    %2450 = vmatprep.subr.bf16.mxu0 %v1956
    %2451 = vmatpush2.bf16.msra.mxu0 %v1955
    %2452 = vmatprep.subr.bf16.mxu0 %v1949
    %2453 = vmatpush2.bf16.msra.mxu0 %v1948
    %2454 = vmatprep.subr.bf16.mxu0 %v1942
    %2455 = vmatpush2.bf16.msra.mxu0 %v1941
    %2456 = vmatprep.subr.bf16.mxu0 %v1935
    %2457 = vmatpush2.bf16.msra.mxu0 %v1934
    %2458 = vmatprep.mubr.bf16.mxu0 %v145
    %2459 = vmatmul.mubr.bf16.gmra.mxu0 %v144
    %v2460 = vpop.f32.mrf.mxu0
    %v2461 = vadd.f32 %v2420, %v2460
    %v2462 = vpop.f32.mrf.mxu0
    %v2463 = vadd.f32 %v2422, %v2462
    %v2464 = vpop.f32.mrf.mxu0
    %v2465 = vpop.f32.mrf.mxu0
    %2466 = vdwg.mxu0
    %2467 = vmatprep.subr.bf16.mxu0 0
    %2468 = vmatpush1.bf16.msra.mxu0 0
    %2469 = vmatprep.subr.bf16.mxu0 0
    %2470 = vmatpush1.bf16.msra.mxu0 0
    %2471 = vmatprep.subr.bf16.mxu0 0
    %2472 = vmatpush1.bf16.msra.mxu0 0
    %2473 = vmatprep.subr.bf16.mxu0 0
    %2474 = vmatpush1.bf16.msra.mxu0 0
    %2475 = vmatprep.subr.bf16.mxu0 0
    %2476 = vmatpush1.bf16.msra.mxu0 0
    %2477 = vmatprep.subr.bf16.mxu0 0
    %2478 = vmatpush1.bf16.msra.mxu0 0
    %2479 = vmatprep.subr.bf16.mxu0 0
    %2480 = vmatpush1.bf16.msra.mxu0 0
    %2481 = vmatprep.subr.bf16.mxu0 %v1991
    %2482 = vmatpush1.bf16.msra.mxu0 %v1990
    %2483 = vmatprep.subr.bf16.mxu0 0
    %2484 = vmatpush2.bf16.msra.mxu0 0
    %2485 = vmatprep.subr.bf16.mxu0 0
    %2486 = vmatpush2.bf16.msra.mxu0 0
    %2487 = vmatprep.subr.bf16.mxu0 0
    %2488 = vmatpush2.bf16.msra.mxu0 0
    %2489 = vmatprep.subr.bf16.mxu0 0
    %2490 = vmatpush2.bf16.msra.mxu0 0
    %2491 = vmatprep.subr.bf16.mxu0 0
    %2492 = vmatpush2.bf16.msra.mxu0 0
    %2493 = vmatprep.subr.bf16.mxu0 0
    %2494 = vmatpush2.bf16.msra.mxu0 0
    %2495 = vmatprep.subr.bf16.mxu0 0
    %2496 = vmatpush2.bf16.msra.mxu0 0
    %2497 = vmatprep.subr.bf16.mxu0 0
    %2498 = vmatpush2.bf16.msra.mxu0 0
    %2499 = vmatprep.mubr.bf16.mxu0 0
    %2500 = vmatmul.mubr.bf16.gmra.mxu0 %v2342
    %v2501 = vpop.f32.mrf.mxu0
    %v2502 = vadd.f32 %v2461, %v2501
    %v2503 = vpop.f32.mrf.mxu0
    %v2504 = vadd.f32 %v2463, %v2503
    %v2505 = vpop.f32.mrf.mxu0
    %v2506 = vpop.f32.mrf.mxu0
    %2507 = vdwg.mxu0
    %2508 = vmatprep.subr.bf16.mxu0 %v1706
    %2509 = vmatpush1.bf16.msra.mxu0 %v1705
    %2510 = vmatprep.subr.bf16.mxu0 %v1699
    %2511 = vmatpush1.bf16.msra.mxu0 %v1698
    %2512 = vmatprep.subr.bf16.mxu0 %v1692
    %2513 = vmatpush1.bf16.msra.mxu0 %v1691
    %2514 = vmatprep.subr.bf16.mxu0 %v1685
    %2515 = vmatpush1.bf16.msra.mxu0 %v1684
    %2516 = vmatprep.subr.bf16.mxu0 %v1678
    %2517 = vmatpush1.bf16.msra.mxu0 %v1677
    %2518 = vmatprep.subr.bf16.mxu0 %v1671
    %2519 = vmatpush1.bf16.msra.mxu0 %v1670
    %2520 = vmatprep.subr.bf16.mxu0 %v1664
    %2521 = vmatpush1.bf16.msra.mxu0 %v1663
    %2522 = vmatprep.subr.bf16.mxu0 %v1657
    %2523 = vmatpush1.bf16.msra.mxu0 %v1656
    %2524 = vmatprep.subr.bf16.mxu0 %v1762
    %2525 = vmatpush2.bf16.msra.mxu0 %v1761
    %2526 = vmatprep.subr.bf16.mxu0 %v1755
    %2527 = vmatpush2.bf16.msra.mxu0 %v1754
    %2528 = vmatprep.subr.bf16.mxu0 %v1748
    %2529 = vmatpush2.bf16.msra.mxu0 %v1747
    %2530 = vmatprep.subr.bf16.mxu0 %v1741
    %2531 = vmatpush2.bf16.msra.mxu0 %v1740
    %2532 = vmatprep.subr.bf16.mxu0 %v1734
    %2533 = vmatpush2.bf16.msra.mxu0 %v1733
    %2534 = vmatprep.subr.bf16.mxu0 %v1727
    %2535 = vmatpush2.bf16.msra.mxu0 %v1726
    %2536 = vmatprep.subr.bf16.mxu0 %v1720
    %2537 = vmatpush2.bf16.msra.mxu0 %v1719
    %2538 = vmatprep.subr.bf16.mxu0 %v1713
    %2539 = vmatpush2.bf16.msra.mxu0 %v1712
    %2540 = vmatprep.mubr.bf16.mxu0 %v141
    %2541 = vmatmul.mubr.bf16.gmra.mxu0 %v140
    %v2542 = vpop.f32.mrf.mxu0
    %v2543 = vadd.f32 %v552, %v2542
    %v2544 = vpop.f32.mrf.mxu0
    %v2545 = vadd.f32 %v556, %v2544
    %v2546 = vpop.f32.mrf.mxu0
    %v2547 = vpop.f32.mrf.mxu0
    %2548 = vdwg.mxu0
    %2549 = vmatprep.subr.bf16.mxu0 %v1818
    %2550 = vmatpush1.bf16.msra.mxu0 %v1817
    %2551 = vmatprep.subr.bf16.mxu0 %v1811
    %2552 = vmatpush1.bf16.msra.mxu0 %v1810
    %2553 = vmatprep.subr.bf16.mxu0 %v1804
    %2554 = vmatpush1.bf16.msra.mxu0 %v1803
    %2555 = vmatprep.subr.bf16.mxu0 %v1797
    %2556 = vmatpush1.bf16.msra.mxu0 %v1796
    %2557 = vmatprep.subr.bf16.mxu0 %v1790
    %2558 = vmatpush1.bf16.msra.mxu0 %v1789
    %2559 = vmatprep.subr.bf16.mxu0 %v1783
    %2560 = vmatpush1.bf16.msra.mxu0 %v1782
    %2561 = vmatprep.subr.bf16.mxu0 %v1776
    %2562 = vmatpush1.bf16.msra.mxu0 %v1775
    %2563 = vmatprep.subr.bf16.mxu0 %v1769
    %2564 = vmatpush1.bf16.msra.mxu0 %v1768
    %2565 = vmatprep.subr.bf16.mxu0 %v1874
    %2566 = vmatpush2.bf16.msra.mxu0 %v1873
    %2567 = vmatprep.subr.bf16.mxu0 %v1867
    %2568 = vmatpush2.bf16.msra.mxu0 %v1866
    %2569 = vmatprep.subr.bf16.mxu0 %v1860
    %2570 = vmatpush2.bf16.msra.mxu0 %v1859
    %2571 = vmatprep.subr.bf16.mxu0 %v1853
    %2572 = vmatpush2.bf16.msra.mxu0 %v1852
    %2573 = vmatprep.subr.bf16.mxu0 %v1846
    %2574 = vmatpush2.bf16.msra.mxu0 %v1845
    %2575 = vmatprep.subr.bf16.mxu0 %v1839
    %2576 = vmatpush2.bf16.msra.mxu0 %v1838
    %2577 = vmatprep.subr.bf16.mxu0 %v1832
    %2578 = vmatpush2.bf16.msra.mxu0 %v1831
    %2579 = vmatprep.subr.bf16.mxu0 %v1825
    %2580 = vmatpush2.bf16.msra.mxu0 %v1824
    %2581 = vmatprep.mubr.bf16.mxu0 %v143
    %2582 = vmatmul.mubr.bf16.gmra.mxu0 %v142
    %v2583 = vpop.f32.mrf.mxu0
    %v2584 = vadd.f32 %v2543, %v2583
    %v2585 = vpop.f32.mrf.mxu0
    %v2586 = vadd.f32 %v2545, %v2585
    %v2587 = vpop.f32.mrf.mxu0
    %v2588 = vpop.f32.mrf.mxu0
    %2589 = vdwg.mxu0
    %2590 = vmatprep.subr.bf16.mxu0 %v1930
    %2591 = vmatpush1.bf16.msra.mxu0 %v1929
    %2592 = vmatprep.subr.bf16.mxu0 %v1923
    %2593 = vmatpush1.bf16.msra.mxu0 %v1922
    %2594 = vmatprep.subr.bf16.mxu0 %v1916
    %2595 = vmatpush1.bf16.msra.mxu0 %v1915
    %2596 = vmatprep.subr.bf16.mxu0 %v1909
    %2597 = vmatpush1.bf16.msra.mxu0 %v1908
    %2598 = vmatprep.subr.bf16.mxu0 %v1902
    %2599 = vmatpush1.bf16.msra.mxu0 %v1901
    %2600 = vmatprep.subr.bf16.mxu0 %v1895
    %2601 = vmatpush1.bf16.msra.mxu0 %v1894
    %2602 = vmatprep.subr.bf16.mxu0 %v1888
    %2603 = vmatpush1.bf16.msra.mxu0 %v1887
    %2604 = vmatprep.subr.bf16.mxu0 %v1881
    %2605 = vmatpush1.bf16.msra.mxu0 %v1880
    %2606 = vmatprep.subr.bf16.mxu0 %v1986
    %2607 = vmatpush2.bf16.msra.mxu0 %v1985
    %2608 = vmatprep.subr.bf16.mxu0 %v1979
    %2609 = vmatpush2.bf16.msra.mxu0 %v1978
    %2610 = vmatprep.subr.bf16.mxu0 %v1972
    %2611 = vmatpush2.bf16.msra.mxu0 %v1971
    %2612 = vmatprep.subr.bf16.mxu0 %v1965
    %2613 = vmatpush2.bf16.msra.mxu0 %v1964
    %2614 = vmatprep.subr.bf16.mxu0 %v1958
    %2615 = vmatpush2.bf16.msra.mxu0 %v1957
    %2616 = vmatprep.subr.bf16.mxu0 %v1951
    %2617 = vmatpush2.bf16.msra.mxu0 %v1950
    %2618 = vmatprep.subr.bf16.mxu0 %v1944
    %2619 = vmatpush2.bf16.msra.mxu0 %v1943
    %2620 = vmatprep.subr.bf16.mxu0 %v1937
    %2621 = vmatpush2.bf16.msra.mxu0 %v1936
    %2622 = vmatprep.mubr.bf16.mxu0 %v145
    %2623 = vmatmul.mubr.bf16.gmra.mxu0 %v144
    %v2624 = vpop.f32.mrf.mxu0
    %v2625 = vadd.f32 %v2584, %v2624
    %v2626 = vpop.f32.mrf.mxu0
    %v2627 = vadd.f32 %v2586, %v2626
    %v2628 = vpop.f32.mrf.mxu0
    %v2629 = vpop.f32.mrf.mxu0
    %2630 = vdwg.mxu0
    %2631 = vmatprep.subr.bf16.mxu0 0
    %2632 = vmatpush1.bf16.msra.mxu0 0
    %2633 = vmatprep.subr.bf16.mxu0 0
    %2634 = vmatpush1.bf16.msra.mxu0 0
    %2635 = vmatprep.subr.bf16.mxu0 0
    %2636 = vmatpush1.bf16.msra.mxu0 0
    %2637 = vmatprep.subr.bf16.mxu0 0
    %2638 = vmatpush1.bf16.msra.mxu0 0
    %2639 = vmatprep.subr.bf16.mxu0 0
    %2640 = vmatpush1.bf16.msra.mxu0 0
    %2641 = vmatprep.subr.bf16.mxu0 0
    %2642 = vmatpush1.bf16.msra.mxu0 0
    %2643 = vmatprep.subr.bf16.mxu0 0
    %2644 = vmatpush1.bf16.msra.mxu0 0
    %2645 = vmatprep.subr.bf16.mxu0 %v1993
    %2646 = vmatpush1.bf16.msra.mxu0 %v1992
    %2647 = vmatprep.subr.bf16.mxu0 0
    %2648 = vmatpush2.bf16.msra.mxu0 0
    %2649 = vmatprep.subr.bf16.mxu0 0
    %2650 = vmatpush2.bf16.msra.mxu0 0
    %2651 = vmatprep.subr.bf16.mxu0 0
    %2652 = vmatpush2.bf16.msra.mxu0 0
    %2653 = vmatprep.subr.bf16.mxu0 0
    %2654 = vmatpush2.bf16.msra.mxu0 0
    %2655 = vmatprep.subr.bf16.mxu0 0
    %2656 = vmatpush2.bf16.msra.mxu0 0
    %2657 = vmatprep.subr.bf16.mxu0 0
    %2658 = vmatpush2.bf16.msra.mxu0 0
    %2659 = vmatprep.subr.bf16.mxu0 0
    %2660 = vmatpush2.bf16.msra.mxu0 0
    %2661 = vmatprep.subr.bf16.mxu0 0
    %2662 = vmatpush2.bf16.msra.mxu0 0
    %2663 = vmatprep.mubr.bf16.mxu0 0
    %2664 = vmatmul.mubr.bf16.gmra.mxu0 %v2342
    %v2665 = vpop.f32.mrf.mxu0
    %v2666 = vadd.f32 %v2625, %v2665
    %v2667 = vpop.f32.mrf.mxu0
    %v2668 = vadd.f32 %v2627, %v2667
    %v2669 = vpop.f32.mrf.mxu0
    %v2670 = vpop.f32.mrf.mxu0
    %2671 = vdwg.mxu0
    %2672 = vmatprep.subr.bf16.mxu0 %v1708
    %2673 = vmatpush1.bf16.msra.mxu0 %v1707
    %2674 = vmatprep.subr.bf16.mxu0 %v1701
    %2675 = vmatpush1.bf16.msra.mxu0 %v1700
    %2676 = vmatprep.subr.bf16.mxu0 %v1694
    %2677 = vmatpush1.bf16.msra.mxu0 %v1693
    %2678 = vmatprep.subr.bf16.mxu0 %v1687
    %2679 = vmatpush1.bf16.msra.mxu0 %v1686
    %2680 = vmatprep.subr.bf16.mxu0 %v1680
    %2681 = vmatpush1.bf16.msra.mxu0 %v1679
    %2682 = vmatprep.subr.bf16.mxu0 %v1673
    %2683 = vmatpush1.bf16.msra.mxu0 %v1672
    %2684 = vmatprep.subr.bf16.mxu0 %v1666
    %2685 = vmatpush1.bf16.msra.mxu0 %v1665
    %2686 = vmatprep.subr.bf16.mxu0 %v1659
    %2687 = vmatpush1.bf16.msra.mxu0 %v1658
    %2688 = vmatprep.subr.bf16.mxu0 %v1764
    %2689 = vmatpush2.bf16.msra.mxu0 %v1763
    %2690 = vmatprep.subr.bf16.mxu0 %v1757
    %2691 = vmatpush2.bf16.msra.mxu0 %v1756
    %2692 = vmatprep.subr.bf16.mxu0 %v1750
    %2693 = vmatpush2.bf16.msra.mxu0 %v1749
    %2694 = vmatprep.subr.bf16.mxu0 %v1743
    %2695 = vmatpush2.bf16.msra.mxu0 %v1742
    %2696 = vmatprep.subr.bf16.mxu0 %v1736
    %2697 = vmatpush2.bf16.msra.mxu0 %v1735
    %2698 = vmatprep.subr.bf16.mxu0 %v1729
    %2699 = vmatpush2.bf16.msra.mxu0 %v1728
    %2700 = vmatprep.subr.bf16.mxu0 %v1722
    %2701 = vmatpush2.bf16.msra.mxu0 %v1721
    %2702 = vmatprep.subr.bf16.mxu0 %v1715
    %2703 = vmatpush2.bf16.msra.mxu0 %v1714
    %2704 = vmatprep.mubr.bf16.mxu0 %v141
    %2705 = vmatmul.mubr.bf16.gmra.mxu0 %v140
    %v2706 = vpop.f32.mrf.mxu0
    %v2707 = vadd.f32 %v560, %v2706
    %v2708 = vpop.f32.mrf.mxu0
    %v2709 = vadd.f32 %v564, %v2708
    %v2710 = vpop.f32.mrf.mxu0
    %v2711 = vpop.f32.mrf.mxu0
    %2712 = vdwg.mxu0
    %2713 = vmatprep.subr.bf16.mxu0 %v1820
    %2714 = vmatpush1.bf16.msra.mxu0 %v1819
    %2715 = vmatprep.subr.bf16.mxu0 %v1813
    %2716 = vmatpush1.bf16.msra.mxu0 %v1812
    %2717 = vmatprep.subr.bf16.mxu0 %v1806
    %2718 = vmatpush1.bf16.msra.mxu0 %v1805
    %2719 = vmatprep.subr.bf16.mxu0 %v1799
    %2720 = vmatpush1.bf16.msra.mxu0 %v1798
    %2721 = vmatprep.subr.bf16.mxu0 %v1792
    %2722 = vmatpush1.bf16.msra.mxu0 %v1791
    %2723 = vmatprep.subr.bf16.mxu0 %v1785
    %2724 = vmatpush1.bf16.msra.mxu0 %v1784
    %2725 = vmatprep.subr.bf16.mxu0 %v1778
    %2726 = vmatpush1.bf16.msra.mxu0 %v1777
    %2727 = vmatprep.subr.bf16.mxu0 %v1771
    %2728 = vmatpush1.bf16.msra.mxu0 %v1770
    %2729 = vmatprep.subr.bf16.mxu0 %v1876
    %2730 = vmatpush2.bf16.msra.mxu0 %v1875
    %2731 = vmatprep.subr.bf16.mxu0 %v1869
    %2732 = vmatpush2.bf16.msra.mxu0 %v1868
    %2733 = vmatprep.subr.bf16.mxu0 %v1862
    %2734 = vmatpush2.bf16.msra.mxu0 %v1861
    %2735 = vmatprep.subr.bf16.mxu0 %v1855
    %2736 = vmatpush2.bf16.msra.mxu0 %v1854
    %2737 = vmatprep.subr.bf16.mxu0 %v1848
    %2738 = vmatpush2.bf16.msra.mxu0 %v1847
    %2739 = vmatprep.subr.bf16.mxu0 %v1841
    %2740 = vmatpush2.bf16.msra.mxu0 %v1840
    %2741 = vmatprep.subr.bf16.mxu0 %v1834
    %2742 = vmatpush2.bf16.msra.mxu0 %v1833
    %2743 = vmatprep.subr.bf16.mxu0 %v1827
    %2744 = vmatpush2.bf16.msra.mxu0 %v1826
    %2745 = vmatprep.mubr.bf16.mxu0 %v143
    %2746 = vmatmul.mubr.bf16.gmra.mxu0 %v142
    %v2747 = vpop.f32.mrf.mxu0
    %v2748 = vadd.f32 %v2707, %v2747
    %v2749 = vpop.f32.mrf.mxu0
    %v2750 = vadd.f32 %v2709, %v2749
    %v2751 = vpop.f32.mrf.mxu0
    %v2752 = vpop.f32.mrf.mxu0
    %2753 = vdwg.mxu0
    %2754 = vmatprep.subr.bf16.mxu0 %v1932
    %2755 = vmatpush1.bf16.msra.mxu0 %v1931
    %2756 = vmatprep.subr.bf16.mxu0 %v1925
    %2757 = vmatpush1.bf16.msra.mxu0 %v1924
    %2758 = vmatprep.subr.bf16.mxu0 %v1918
    %2759 = vmatpush1.bf16.msra.mxu0 %v1917
    %2760 = vmatprep.subr.bf16.mxu0 %v1911
    %2761 = vmatpush1.bf16.msra.mxu0 %v1910
    %2762 = vmatprep.subr.bf16.mxu0 %v1904
    %2763 = vmatpush1.bf16.msra.mxu0 %v1903
    %2764 = vmatprep.subr.bf16.mxu0 %v1897
    %2765 = vmatpush1.bf16.msra.mxu0 %v1896
    %2766 = vmatprep.subr.bf16.mxu0 %v1890
    %2767 = vmatpush1.bf16.msra.mxu0 %v1889
    %2768 = vmatprep.subr.bf16.mxu0 %v1883
    %2769 = vmatpush1.bf16.msra.mxu0 %v1882
    %2770 = vmatprep.subr.bf16.mxu0 %v1988
    %2771 = vmatpush2.bf16.msra.mxu0 %v1987
    %2772 = vmatprep.subr.bf16.mxu0 %v1981
    %2773 = vmatpush2.bf16.msra.mxu0 %v1980
    %2774 = vmatprep.subr.bf16.mxu0 %v1974
    %2775 = vmatpush2.bf16.msra.mxu0 %v1973
    %2776 = vmatprep.subr.bf16.mxu0 %v1967
    %2777 = vmatpush2.bf16.msra.mxu0 %v1966
    %2778 = vmatprep.subr.bf16.mxu0 %v1960
    %2779 = vmatpush2.bf16.msra.mxu0 %v1959
    %2780 = vmatprep.subr.bf16.mxu0 %v1953
    %2781 = vmatpush2.bf16.msra.mxu0 %v1952
    %2782 = vmatprep.subr.bf16.mxu0 %v1946
    %2783 = vmatpush2.bf16.msra.mxu0 %v1945
    %2784 = vmatprep.subr.bf16.mxu0 %v1939
    %2785 = vmatpush2.bf16.msra.mxu0 %v1938
    %2786 = vmatprep.mubr.bf16.mxu0 %v145
    %2787 = vmatmul.mubr.bf16.gmra.mxu0 %v144
    %v2788 = vpop.f32.mrf.mxu0
    %v2789 = vadd.f32 %v2748, %v2788
    %v2790 = vpop.f32.mrf.mxu0
    %v2791 = vadd.f32 %v2750, %v2790
    %v2792 = vpop.f32.mrf.mxu0
    %v2793 = vpop.f32.mrf.mxu0
    %2794 = vdwg.mxu0
    %2795 = vmatprep.subr.bf16.mxu0 0
    %2796 = vmatpush1.bf16.msra.mxu0 0
    %2797 = vmatprep.subr.bf16.mxu0 0
    %2798 = vmatpush1.bf16.msra.mxu0 0
    %2799 = vmatprep.subr.bf16.mxu0 0
    %2800 = vmatpush1.bf16.msra.mxu0 0
    %2801 = vmatprep.subr.bf16.mxu0 0
    %2802 = vmatpush1.bf16.msra.mxu0 0
    %2803 = vmatprep.subr.bf16.mxu0 0
    %2804 = vmatpush1.bf16.msra.mxu0 0
    %2805 = vmatprep.subr.bf16.mxu0 0
    %2806 = vmatpush1.bf16.msra.mxu0 0
    %2807 = vmatprep.subr.bf16.mxu0 0
    %2808 = vmatpush1.bf16.msra.mxu0 0
    %2809 = vmatprep.subr.bf16.mxu0 %v1995
    %2810 = vmatpush1.bf16.msra.mxu0 %v1994
    %2811 = vmatprep.subr.bf16.mxu0 0
    %2812 = vmatpush2.bf16.msra.mxu0 0
    %2813 = vmatprep.subr.bf16.mxu0 0
    %2814 = vmatpush2.bf16.msra.mxu0 0
    %2815 = vmatprep.subr.bf16.mxu0 0
    %2816 = vmatpush2.bf16.msra.mxu0 0
    %2817 = vmatprep.subr.bf16.mxu0 0
    %2818 = vmatpush2.bf16.msra.mxu0 0
    %2819 = vmatprep.subr.bf16.mxu0 0
    %2820 = vmatpush2.bf16.msra.mxu0 0
    %2821 = vmatprep.subr.bf16.mxu0 0
    %2822 = vmatpush2.bf16.msra.mxu0 0
    %2823 = vmatprep.subr.bf16.mxu0 0
    %2824 = vmatpush2.bf16.msra.mxu0 0
    %2825 = vmatprep.subr.bf16.mxu0 0
    %2826 = vmatpush2.bf16.msra.mxu0 0
    %2827 = vmatprep.mubr.bf16.mxu0 0
    %2828 = vmatmul.mubr.bf16.gmra.mxu0 %v2342
    %v2829 = vpop.f32.mrf.mxu0
    %v2830 = vadd.f32 %v2789, %v2829
    %v2831 = vpop.f32.mrf.mxu0
    %v2832 = vadd.f32 %v2791, %v2831
    %v2833 = vpop.f32.mrf.mxu0
    %v2834 = vpop.f32.mrf.mxu0
    %2835 = vdwg.mxu0
    %2836 = vmatprep.subr.bf16.mxu0 0
    %2837 = vmatpush1.bf16.msra.mxu0 %v1709
    %2838 = vmatprep.subr.bf16.mxu0 0
    %2839 = vmatpush1.bf16.msra.mxu0 %v1702
    %2840 = vmatprep.subr.bf16.mxu0 0
    %2841 = vmatpush1.bf16.msra.mxu0 %v1695
    %2842 = vmatprep.subr.bf16.mxu0 0
    %2843 = vmatpush1.bf16.msra.mxu0 %v1688
    %2844 = vmatprep.subr.bf16.mxu0 0
    %2845 = vmatpush1.bf16.msra.mxu0 %v1681
    %2846 = vmatprep.subr.bf16.mxu0 0
    %2847 = vmatpush1.bf16.msra.mxu0 %v1674
    %2848 = vmatprep.subr.bf16.mxu0 0
    %2849 = vmatpush1.bf16.msra.mxu0 %v1667
    %2850 = vmatprep.subr.bf16.mxu0 0
    %2851 = vmatpush1.bf16.msra.mxu0 %v1660
    %2852 = vmatprep.subr.bf16.mxu0 0
    %2853 = vmatpush2.bf16.msra.mxu0 %v1765
    %2854 = vmatprep.subr.bf16.mxu0 0
    %2855 = vmatpush2.bf16.msra.mxu0 %v1758
    %2856 = vmatprep.subr.bf16.mxu0 0
    %2857 = vmatpush2.bf16.msra.mxu0 %v1751
    %2858 = vmatprep.subr.bf16.mxu0 0
    %2859 = vmatpush2.bf16.msra.mxu0 %v1744
    %2860 = vmatprep.subr.bf16.mxu0 0
    %2861 = vmatpush2.bf16.msra.mxu0 %v1737
    %2862 = vmatprep.subr.bf16.mxu0 0
    %2863 = vmatpush2.bf16.msra.mxu0 %v1730
    %2864 = vmatprep.subr.bf16.mxu0 0
    %2865 = vmatpush2.bf16.msra.mxu0 %v1723
    %2866 = vmatprep.subr.bf16.mxu0 0
    %2867 = vmatpush2.bf16.msra.mxu0 %v1716
    %2868 = vmatprep.mubr.bf16.mxu0 %v141
    %2869 = vmatmul.mubr.bf16.gmra.mxu0 %v140
    %v2870 = vpop.f32.mrf.mxu0
    %v2871 = vadd.f32 %v568, %v2870
    %v2872 = vpop.f32.mrf.mxu0
    %v2873 = vpop.f32.mrf.mxu0
    %v2874 = vpop.f32.mrf.mxu0
    %2875 = vdwg.mxu0
    %2876 = vmatprep.subr.bf16.mxu0 0
    %2877 = vmatpush1.bf16.msra.mxu0 %v1821
    %2878 = vmatprep.subr.bf16.mxu0 0
    %2879 = vmatpush1.bf16.msra.mxu0 %v1814
    %2880 = vmatprep.subr.bf16.mxu0 0
    %2881 = vmatpush1.bf16.msra.mxu0 %v1807
    %2882 = vmatprep.subr.bf16.mxu0 0
    %2883 = vmatpush1.bf16.msra.mxu0 %v1800
    %2884 = vmatprep.subr.bf16.mxu0 0
    %2885 = vmatpush1.bf16.msra.mxu0 %v1793
    %2886 = vmatprep.subr.bf16.mxu0 0
    %2887 = vmatpush1.bf16.msra.mxu0 %v1786
    %2888 = vmatprep.subr.bf16.mxu0 0
    %2889 = vmatpush1.bf16.msra.mxu0 %v1779
    %2890 = vmatprep.subr.bf16.mxu0 0
    %2891 = vmatpush1.bf16.msra.mxu0 %v1772
    %2892 = vmatprep.subr.bf16.mxu0 0
    %2893 = vmatpush2.bf16.msra.mxu0 %v1877
    %2894 = vmatprep.subr.bf16.mxu0 0
    %2895 = vmatpush2.bf16.msra.mxu0 %v1870
    %2896 = vmatprep.subr.bf16.mxu0 0
    %2897 = vmatpush2.bf16.msra.mxu0 %v1863
    %2898 = vmatprep.subr.bf16.mxu0 0
    %2899 = vmatpush2.bf16.msra.mxu0 %v1856
    %2900 = vmatprep.subr.bf16.mxu0 0
    %2901 = vmatpush2.bf16.msra.mxu0 %v1849
    %2902 = vmatprep.subr.bf16.mxu0 0
    %2903 = vmatpush2.bf16.msra.mxu0 %v1842
    %2904 = vmatprep.subr.bf16.mxu0 0
    %2905 = vmatpush2.bf16.msra.mxu0 %v1835
    %2906 = vmatprep.subr.bf16.mxu0 0
    %2907 = vmatpush2.bf16.msra.mxu0 %v1828
    %2908 = vmatprep.mubr.bf16.mxu0 %v143
    %2909 = vmatmul.mubr.bf16.gmra.mxu0 %v142
    %v2910 = vpop.f32.mrf.mxu0
    %v2911 = vadd.f32 %v2871, %v2910
    %v2912 = vpop.f32.mrf.mxu0
    %v2913 = vpop.f32.mrf.mxu0
    %v2914 = vpop.f32.mrf.mxu0
    %2915 = vdwg.mxu0
    %2916 = vmatprep.subr.bf16.mxu0 0
    %2917 = vmatpush1.bf16.msra.mxu0 %v1933
    %2918 = vmatprep.subr.bf16.mxu0 0
    %2919 = vmatpush1.bf16.msra.mxu0 %v1926
    %2920 = vmatprep.subr.bf16.mxu0 0
    %2921 = vmatpush1.bf16.msra.mxu0 %v1919
    %2922 = vmatprep.subr.bf16.mxu0 0
    %2923 = vmatpush1.bf16.msra.mxu0 %v1912
    %2924 = vmatprep.subr.bf16.mxu0 0
    %2925 = vmatpush1.bf16.msra.mxu0 %v1905
    %2926 = vmatprep.subr.bf16.mxu0 0
    %2927 = vmatpush1.bf16.msra.mxu0 %v1898
    %2928 = vmatprep.subr.bf16.mxu0 0
    %2929 = vmatpush1.bf16.msra.mxu0 %v1891
    %2930 = vmatprep.subr.bf16.mxu0 0
    %2931 = vmatpush1.bf16.msra.mxu0 %v1884
    %2932 = vmatprep.subr.bf16.mxu0 0
    %2933 = vmatpush2.bf16.msra.mxu0 %v1989
    %2934 = vmatprep.subr.bf16.mxu0 0
    %2935 = vmatpush2.bf16.msra.mxu0 %v1982
    %2936 = vmatprep.subr.bf16.mxu0 0
    %2937 = vmatpush2.bf16.msra.mxu0 %v1975
    %2938 = vmatprep.subr.bf16.mxu0 0
    %2939 = vmatpush2.bf16.msra.mxu0 %v1968
    %2940 = vmatprep.subr.bf16.mxu0 0
    %2941 = vmatpush2.bf16.msra.mxu0 %v1961
    %2942 = vmatprep.subr.bf16.mxu0 0
    %2943 = vmatpush2.bf16.msra.mxu0 %v1954
    %2944 = vmatprep.subr.bf16.mxu0 0
    %2945 = vmatpush2.bf16.msra.mxu0 %v1947
    %2946 = vmatprep.subr.bf16.mxu0 0
    %2947 = vmatpush2.bf16.msra.mxu0 %v1940
    %2948 = vmatprep.mubr.bf16.mxu0 %v145
    %2949 = vmatmul.mubr.bf16.gmra.mxu0 %v144
    %v2950 = vpop.f32.mrf.mxu0
    %v2951 = vadd.f32 %v2911, %v2950
    %v2952 = vpop.f32.mrf.mxu0
    %v2953 = vpop.f32.mrf.mxu0
    %v2954 = vpop.f32.mrf.mxu0
    %2955 = vdwg.mxu0
    %2956 = vmatprep.subr.bf16.mxu0 0
    %2957 = vmatpush1.bf16.msra.mxu0 0
    %2958 = vmatprep.subr.bf16.mxu0 0
    %2959 = vmatpush1.bf16.msra.mxu0 0
    %2960 = vmatprep.subr.bf16.mxu0 0
    %2961 = vmatpush1.bf16.msra.mxu0 0
    %2962 = vmatprep.subr.bf16.mxu0 0
    %2963 = vmatpush1.bf16.msra.mxu0 0
    %2964 = vmatprep.subr.bf16.mxu0 0
    %2965 = vmatpush1.bf16.msra.mxu0 0
    %2966 = vmatprep.subr.bf16.mxu0 0
    %2967 = vmatpush1.bf16.msra.mxu0 0
    %2968 = vmatprep.subr.bf16.mxu0 0
    %2969 = vmatpush1.bf16.msra.mxu0 0
    %2970 = vmatprep.subr.bf16.mxu0 0
    %2971 = vmatpush1.bf16.msra.mxu0 %v1996
    %2972 = vmatprep.subr.bf16.mxu0 0
    %2973 = vmatpush2.bf16.msra.mxu0 0
    %2974 = vmatprep.subr.bf16.mxu0 0
    %2975 = vmatpush2.bf16.msra.mxu0 0
    %2976 = vmatprep.subr.bf16.mxu0 0
    %2977 = vmatpush2.bf16.msra.mxu0 0
    %2978 = vmatprep.subr.bf16.mxu0 0
    %2979 = vmatpush2.bf16.msra.mxu0 0
    %2980 = vmatprep.subr.bf16.mxu0 0
    %2981 = vmatpush2.bf16.msra.mxu0 0
    %2982 = vmatprep.subr.bf16.mxu0 0
    %2983 = vmatpush2.bf16.msra.mxu0 0
    %2984 = vmatprep.subr.bf16.mxu0 0
    %2985 = vmatpush2.bf16.msra.mxu0 0
    %2986 = vmatprep.subr.bf16.mxu0 0
    %2987 = vmatpush2.bf16.msra.mxu0 0
    %2988 = vmatprep.mubr.bf16.mxu0 0
    %2989 = vmatmul.mubr.bf16.gmra.mxu0 %v2342
    %v2990 = vpop.f32.mrf.mxu0
    %v2991 = vadd.f32 %v2951, %v2990
    %v2992 = vpop.f32.mrf.mxu0
    %v2993 = vpop.f32.mrf.mxu0
    %v2994 = vpop.f32.mrf.mxu0
    %2995 = vdwg.mxu0
    %v2996 = vpack.c.bf16 %v2502, %v2502
    %v2997 = vpack.c.bf16 %v2504, %v2504
    %v2998 = vpack.c.bf16 %v2666, %v2666
    %v2999 = vpack.c.bf16 %v2668, %v2668
    %v3000 = vpack.c.bf16 %v2830, %v2830
    %v3001 = vpack.c.bf16 %v2832, %v2832
    %v3002 = vpack.c.bf16 %v2991, %v2991
    %v3003 = vmax.bf16 %v2996, 0
    %v3004 = vmax.bf16 %v2997, 0
    %v3005 = vmax.bf16 %v2998, 0
    %v3006 = vmax.bf16 %v2999, 0
    %v3007 = vmax.bf16 %v3000, 0
    %v3008 = vmax.bf16 %v3001, 0
    %v3009 = vmax.bf16 %v3002, 0
    %v3010 = vld [vmem:[%s3] sm:$0xff]
    %v3011 = vld [vmem:[%s3 + $0x8] sm:$0xf]
    %v3012 = vld [vmem:[%s3 + $0xc] sm:$0xff]
    %v3013 = vld [vmem:[%s3 + $0x14] sm:$0xf]
    %v3014 = vld [vmem:[%s3 + $0x18] sm:$0xff]
    %v3015 = vld [vmem:[%s3 + $0x20] sm:$0xf]
    %v3016 = vld [vmem:[%s3 + $0x24] sm:$0xff]
    %v3017 = vld [vmem:[%s3 + $0x2c] sm:$0xf]
    %v3018 = vld [vmem:[%s3 + $0x30] sm:$0xff]
    %v3019 = vld [vmem:[%s3 + $0x38] sm:$0xf]
    %v3020 = vld [vmem:[%s3 + $0x3c] sm:$0xff]
    %v3021 = vld [vmem:[%s3 + $0x44] sm:$0xf]
    %v3022 = vld [vmem:[%s3 + $0x48] sm:$0xff]
    %v3023 = vld [vmem:[%s3 + $0x50] sm:$0xf]
    %v3024 = vld [vmem:[%s3 + $0x54] sm:$0xff]
    %v3025 = vld [vmem:[%s3 + $0x5c] sm:$0xf]
    %v3026 = vld [vmem:[%s3 + $0x60] sm:$0xff]
    %v3027 = vld [vmem:[%s3 + $0x68] sm:$0xf]
    %v3028 = vld [vmem:[%s3 + $0x6c] sm:$0xff]
    %v3029 = vld [vmem:[%s3 + $0x74] sm:$0xf]
    %v3030 = vld [vmem:[%s3 + $0x78] sm:$0xff]
    %v3031 = vld [vmem:[%s3 + $0x80] sm:$0xf]
    %v3032 = vld [vmem:[%s3 + $0x84] sm:$0xff]
    %v3033 = vld [vmem:[%s3 + $0x8c] sm:$0xf]
    %v3034 = vld [vmem:[%s3 + $0x90] sm:$0xff]
    %v3035 = vld [vmem:[%s3 + $0x98] sm:$0xf]
    %v3036 = vld [vmem:[%s3 + $0x9c] sm:$0xff]
    %v3037 = vld [vmem:[%s3 + $0xa4] sm:$0xf]
    %v3038 = vld [vmem:[%s3 + $0xa8] sm:$0xff]
    %v3039 = vld [vmem:[%s3 + $0xb0] sm:$0xf]
    %v3040 = vld [vmem:[%s3 + $0xb4] sm:$0xff]
    %v3041 = vld [vmem:[%s3 + $0xbc] sm:$0xf]
    %v3042 = vld [vmem:[%s3 + $0xc0] sm:$0xff]
    %v3043 = vld [vmem:[%s3 + $0xc8] sm:$0xf]
    %v3044 = vld [vmem:[%s3 + $0xcc] sm:$0xff]
    %v3045 = vld [vmem:[%s3 + $0xd4] sm:$0xf]
    %v3046 = vld [vmem:[%s3 + $0xd8] sm:$0xff]
    %v3047 = vld [vmem:[%s3 + $0xe0] sm:$0xf]
    %v3048 = vld [vmem:[%s3 + $0xe4] sm:$0xff]
    %v3049 = vld [vmem:[%s3 + $0xec] sm:$0xf]
    %v3050 = vld [vmem:[%s3 + $0xf0] sm:$0xff]
    %v3051 = vld [vmem:[%s3 + $0xf8] sm:$0xf]
    %v3052 = vld [vmem:[%s3 + $0xfc] sm:$0xff]
    %v3053 = vld [vmem:[%s3 + $0x104] sm:$0xf]
    %v3054 = vld [vmem:[%s3 + $0x108] sm:$0xff]
    %v3055 = vld [vmem:[%s3 + $0x110] sm:$0xf]
    %v3056 = vld [vmem:[%s3 + $0x114] sm:$0xff]
    %v3057 = vld [vmem:[%s3 + $0x11c] sm:$0xf]
    %v3058 = vld [vmem:[%s3 + $0x120] sm:$0xff]
    %v3059 = vld [vmem:[%s3 + $0x128] sm:$0xf]
    %v3060 = vld [vmem:[%s3 + $0x12c] sm:$0xff]
    %v3061 = vld [vmem:[%s3 + $0x134] sm:$0xf]
    %v3062 = vld [vmem:[%s3 + $0x138] sm:$0xff]
    %v3063 = vld [vmem:[%s3 + $0x140] sm:$0xf]
    %v3064 = vld [vmem:[%s3 + $0x144] sm:$0xff]
    %v3065 = vld [vmem:[%s3 + $0x14c] sm:$0xf]
    %v3066 = vld [vmem:[%s3 + $0x150] sm:$0xff]
    %v3067 = vld [vmem:[%s3 + $0x158] sm:$0xf]
    %v3068 = vld [vmem:[%s3 + $0x15c] sm:$0xff]
    %v3069 = vld [vmem:[%s3 + $0x164] sm:$0xf]
    %v3070 = vld [vmem:[%s3 + $0x168] sm:$0xff]
    %v3071 = vld [vmem:[%s3 + $0x170] sm:$0xf]
    %v3072 = vld [vmem:[%s3 + $0x174] sm:$0xff]
    %v3073 = vld [vmem:[%s3 + $0x17c] sm:$0xf]
    %v3074 = vld [vmem:[%s3 + $0x180] sm:$0xff]
    %v3075 = vld [vmem:[%s3 + $0x188] sm:$0xf]
    %v3076 = vld [vmem:[%s3 + $0x18c] sm:$0xff]
    %v3077 = vld [vmem:[%s3 + $0x194] sm:$0xf]
    %v3078 = vld [vmem:[%s3 + $0x198] sm:$0xff]
    %v3079 = vld [vmem:[%s3 + $0x1a0] sm:$0xf]
    %v3080 = vld [vmem:[%s3 + $0x1a4] sm:$0xff]
    %v3081 = vld [vmem:[%s3 + $0x1ac] sm:$0xf]
    %v3082 = vld [vmem:[%s3 + $0x1b0] sm:$0xff]
    %v3083 = vld [vmem:[%s3 + $0x1b8] sm:$0xf]
    %v3084 = vld [vmem:[%s3 + $0x1bc] sm:$0xff]
    %v3085 = vld [vmem:[%s3 + $0x1c4] sm:$0xf]
    %v3086 = vld [vmem:[%s3 + $0x1c8] sm:$0xff]
    %v3087 = vld [vmem:[%s3 + $0x1d0] sm:$0xf]
    %v3088 = vld [vmem:[%s3 + $0x1d4] sm:$0xff]
    %v3089 = vld [vmem:[%s3 + $0x1dc] sm:$0xf]
    %v3090 = vld [vmem:[%s3 + $0x1e0] sm:$0xff]
    %v3091 = vld [vmem:[%s3 + $0x1e8] sm:$0xf]
    %v3092 = vld [vmem:[%s3 + $0x1ec] sm:$0xff]
    %v3093 = vld [vmem:[%s3 + $0x1f4] sm:$0xf]
    %v3094 = vld [vmem:[%s3 + $0x1f8] sm:$0xff]
    %v3095 = vld [vmem:[%s3 + $0x200] sm:$0xf]
    %v3096 = vld [vmem:[%s3 + $0x204] sm:$0xff]
    %v3097 = vld [vmem:[%s3 + $0x20c] sm:$0xf]
    %v3098 = vld [vmem:[%s3 + $0x210] sm:$0xff]
    %v3099 = vld [vmem:[%s3 + $0x218] sm:$0xf]
    %v3100 = vld [vmem:[%s3 + $0x21c] sm:$0xff]
    %v3101 = vld [vmem:[%s3 + $0x224] sm:$0xf]
    %v3102 = vld [vmem:[%s3 + $0x228] sm:$0xff]
    %v3103 = vld [vmem:[%s3 + $0x230] sm:$0xf]
    %v3104 = vld [vmem:[%s3 + $0x234] sm:$0xff]
    %v3105 = vld [vmem:[%s3 + $0x23c] sm:$0xf]
    %v3106 = vld [vmem:[%s3 + $0x240] sm:$0xff]
    %v3107 = vld [vmem:[%s3 + $0x248] sm:$0xf]
    %v3108 = vld [vmem:[%s3 + $0x24c] sm:$0xff]
    %v3109 = vld [vmem:[%s3 + $0x254] sm:$0xf]
    %v3110 = vld [vmem:[%s3 + $0x258] sm:$0xff]
    %v3111 = vld [vmem:[%s3 + $0x260] sm:$0xf]
    %v3112 = vld [vmem:[%s3 + $0x264] sm:$0xff]
    %v3113 = vld [vmem:[%s3 + $0x26c] sm:$0xf]
    %v3114 = vld [vmem:[%s3 + $0x270] sm:$0xff]
    %v3115 = vld [vmem:[%s3 + $0x278] sm:$0xf]
    %v3116 = vld [vmem:[%s3 + $0x27c] sm:$0xff]
    %v3117 = vld [vmem:[%s3 + $0x284] sm:$0xf]
    %v3118 = vld [vmem:[%s3 + $0x288] sm:$0xff]
    %v3119 = vld [vmem:[%s3 + $0x290] sm:$0xf]
    %v3120 = vld [vmem:[%s3 + $0x294] sm:$0xff]
    %v3121 = vld [vmem:[%s3 + $0x29c] sm:$0xf]
    %v3122 = vld [vmem:[%s3 + $0x2a0] sm:$0xff]
    %v3123 = vld [vmem:[%s3 + $0x2a8] sm:$0xf]
    %v3124 = vld [vmem:[%s3 + $0x2ac] sm:$0xff]
    %v3125 = vld [vmem:[%s3 + $0x2b4] sm:$0xf]
    %v3126 = vld [vmem:[%s3 + $0x2b8] sm:$0xff]
    %v3127 = vld [vmem:[%s3 + $0x2c0] sm:$0xf]
    %v3128 = vld [vmem:[%s3 + $0x2c4] sm:$0xff]
    %v3129 = vld [vmem:[%s3 + $0x2cc] sm:$0xf]
    %v3130 = vld [vmem:[%s3 + $0x2d0] sm:$0xff]
    %v3131 = vld [vmem:[%s3 + $0x2d8] sm:$0xf]
    %v3132 = vld [vmem:[%s3 + $0x2dc] sm:$0xff]
    %v3133 = vld [vmem:[%s3 + $0x2e4] sm:$0xf]
    %v3134 = vld [vmem:[%s3 + $0x2e8] sm:$0xff]
    %v3135 = vld [vmem:[%s3 + $0x2f0] sm:$0xf]
    %v3136 = vld [vmem:[%s3 + $0x2f4] sm:$0xff]
    %v3137 = vld [vmem:[%s3 + $0x2fc] sm:$0xf]
    %v3138 = vld [vmem:[%s3 + $0x300] sm:$0xff]
    %v3139 = vld [vmem:[%s3 + $0x308] sm:$0xf]
    %v3140 = vld [vmem:[%s3 + $0x30c] sm:$0xff]
    %v3141 = vld [vmem:[%s3 + $0x314] sm:$0xf]
    %v3142 = vld [vmem:[%s3 + $0x318] sm:$0xff]
    %v3143 = vld [vmem:[%s3 + $0x320] sm:$0xf]
    %v3144 = vld [vmem:[%s3 + $0x324] sm:$0xff]
    %v3145 = vld [vmem:[%s3 + $0x32c] sm:$0xf]
    %v3146 = vld [vmem:[%s3 + $0x330] sm:$0xff]
    %v3147 = vld [vmem:[%s3 + $0x338] sm:$0xf]
    %v3148 = vld [vmem:[%s3 + $0x33c] sm:$0xff]
    %v3149 = vld [vmem:[%s3 + $0x344] sm:$0xf]
    %v3150 = vld [vmem:[%s3 + $0x348] sm:$0xff]
    %v3151 = vld [vmem:[%s3 + $0x350] sm:$0xf]
    %v3152 = vld [vmem:[%s3 + $0x354] sm:$0xff]
    %v3153 = vld [vmem:[%s3 + $0x35c] sm:$0xf]
    %v3154 = vld [vmem:[%s3 + $0x360] sm:$0xff]
    %v3155 = vld [vmem:[%s3 + $0x368] sm:$0xf]
    %v3156 = vld [vmem:[%s3 + $0x36c] sm:$0xff]
    %v3157 = vld [vmem:[%s3 + $0x374] sm:$0xf]
    %v3158 = vld [vmem:[%s3 + $0x378] sm:$0xff]
    %v3159 = vld [vmem:[%s3 + $0x380] sm:$0xf]
    %v3160 = vld [vmem:[%s3 + $0x384] sm:$0xff]
    %v3161 = vld [vmem:[%s3 + $0x38c] sm:$0xf]
    %v3162 = vld [vmem:[%s3 + $0x390] sm:$0xff]
    %v3163 = vld [vmem:[%s3 + $0x398] sm:$0xf]
    %v3164 = vld [vmem:[%s3 + $0x39c] sm:$0xff]
    %v3165 = vld [vmem:[%s3 + $0x3a4] sm:$0xf]
    %v3166 = vld [vmem:[%s3 + $0x3a8] sm:$0xff]
    %v3167 = vld [vmem:[%s3 + $0x3b0] sm:$0xf]
    %v3168 = vld [vmem:[%s3 + $0x3b4] sm:$0xff]
    %v3169 = vld [vmem:[%s3 + $0x3bc] sm:$0xf]
    %v3170 = vld [vmem:[%s3 + $0x3c0] sm:$0xff]
    %v3171 = vld [vmem:[%s3 + $0x3c8] sm:$0xf]
    %v3172 = vld [vmem:[%s3 + $0x3cc] sm:$0xff]
    %v3173 = vld [vmem:[%s3 + $0x3d4] sm:$0xf]
    %v3174 = vld [vmem:[%s3 + $0x3d8] sm:$0xff]
    %v3175 = vld [vmem:[%s3 + $0x3e0] sm:$0xf]
    %v3176 = vld [vmem:[%s3 + $0x3e4] sm:$0xff]
    %v3177 = vld [vmem:[%s3 + $0x3ec] sm:$0xf]
    %v3178 = vld [vmem:[%s3 + $0x3f0] sm:$0xff]
    %v3179 = vld [vmem:[%s3 + $0x3f8] sm:$0xf]
    %v3180 = vld [vmem:[%s3 + $0x3fc] sm:$0xff]
    %v3181 = vld [vmem:[%s3 + $0x404] sm:$0xf]
    %v3182 = vld [vmem:[%s3 + $0x408] sm:$0xff]
    %v3183 = vld [vmem:[%s3 + $0x410] sm:$0xf]
    %v3184 = vld [vmem:[%s3 + $0x414] sm:$0xff]
    %v3185 = vld [vmem:[%s3 + $0x41c] sm:$0xf]
    %v3186 = vld [vmem:[%s3 + $0x420] sm:$0xff]
    %v3187 = vld [vmem:[%s3 + $0x428] sm:$0xf]
    %v3188 = vld [vmem:[%s3 + $0x42c] sm:$0xff]
    %v3189 = vld [vmem:[%s3 + $0x434] sm:$0xf]
    %v3190 = vld [vmem:[%s3 + $0x438] sm:$0xff]
    %v3191 = vld [vmem:[%s3 + $0x440] sm:$0xf]
    %v3192 = vld [vmem:[%s3 + $0x444] sm:$0xff]
    %v3193 = vld [vmem:[%s3 + $0x44c] sm:$0xf]
    %v3194 = vld [vmem:[%s3 + $0x450] sm:$0xff]
    %v3195 = vld [vmem:[%s3 + $0x458] sm:$0xf]
    %v3196 = vld [vmem:[%s3 + $0x45c] sm:$0xff]
    %v3197 = vld [vmem:[%s3 + $0x464] sm:$0xf]
    %v3198 = vld [vmem:[%s3 + $0x468] sm:$0xff]
    %v3199 = vld [vmem:[%s3 + $0x470] sm:$0xf]
    %v3200 = vld [vmem:[%s3 + $0x474] sm:$0xff]
    %v3201 = vld [vmem:[%s3 + $0x47c] sm:$0xf]
    %v3202 = vld [vmem:[%s3 + $0x480] sm:$0xff]
    %v3203 = vld [vmem:[%s3 + $0x488] sm:$0xf]
    %v3204 = vld [vmem:[%s3 + $0x48c] sm:$0xff]
    %v3205 = vld [vmem:[%s3 + $0x494] sm:$0xf]
    %v3206 = vld [vmem:[%s3 + $0x498] sm:$0xff]
    %v3207 = vld [vmem:[%s3 + $0x4a0] sm:$0xf]
    %v3208 = vld [vmem:[%s3 + $0x4a4] sm:$0xff]
    %v3209 = vld [vmem:[%s3 + $0x4ac] sm:$0xf]
    %v3210 = vld [vmem:[#allocation8] sm:$0x7]
    %v3212 = vlaneseq
    %v3213 = vshrl.u32 %v3212, 7
    %v3214 = vsub.s32 0, %v3213
    %v3215 = vrot.slane %v3210, %v3214
    %v3216 = vlaneseq
    %v3217 = vshrl.u32 %v3216, 7
    %v3218 = vsub.s32 1, %v3217
    %v3219 = vrot.slane %v3210, %v3218
    %v3220 = vlaneseq
    %v3221 = vshrl.u32 %v3220, 7
    %v3222 = vsub.s32 2, %v3221
    %v3223 = vrot.slane %v3210, %v3222
    %v3427 = vunpack.c.l.b16 %v3010
    %v3428 = vunpack.c.h.b16 %v3010
    %v3429 = vunpack.c.l.b16 %v3011
    %v3430 = vunpack.c.l.b16 %v3012
    %v3431 = vunpack.c.h.b16 %v3012
    %v3432 = vunpack.c.l.b16 %v3013
    %v3433 = vunpack.c.l.b16 %v3014
    %v3434 = vunpack.c.h.b16 %v3014
    %v3435 = vunpack.c.l.b16 %v3015
    %v3436 = vunpack.c.l.b16 %v3016
    %v3437 = vunpack.c.h.b16 %v3016
    %v3438 = vunpack.c.l.b16 %v3017
    %v3439 = vunpack.c.l.b16 %v3018
    %v3440 = vunpack.c.h.b16 %v3018
    %v3441 = vunpack.c.l.b16 %v3019
    %v3442 = vunpack.c.l.b16 %v3020
    %v3443 = vunpack.c.h.b16 %v3020
    %v3444 = vunpack.c.l.b16 %v3021
    %v3445 = vunpack.c.l.b16 %v3022
    %v3446 = vunpack.c.h.b16 %v3022
    %v3447 = vunpack.c.l.b16 %v3023
    %v3448 = vunpack.c.l.b16 %v3024
    %v3449 = vunpack.c.h.b16 %v3024
    %v3450 = vunpack.c.l.b16 %v3025
    %v3451 = vunpack.c.l.b16 %v3026
    %v3452 = vunpack.c.h.b16 %v3026
    %v3453 = vunpack.c.l.b16 %v3027
    %v3454 = vunpack.c.l.b16 %v3028
    %v3455 = vunpack.c.h.b16 %v3028
    %v3456 = vunpack.c.l.b16 %v3029
    %v3457 = vunpack.c.l.b16 %v3030
    %v3458 = vunpack.c.h.b16 %v3030
    %v3459 = vunpack.c.l.b16 %v3031
    %v3460 = vunpack.c.l.b16 %v3032
    %v3461 = vunpack.c.h.b16 %v3032
    %v3462 = vunpack.c.l.b16 %v3033
    %v3463 = vunpack.c.l.b16 %v3034
    %v3464 = vunpack.c.h.b16 %v3034
    %v3465 = vunpack.c.l.b16 %v3035
    %v3466 = vunpack.c.l.b16 %v3036
    %v3467 = vunpack.c.h.b16 %v3036
    %v3468 = vunpack.c.l.b16 %v3037
    %v3469 = vunpack.c.l.b16 %v3038
    %v3470 = vunpack.c.h.b16 %v3038
    %v3471 = vunpack.c.l.b16 %v3039
    %v3472 = vunpack.c.l.b16 %v3040
    %v3473 = vunpack.c.h.b16 %v3040
    %v3474 = vunpack.c.l.b16 %v3041
    %v3475 = vunpack.c.l.b16 %v3042
    %v3476 = vunpack.c.h.b16 %v3042
    %v3477 = vunpack.c.l.b16 %v3043
    %v3478 = vunpack.c.l.b16 %v3044
    %v3479 = vunpack.c.h.b16 %v3044
    %v3480 = vunpack.c.l.b16 %v3045
    %v3481 = vunpack.c.l.b16 %v3046
    %v3482 = vunpack.c.h.b16 %v3046
    %v3483 = vunpack.c.l.b16 %v3047
    %v3484 = vunpack.c.l.b16 %v3048
    %v3485 = vunpack.c.h.b16 %v3048
    %v3486 = vunpack.c.l.b16 %v3049
    %v3487 = vunpack.c.l.b16 %v3050
    %v3488 = vunpack.c.h.b16 %v3050
    %v3489 = vunpack.c.l.b16 %v3051
    %v3490 = vunpack.c.l.b16 %v3052
    %v3491 = vunpack.c.h.b16 %v3052
    %v3492 = vunpack.c.l.b16 %v3053
    %v3493 = vunpack.c.l.b16 %v3054
    %v3494 = vunpack.c.h.b16 %v3054
    %v3495 = vunpack.c.l.b16 %v3055
    %v3496 = vunpack.c.l.b16 %v3056
    %v3497 = vunpack.c.h.b16 %v3056
    %v3498 = vunpack.c.l.b16 %v3057
    %v3499 = vunpack.c.l.b16 %v3058
    %v3500 = vunpack.c.h.b16 %v3058
    %v3501 = vunpack.c.l.b16 %v3059
    %v3502 = vunpack.c.l.b16 %v3060
    %v3503 = vunpack.c.h.b16 %v3060
    %v3504 = vunpack.c.l.b16 %v3061
    %v3505 = vunpack.c.l.b16 %v3062
    %v3506 = vunpack.c.h.b16 %v3062
    %v3507 = vunpack.c.l.b16 %v3063
    %v3508 = vunpack.c.l.b16 %v3064
    %v3509 = vunpack.c.h.b16 %v3064
    %v3510 = vunpack.c.l.b16 %v3065
    %v3511 = vunpack.c.l.b16 %v3066
    %v3512 = vunpack.c.h.b16 %v3066
    %v3513 = vunpack.c.l.b16 %v3067
    %v3514 = vunpack.c.l.b16 %v3068
    %v3515 = vunpack.c.h.b16 %v3068
    %v3516 = vunpack.c.l.b16 %v3069
    %v3517 = vunpack.c.l.b16 %v3070
    %v3518 = vunpack.c.h.b16 %v3070
    %v3519 = vunpack.c.l.b16 %v3071
    %v3520 = vunpack.c.l.b16 %v3072
    %v3521 = vunpack.c.h.b16 %v3072
    %v3522 = vunpack.c.l.b16 %v3073
    %v3523 = vunpack.c.l.b16 %v3074
    %v3524 = vunpack.c.h.b16 %v3074
    %v3525 = vunpack.c.l.b16 %v3075
    %v3526 = vunpack.c.l.b16 %v3076
    %v3527 = vunpack.c.h.b16 %v3076
    %v3528 = vunpack.c.l.b16 %v3077
    %v3529 = vunpack.c.l.b16 %v3078
    %v3530 = vunpack.c.h.b16 %v3078
    %v3531 = vunpack.c.l.b16 %v3079
    %v3532 = vunpack.c.l.b16 %v3080
    %v3533 = vunpack.c.h.b16 %v3080
    %v3534 = vunpack.c.l.b16 %v3081
    %v3535 = vunpack.c.l.b16 %v3082
    %v3536 = vunpack.c.h.b16 %v3082
    %v3537 = vunpack.c.l.b16 %v3083
    %v3538 = vunpack.c.l.b16 %v3084
    %v3539 = vunpack.c.h.b16 %v3084
    %v3540 = vunpack.c.l.b16 %v3085
    %v3541 = vunpack.c.l.b16 %v3086
    %v3542 = vunpack.c.h.b16 %v3086
    %v3543 = vunpack.c.l.b16 %v3087
    %v3544 = vunpack.c.l.b16 %v3088
    %v3545 = vunpack.c.h.b16 %v3088
    %v3546 = vunpack.c.l.b16 %v3089
    %v3547 = vunpack.c.l.b16 %v3090
    %v3548 = vunpack.c.h.b16 %v3090
    %v3549 = vunpack.c.l.b16 %v3091
    %v3550 = vunpack.c.l.b16 %v3092
    %v3551 = vunpack.c.h.b16 %v3092
    %v3552 = vunpack.c.l.b16 %v3093
    %v3553 = vunpack.c.l.b16 %v3094
    %v3554 = vunpack.c.h.b16 %v3094
    %v3555 = vunpack.c.l.b16 %v3095
    %v3556 = vunpack.c.l.b16 %v3096
    %v3557 = vunpack.c.h.b16 %v3096
    %v3558 = vunpack.c.l.b16 %v3097
    %v3559 = vunpack.c.l.b16 %v3098
    %v3560 = vunpack.c.h.b16 %v3098
    %v3561 = vunpack.c.l.b16 %v3099
    %v3562 = vunpack.c.l.b16 %v3100
    %v3563 = vunpack.c.h.b16 %v3100
    %v3564 = vunpack.c.l.b16 %v3101
    %v3565 = vunpack.c.l.b16 %v3102
    %v3566 = vunpack.c.h.b16 %v3102
    %v3567 = vunpack.c.l.b16 %v3103
    %v3568 = vunpack.c.l.b16 %v3104
    %v3569 = vunpack.c.h.b16 %v3104
    %v3570 = vunpack.c.l.b16 %v3105
    %v3571 = vunpack.c.l.b16 %v3106
    %v3572 = vunpack.c.h.b16 %v3106
    %v3573 = vunpack.c.l.b16 %v3107
    %v3574 = vunpack.c.l.b16 %v3108
    %v3575 = vunpack.c.h.b16 %v3108
    %v3576 = vunpack.c.l.b16 %v3109
    %v3577 = vunpack.c.l.b16 %v3110
    %v3578 = vunpack.c.h.b16 %v3110
    %v3579 = vunpack.c.l.b16 %v3111
    %v3580 = vunpack.c.l.b16 %v3112
    %v3581 = vunpack.c.h.b16 %v3112
    %v3582 = vunpack.c.l.b16 %v3113
    %v3583 = vunpack.c.l.b16 %v3114
    %v3584 = vunpack.c.h.b16 %v3114
    %v3585 = vunpack.c.l.b16 %v3115
    %v3586 = vunpack.c.l.b16 %v3116
    %v3587 = vunpack.c.h.b16 %v3116
    %v3588 = vunpack.c.l.b16 %v3117
    %v3589 = vunpack.c.l.b16 %v3118
    %v3590 = vunpack.c.h.b16 %v3118
    %v3591 = vunpack.c.l.b16 %v3119
    %v3592 = vunpack.c.l.b16 %v3120
    %v3593 = vunpack.c.h.b16 %v3120
    %v3594 = vunpack.c.l.b16 %v3121
    %v3595 = vunpack.c.l.b16 %v3122
    %v3596 = vunpack.c.h.b16 %v3122
    %v3597 = vunpack.c.l.b16 %v3123
    %v3598 = vunpack.c.l.b16 %v3124
    %v3599 = vunpack.c.h.b16 %v3124
    %v3600 = vunpack.c.l.b16 %v3125
    %v3601 = vunpack.c.l.b16 %v3126
    %v3602 = vunpack.c.h.b16 %v3126
    %v3603 = vunpack.c.l.b16 %v3127
    %v3604 = vunpack.c.l.b16 %v3128
    %v3605 = vunpack.c.h.b16 %v3128
    %v3606 = vunpack.c.l.b16 %v3129
    %v3607 = vunpack.c.l.b16 %v3130
    %v3608 = vunpack.c.h.b16 %v3130
    %v3609 = vunpack.c.l.b16 %v3131
    %v3610 = vunpack.c.l.b16 %v3132
    %v3611 = vunpack.c.h.b16 %v3132
    %v3612 = vunpack.c.l.b16 %v3133
    %v3613 = vunpack.c.l.b16 %v3134
    %v3614 = vunpack.c.h.b16 %v3134
    %v3615 = vunpack.c.l.b16 %v3135
    %v3616 = vunpack.c.l.b16 %v3136
    %v3617 = vunpack.c.h.b16 %v3136
    %v3618 = vunpack.c.l.b16 %v3137
    %v3619 = vunpack.c.l.b16 %v3138
    %v3620 = vunpack.c.h.b16 %v3138
    %v3621 = vunpack.c.l.b16 %v3139
    %v3622 = vunpack.c.l.b16 %v3140
    %v3623 = vunpack.c.h.b16 %v3140
    %v3624 = vunpack.c.l.b16 %v3141
    %v3625 = vunpack.c.l.b16 %v3142
    %v3626 = vunpack.c.h.b16 %v3142
    %v3627 = vunpack.c.l.b16 %v3143
    %v3628 = vunpack.c.l.b16 %v3144
    %v3629 = vunpack.c.h.b16 %v3144
    %v3630 = vunpack.c.l.b16 %v3145
    %v3631 = vunpack.c.l.b16 %v3146
    %v3632 = vunpack.c.h.b16 %v3146
    %v3633 = vunpack.c.l.b16 %v3147
    %v3634 = vunpack.c.l.b16 %v3148
    %v3635 = vunpack.c.h.b16 %v3148
    %v3636 = vunpack.c.l.b16 %v3149
    %v3637 = vunpack.c.l.b16 %v3150
    %v3638 = vunpack.c.h.b16 %v3150
    %v3639 = vunpack.c.l.b16 %v3151
    %v3640 = vunpack.c.l.b16 %v3152
    %v3641 = vunpack.c.h.b16 %v3152
    %v3642 = vunpack.c.l.b16 %v3153
    %v3643 = vunpack.c.l.b16 %v3154
    %v3644 = vunpack.c.h.b16 %v3154
    %v3645 = vunpack.c.l.b16 %v3155
    %v3646 = vunpack.c.l.b16 %v3156
    %v3647 = vunpack.c.h.b16 %v3156
    %v3648 = vunpack.c.l.b16 %v3157
    %v3649 = vunpack.c.l.b16 %v3158
    %v3650 = vunpack.c.h.b16 %v3158
    %v3651 = vunpack.c.l.b16 %v3159
    %v3652 = vunpack.c.l.b16 %v3160
    %v3653 = vunpack.c.h.b16 %v3160
    %v3654 = vunpack.c.l.b16 %v3161
    %v3655 = vunpack.c.l.b16 %v3162
    %v3656 = vunpack.c.h.b16 %v3162
    %v3657 = vunpack.c.l.b16 %v3163
    %v3658 = vunpack.c.l.b16 %v3164
    %v3659 = vunpack.c.h.b16 %v3164
    %v3660 = vunpack.c.l.b16 %v3165
    %v3661 = vunpack.c.l.b16 %v3166
    %v3662 = vunpack.c.h.b16 %v3166
    %v3663 = vunpack.c.l.b16 %v3167
    %v3664 = vunpack.c.l.b16 %v3168
    %v3665 = vunpack.c.h.b16 %v3168
    %v3666 = vunpack.c.l.b16 %v3169
    %v3667 = vunpack.c.l.b16 %v3170
    %v3668 = vunpack.c.h.b16 %v3170
    %v3669 = vunpack.c.l.b16 %v3171
    %v3670 = vunpack.c.l.b16 %v3172
    %v3671 = vunpack.c.h.b16 %v3172
    %v3672 = vunpack.c.l.b16 %v3173
    %v3673 = vunpack.c.l.b16 %v3174
    %v3674 = vunpack.c.h.b16 %v3174
    %v3675 = vunpack.c.l.b16 %v3175
    %v3676 = vunpack.c.l.b16 %v3176
    %v3677 = vunpack.c.h.b16 %v3176
    %v3678 = vunpack.c.l.b16 %v3177
    %v3679 = vunpack.c.l.b16 %v3178
    %v3680 = vunpack.c.h.b16 %v3178
    %v3681 = vunpack.c.l.b16 %v3179
    %v3682 = vunpack.c.l.b16 %v3180
    %v3683 = vunpack.c.h.b16 %v3180
    %v3684 = vunpack.c.l.b16 %v3181
    %v3685 = vunpack.c.l.b16 %v3182
    %v3686 = vunpack.c.h.b16 %v3182
    %v3687 = vunpack.c.l.b16 %v3183
    %v3688 = vunpack.c.l.b16 %v3184
    %v3689 = vunpack.c.h.b16 %v3184
    %v3690 = vunpack.c.l.b16 %v3185
    %v3691 = vunpack.c.l.b16 %v3186
    %v3692 = vunpack.c.h.b16 %v3186
    %v3693 = vunpack.c.l.b16 %v3187
    %v3694 = vunpack.c.l.b16 %v3188
    %v3695 = vunpack.c.h.b16 %v3188
    %v3696 = vunpack.c.l.b16 %v3189
    %v3697 = vunpack.c.l.b16 %v3190
    %v3698 = vunpack.c.h.b16 %v3190
    %v3699 = vunpack.c.l.b16 %v3191
    %v3700 = vunpack.c.l.b16 %v3192
    %v3701 = vunpack.c.h.b16 %v3192
    %v3702 = vunpack.c.l.b16 %v3193
    %v3703 = vunpack.c.l.b16 %v3194
    %v3704 = vunpack.c.h.b16 %v3194
    %v3705 = vunpack.c.l.b16 %v3195
    %v3706 = vunpack.c.l.b16 %v3196
    %v3707 = vunpack.c.h.b16 %v3196
    %v3708 = vunpack.c.l.b16 %v3197
    %v3709 = vunpack.c.l.b16 %v3198
    %v3710 = vunpack.c.h.b16 %v3198
    %v3711 = vunpack.c.l.b16 %v3199
    %v3712 = vunpack.c.l.b16 %v3200
    %v3713 = vunpack.c.h.b16 %v3200
    %v3714 = vunpack.c.l.b16 %v3201
    %v3715 = vunpack.c.l.b16 %v3202
    %v3716 = vunpack.c.h.b16 %v3202
    %v3717 = vunpack.c.l.b16 %v3203
    %v3718 = vunpack.c.l.b16 %v3204
    %v3719 = vunpack.c.h.b16 %v3204
    %v3720 = vunpack.c.l.b16 %v3205
    %v3721 = vunpack.c.l.b16 %v3206
    %v3722 = vunpack.c.h.b16 %v3206
    %v3723 = vunpack.c.l.b16 %v3207
    %v3724 = vunpack.c.l.b16 %v3208
    %v3725 = vunpack.c.h.b16 %v3208
    %v3726 = vunpack.c.l.b16 %v3209
    %v3727 = vpack.c.b16 %v3430, %v3427
    %v3728 = vpack.c.b16 %v3431, %v3428
    %v3729 = vpack.c.b16 %v3432, %v3429
    %v3730 = vpack.c.b16 %v3436, %v3433
    %v3731 = vpack.c.b16 %v3437, %v3434
    %v3732 = vpack.c.b16 %v3438, %v3435
    %v3733 = vpack.c.b16 %v3442, %v3439
    %v3734 = vpack.c.b16 %v3443, %v3440
    %v3735 = vpack.c.b16 %v3444, %v3441
    %v3736 = vpack.c.b16 %v3448, %v3445
    %v3737 = vpack.c.b16 %v3449, %v3446
    %v3738 = vpack.c.b16 %v3450, %v3447
    %v3739 = vpack.c.b16 %v3454, %v3451
    %v3740 = vpack.c.b16 %v3455, %v3452
    %v3741 = vpack.c.b16 %v3456, %v3453
    %v3742 = vpack.c.b16 %v3460, %v3457
    %v3743 = vpack.c.b16 %v3461, %v3458
    %v3744 = vpack.c.b16 %v3462, %v3459
    %v3745 = vpack.c.b16 %v3466, %v3463
    %v3746 = vpack.c.b16 %v3467, %v3464
    %v3747 = vpack.c.b16 %v3468, %v3465
    %v3748 = vpack.c.b16 %v3472, %v3469
    %v3749 = vpack.c.b16 %v3473, %v3470
    %v3750 = vpack.c.b16 %v3474, %v3471
    %v3751 = vpack.c.b16 %v3478, %v3475
    %v3752 = vpack.c.b16 %v3479, %v3476
    %v3753 = vpack.c.b16 %v3480, %v3477
    %v3754 = vpack.c.b16 %v3484, %v3481
    %v3755 = vpack.c.b16 %v3485, %v3482
    %v3756 = vpack.c.b16 %v3486, %v3483
    %v3757 = vpack.c.b16 %v3490, %v3487
    %v3758 = vpack.c.b16 %v3491, %v3488
    %v3759 = vpack.c.b16 %v3492, %v3489
    %v3760 = vpack.c.b16 %v3496, %v3493
    %v3761 = vpack.c.b16 %v3497, %v3494
    %v3762 = vpack.c.b16 %v3498, %v3495
    %v3763 = vpack.c.b16 %v3502, %v3499
    %v3764 = vpack.c.b16 %v3503, %v3500
    %v3765 = vpack.c.b16 %v3504, %v3501
    %v3766 = vpack.c.b16 %v3508, %v3505
    %v3767 = vpack.c.b16 %v3509, %v3506
    %v3768 = vpack.c.b16 %v3510, %v3507
    %v3769 = vpack.c.b16 %v3514, %v3511
    %v3770 = vpack.c.b16 %v3515, %v3512
    %v3771 = vpack.c.b16 %v3516, %v3513
    %v3772 = vpack.c.b16 %v3520, %v3517
    %v3773 = vpack.c.b16 %v3521, %v3518
    %v3774 = vpack.c.b16 %v3522, %v3519
    %v3775 = vpack.c.b16 %v3526, %v3523
    %v3776 = vpack.c.b16 %v3527, %v3524
    %v3777 = vpack.c.b16 %v3528, %v3525
    %v3778 = vpack.c.b16 %v3532, %v3529
    %v3779 = vpack.c.b16 %v3533, %v3530
    %v3780 = vpack.c.b16 %v3534, %v3531
    %v3781 = vpack.c.b16 %v3538, %v3535
    %v3782 = vpack.c.b16 %v3539, %v3536
    %v3783 = vpack.c.b16 %v3540, %v3537
    %v3784 = vpack.c.b16 %v3544, %v3541
    %v3785 = vpack.c.b16 %v3545, %v3542
    %v3786 = vpack.c.b16 %v3546, %v3543
    %v3787 = vpack.c.b16 %v3550, %v3547
    %v3788 = vpack.c.b16 %v3551, %v3548
    %v3789 = vpack.c.b16 %v3552, %v3549
    %v3790 = vpack.c.b16 %v3556, %v3553
    %v3791 = vpack.c.b16 %v3557, %v3554
    %v3792 = vpack.c.b16 %v3558, %v3555
    %v3793 = vpack.c.b16 %v3562, %v3559
    %v3794 = vpack.c.b16 %v3563, %v3560
    %v3795 = vpack.c.b16 %v3564, %v3561
    %v3796 = vpack.c.b16 %v3568, %v3565
    %v3797 = vpack.c.b16 %v3569, %v3566
    %v3798 = vpack.c.b16 %v3570, %v3567
    %v3799 = vpack.c.b16 %v3574, %v3571
    %v3800 = vpack.c.b16 %v3575, %v3572
    %v3801 = vpack.c.b16 %v3576, %v3573
    %v3802 = vpack.c.b16 %v3580, %v3577
    %v3803 = vpack.c.b16 %v3581, %v3578
    %v3804 = vpack.c.b16 %v3582, %v3579
    %v3805 = vpack.c.b16 %v3586, %v3583
    %v3806 = vpack.c.b16 %v3587, %v3584
    %v3807 = vpack.c.b16 %v3588, %v3585
    %v3808 = vpack.c.b16 %v3592, %v3589
    %v3809 = vpack.c.b16 %v3593, %v3590
    %v3810 = vpack.c.b16 %v3594, %v3591
    %v3811 = vpack.c.b16 %v3598, %v3595
    %v3812 = vpack.c.b16 %v3599, %v3596
    %v3813 = vpack.c.b16 %v3600, %v3597
    %v3814 = vpack.c.b16 %v3604, %v3601
    %v3815 = vpack.c.b16 %v3605, %v3602
    %v3816 = vpack.c.b16 %v3606, %v3603
    %v3817 = vpack.c.b16 %v3610, %v3607
    %v3818 = vpack.c.b16 %v3611, %v3608
    %v3819 = vpack.c.b16 %v3612, %v3609
    %v3820 = vpack.c.b16 %v3616, %v3613
    %v3821 = vpack.c.b16 %v3617, %v3614
    %v3822 = vpack.c.b16 %v3618, %v3615
    %v3823 = vpack.c.b16 %v3622, %v3619
    %v3824 = vpack.c.b16 %v3623, %v3620
    %v3825 = vpack.c.b16 %v3624, %v3621
    %v3826 = vpack.c.b16 %v3628, %v3625
    %v3827 = vpack.c.b16 %v3629, %v3626
    %v3828 = vpack.c.b16 %v3630, %v3627
    %v3829 = vpack.c.b16 %v3634, %v3631
    %v3830 = vpack.c.b16 %v3635, %v3632
    %v3831 = vpack.c.b16 %v3636, %v3633
    %v3832 = vpack.c.b16 %v3640, %v3637
    %v3833 = vpack.c.b16 %v3641, %v3638
    %v3834 = vpack.c.b16 %v3642, %v3639
    %v3835 = vpack.c.b16 %v3646, %v3643
    %v3836 = vpack.c.b16 %v3647, %v3644
    %v3837 = vpack.c.b16 %v3648, %v3645
    %v3838 = vpack.c.b16 %v3652, %v3649
    %v3839 = vpack.c.b16 %v3653, %v3650
    %v3840 = vpack.c.b16 %v3654, %v3651
    %v3841 = vpack.c.b16 %v3658, %v3655
    %v3842 = vpack.c.b16 %v3659, %v3656
    %v3843 = vpack.c.b16 %v3660, %v3657
    %v3844 = vpack.c.b16 %v3664, %v3661
    %v3845 = vpack.c.b16 %v3665, %v3662
    %v3846 = vpack.c.b16 %v3666, %v3663
    %v3847 = vpack.c.b16 %v3670, %v3667
    %v3848 = vpack.c.b16 %v3671, %v3668
    %v3849 = vpack.c.b16 %v3672, %v3669
    %v3850 = vpack.c.b16 %v3676, %v3673
    %v3851 = vpack.c.b16 %v3677, %v3674
    %v3852 = vpack.c.b16 %v3678, %v3675
    %v3853 = vpack.c.b16 %v3682, %v3679
    %v3854 = vpack.c.b16 %v3683, %v3680
    %v3855 = vpack.c.b16 %v3684, %v3681
    %v3856 = vpack.c.b16 %v3688, %v3685
    %v3857 = vpack.c.b16 %v3689, %v3686
    %v3858 = vpack.c.b16 %v3690, %v3687
    %v3859 = vpack.c.b16 %v3694, %v3691
    %v3860 = vpack.c.b16 %v3695, %v3692
    %v3861 = vpack.c.b16 %v3696, %v3693
    %v3862 = vpack.c.b16 %v3700, %v3697
    %v3863 = vpack.c.b16 %v3701, %v3698
    %v3864 = vpack.c.b16 %v3702, %v3699
    %v3865 = vpack.c.b16 %v3706, %v3703
    %v3866 = vpack.c.b16 %v3707, %v3704
    %v3867 = vpack.c.b16 %v3708, %v3705
    %v3868 = vpack.c.b16 %v3712, %v3709
    %v3869 = vpack.c.b16 %v3713, %v3710
    %v3870 = vpack.c.b16 %v3714, %v3711
    %v3871 = vpack.c.b16 %v3718, %v3715
    %v3872 = vpack.c.b16 %v3719, %v3716
    %v3873 = vpack.c.b16 %v3720, %v3717
    %v3874 = vpack.c.b16 %v3724, %v3721
    %v3875 = vpack.c.b16 %v3725, %v3722
    %v3876 = vpack.c.b16 %v3726, %v3723
    %vm4027 = vcmask 261120
    %v4029 = vsel %vm4027, %v3009, 0
    %4031 = vmatprep.subr.bf16.mxu0 %v3749
    %4032 = vmatpush1.bf16.msra.mxu0 %v3748
    %4033 = vmatprep.subr.bf16.mxu0 %v3746
    %4034 = vmatpush1.bf16.msra.mxu0 %v3745
    %4035 = vmatprep.subr.bf16.mxu0 %v3743
    %4036 = vmatpush1.bf16.msra.mxu0 %v3742
    %4037 = vmatprep.subr.bf16.mxu0 %v3740
    %4038 = vmatpush1.bf16.msra.mxu0 %v3739
    %4039 = vmatprep.subr.bf16.mxu0 %v3737
    %4040 = vmatpush1.bf16.msra.mxu0 %v3736
    %4041 = vmatprep.subr.bf16.mxu0 %v3734
    %4042 = vmatpush1.bf16.msra.mxu0 %v3733
    %4043 = vmatprep.subr.bf16.mxu0 %v3731
    %4044 = vmatpush1.bf16.msra.mxu0 %v3730
    %4045 = vmatprep.subr.bf16.mxu0 %v3728
    %4046 = vmatpush1.bf16.msra.mxu0 %v3727
    %4047 = vmatprep.subr.bf16.mxu0 %v3773
    %4048 = vmatpush2.bf16.msra.mxu0 %v3772
    %4049 = vmatprep.subr.bf16.mxu0 %v3770
    %4050 = vmatpush2.bf16.msra.mxu0 %v3769
    %4051 = vmatprep.subr.bf16.mxu0 %v3767
    %4052 = vmatpush2.bf16.msra.mxu0 %v3766
    %4053 = vmatprep.subr.bf16.mxu0 %v3764
    %4054 = vmatpush2.bf16.msra.mxu0 %v3763
    %4055 = vmatprep.subr.bf16.mxu0 %v3761
    %4056 = vmatpush2.bf16.msra.mxu0 %v3760
    %4057 = vmatprep.subr.bf16.mxu0 %v3758
    %4058 = vmatpush2.bf16.msra.mxu0 %v3757
    %4059 = vmatprep.subr.bf16.mxu0 %v3755
    %4060 = vmatpush2.bf16.msra.mxu0 %v3754
    %4061 = vmatprep.subr.bf16.mxu0 %v3752
    %4062 = vmatpush2.bf16.msra.mxu0 %v3751
    %4063 = vmatprep.mubr.bf16.mxu0 %v3004
    %4064 = vmatmul.mubr.bf16.gmra.mxu0 %v3003
    %v4065 = vpop.f32.mrf.mxu0
    %v4066 = vadd.f32 %v3215, %v4065
    %v4067 = vpop.f32.mrf.mxu0
    %v4068 = vadd.f32 %v3219, %v4067
    %v4069 = vpop.f32.mrf.mxu0
    %v4070 = vpop.f32.mrf.mxu0
    %4071 = vdwg.mxu0
    %4072 = vmatprep.subr.bf16.mxu0 %v3797
    %4073 = vmatpush1.bf16.msra.mxu0 %v3796
    %4074 = vmatprep.subr.bf16.mxu0 %v3794
    %4075 = vmatpush1.bf16.msra.mxu0 %v3793
    %4076 = vmatprep.subr.bf16.mxu0 %v3791
    %4077 = vmatpush1.bf16.msra.mxu0 %v3790
    %4078 = vmatprep.subr.bf16.mxu0 %v3788
    %4079 = vmatpush1.bf16.msra.mxu0 %v3787
    %4080 = vmatprep.subr.bf16.mxu0 %v3785
    %4081 = vmatpush1.bf16.msra.mxu0 %v3784
    %4082 = vmatprep.subr.bf16.mxu0 %v3782
    %4083 = vmatpush1.bf16.msra.mxu0 %v3781
    %4084 = vmatprep.subr.bf16.mxu0 %v3779
    %4085 = vmatpush1.bf16.msra.mxu0 %v3778
    %4086 = vmatprep.subr.bf16.mxu0 %v3776
    %4087 = vmatpush1.bf16.msra.mxu0 %v3775
    %4088 = vmatprep.subr.bf16.mxu0 %v3821
    %4089 = vmatpush2.bf16.msra.mxu0 %v3820
    %4090 = vmatprep.subr.bf16.mxu0 %v3818
    %4091 = vmatpush2.bf16.msra.mxu0 %v3817
    %4092 = vmatprep.subr.bf16.mxu0 %v3815
    %4093 = vmatpush2.bf16.msra.mxu0 %v3814
    %4094 = vmatprep.subr.bf16.mxu0 %v3812
    %4095 = vmatpush2.bf16.msra.mxu0 %v3811
    %4096 = vmatprep.subr.bf16.mxu0 %v3809
    %4097 = vmatpush2.bf16.msra.mxu0 %v3808
    %4098 = vmatprep.subr.bf16.mxu0 %v3806
    %4099 = vmatpush2.bf16.msra.mxu0 %v3805
    %4100 = vmatprep.subr.bf16.mxu0 %v3803
    %4101 = vmatpush2.bf16.msra.mxu0 %v3802
    %4102 = vmatprep.subr.bf16.mxu0 %v3800
    %4103 = vmatpush2.bf16.msra.mxu0 %v3799
    %4104 = vmatprep.mubr.bf16.mxu0 %v3006
    %4105 = vmatmul.mubr.bf16.gmra.mxu0 %v3005
    %v4106 = vpop.f32.mrf.mxu0
    %v4107 = vadd.f32 %v4066, %v4106
    %v4108 = vpop.f32.mrf.mxu0
    %v4109 = vadd.f32 %v4068, %v4108
    %v4110 = vpop.f32.mrf.mxu0
    %v4111 = vpop.f32.mrf.mxu0
    %4112 = vdwg.mxu0
    %4113 = vmatprep.subr.bf16.mxu0 %v3845
    %4114 = vmatpush1.bf16.msra.mxu0 %v3844
    %4115 = vmatprep.subr.bf16.mxu0 %v3842
    %4116 = vmatpush1.bf16.msra.mxu0 %v3841
    %4117 = vmatprep.subr.bf16.mxu0 %v3839
    %4118 = vmatpush1.bf16.msra.mxu0 %v3838
    %4119 = vmatprep.subr.bf16.mxu0 %v3836
    %4120 = vmatpush1.bf16.msra.mxu0 %v3835
    %4121 = vmatprep.subr.bf16.mxu0 %v3833
    %4122 = vmatpush1.bf16.msra.mxu0 %v3832
    %4123 = vmatprep.subr.bf16.mxu0 %v3830
    %4124 = vmatpush1.bf16.msra.mxu0 %v3829
    %4125 = vmatprep.subr.bf16.mxu0 %v3827
    %4126 = vmatpush1.bf16.msra.mxu0 %v3826
    %4127 = vmatprep.subr.bf16.mxu0 %v3824
    %4128 = vmatpush1.bf16.msra.mxu0 %v3823
    %4129 = vmatprep.subr.bf16.mxu0 %v3869
    %4130 = vmatpush2.bf16.msra.mxu0 %v3868
    %4131 = vmatprep.subr.bf16.mxu0 %v3866
    %4132 = vmatpush2.bf16.msra.mxu0 %v3865
    %4133 = vmatprep.subr.bf16.mxu0 %v3863
    %4134 = vmatpush2.bf16.msra.mxu0 %v3862
    %4135 = vmatprep.subr.bf16.mxu0 %v3860
    %4136 = vmatpush2.bf16.msra.mxu0 %v3859
    %4137 = vmatprep.subr.bf16.mxu0 %v3857
    %4138 = vmatpush2.bf16.msra.mxu0 %v3856
    %4139 = vmatprep.subr.bf16.mxu0 %v3854
    %4140 = vmatpush2.bf16.msra.mxu0 %v3853
    %4141 = vmatprep.subr.bf16.mxu0 %v3851
    %4142 = vmatpush2.bf16.msra.mxu0 %v3850
    %4143 = vmatprep.subr.bf16.mxu0 %v3848
    %4144 = vmatpush2.bf16.msra.mxu0 %v3847
    %4145 = vmatprep.mubr.bf16.mxu0 %v3008
    %4146 = vmatmul.mubr.bf16.gmra.mxu0 %v3007
    %v4147 = vpop.f32.mrf.mxu0
    %v4148 = vadd.f32 %v4107, %v4147
    %v4149 = vpop.f32.mrf.mxu0
    %v4150 = vadd.f32 %v4109, %v4149
    %v4151 = vpop.f32.mrf.mxu0
    %v4152 = vpop.f32.mrf.mxu0
    %4153 = vdwg.mxu0
    %4154 = vmatprep.subr.bf16.mxu0 0
    %4155 = vmatpush1.bf16.msra.mxu0 0
    %4156 = vmatprep.subr.bf16.mxu0 0
    %4157 = vmatpush1.bf16.msra.mxu0 0
    %4158 = vmatprep.subr.bf16.mxu0 0
    %4159 = vmatpush1.bf16.msra.mxu0 0
    %4160 = vmatprep.subr.bf16.mxu0 0
    %4161 = vmatpush1.bf16.msra.mxu0 0
    %4162 = vmatprep.subr.bf16.mxu0 0
    %4163 = vmatpush1.bf16.msra.mxu0 0
    %4164 = vmatprep.subr.bf16.mxu0 0
    %4165 = vmatpush1.bf16.msra.mxu0 0
    %4166 = vmatprep.subr.bf16.mxu0 %v3875
    %4167 = vmatpush1.bf16.msra.mxu0 %v3874
    %4168 = vmatprep.subr.bf16.mxu0 %v3872
    %4169 = vmatpush1.bf16.msra.mxu0 %v3871
    %4170 = vmatprep.subr.bf16.mxu0 0
    %4171 = vmatpush2.bf16.msra.mxu0 0
    %4172 = vmatprep.subr.bf16.mxu0 0
    %4173 = vmatpush2.bf16.msra.mxu0 0
    %4174 = vmatprep.subr.bf16.mxu0 0
    %4175 = vmatpush2.bf16.msra.mxu0 0
    %4176 = vmatprep.subr.bf16.mxu0 0
    %4177 = vmatpush2.bf16.msra.mxu0 0
    %4178 = vmatprep.subr.bf16.mxu0 0
    %4179 = vmatpush2.bf16.msra.mxu0 0
    %4180 = vmatprep.subr.bf16.mxu0 0
    %4181 = vmatpush2.bf16.msra.mxu0 0
    %4182 = vmatprep.subr.bf16.mxu0 0
    %4183 = vmatpush2.bf16.msra.mxu0 0
    %4184 = vmatprep.subr.bf16.mxu0 0
    %4185 = vmatpush2.bf16.msra.mxu0 0
    %4186 = vmatprep.mubr.bf16.mxu0 0
    %4187 = vmatmul.mubr.bf16.gmra.mxu0 %v4029
    %v4188 = vpop.f32.mrf.mxu0
    %v4189 = vadd.f32 %v4148, %v4188
    %v4190 = vpop.f32.mrf.mxu0
    %v4191 = vadd.f32 %v4150, %v4190
    %v4192 = vpop.f32.mrf.mxu0
    %v4193 = vpop.f32.mrf.mxu0
    %4194 = vdwg.mxu0
    %4195 = vmatprep.subr.bf16.mxu0 0
    %4196 = vmatpush1.bf16.msra.mxu0 %v3750
    %4197 = vmatprep.subr.bf16.mxu0 0
    %4198 = vmatpush1.bf16.msra.mxu0 %v3747
    %4199 = vmatprep.subr.bf16.mxu0 0
    %4200 = vmatpush1.bf16.msra.mxu0 %v3744
    %4201 = vmatprep.subr.bf16.mxu0 0
    %4202 = vmatpush1.bf16.msra.mxu0 %v3741
    %4203 = vmatprep.subr.bf16.mxu0 0
    %4204 = vmatpush1.bf16.msra.mxu0 %v3738
    %4205 = vmatprep.subr.bf16.mxu0 0
    %4206 = vmatpush1.bf16.msra.mxu0 %v3735
    %4207 = vmatprep.subr.bf16.mxu0 0
    %4208 = vmatpush1.bf16.msra.mxu0 %v3732
    %4209 = vmatprep.subr.bf16.mxu0 0
    %4210 = vmatpush1.bf16.msra.mxu0 %v3729
    %4211 = vmatprep.subr.bf16.mxu0 0
    %4212 = vmatpush2.bf16.msra.mxu0 %v3774
    %4213 = vmatprep.subr.bf16.mxu0 0
    %4214 = vmatpush2.bf16.msra.mxu0 %v3771
    %4215 = vmatprep.subr.bf16.mxu0 0
    %4216 = vmatpush2.bf16.msra.mxu0 %v3768
    %4217 = vmatprep.subr.bf16.mxu0 0
    %4218 = vmatpush2.bf16.msra.mxu0 %v3765
    %4219 = vmatprep.subr.bf16.mxu0 0
    %4220 = vmatpush2.bf16.msra.mxu0 %v3762
    %4221 = vmatprep.subr.bf16.mxu0 0
    %4222 = vmatpush2.bf16.msra.mxu0 %v3759
    %4223 = vmatprep.subr.bf16.mxu0 0
    %4224 = vmatpush2.bf16.msra.mxu0 %v3756
    %4225 = vmatprep.subr.bf16.mxu0 0
    %4226 = vmatpush2.bf16.msra.mxu0 %v3753
    %4227 = vmatprep.mubr.bf16.mxu0 %v3004
    %4228 = vmatmul.mubr.bf16.gmra.mxu0 %v3003
    %v4229 = vpop.f32.mrf.mxu0
    %v4230 = vadd.f32 %v3223, %v4229
    %v4231 = vpop.f32.mrf.mxu0
    %v4232 = vpop.f32.mrf.mxu0
    %v4233 = vpop.f32.mrf.mxu0
    %4234 = vdwg.mxu0
    %4235 = vmatprep.subr.bf16.mxu0 0
    %4236 = vmatpush1.bf16.msra.mxu0 %v3798
    %4237 = vmatprep.subr.bf16.mxu0 0
    %4238 = vmatpush1.bf16.msra.mxu0 %v3795
    %4239 = vmatprep.subr.bf16.mxu0 0
    %4240 = vmatpush1.bf16.msra.mxu0 %v3792
    %4241 = vmatprep.subr.bf16.mxu0 0
    %4242 = vmatpush1.bf16.msra.mxu0 %v3789
    %4243 = vmatprep.subr.bf16.mxu0 0
    %4244 = vmatpush1.bf16.msra.mxu0 %v3786
    %4245 = vmatprep.subr.bf16.mxu0 0
    %4246 = vmatpush1.bf16.msra.mxu0 %v3783
    %4247 = vmatprep.subr.bf16.mxu0 0
    %4248 = vmatpush1.bf16.msra.mxu0 %v3780
    %4249 = vmatprep.subr.bf16.mxu0 0
    %4250 = vmatpush1.bf16.msra.mxu0 %v3777
    %4251 = vmatprep.subr.bf16.mxu0 0
    %4252 = vmatpush2.bf16.msra.mxu0 %v3822
    %4253 = vmatprep.subr.bf16.mxu0 0
    %4254 = vmatpush2.bf16.msra.mxu0 %v3819
    %4255 = vmatprep.subr.bf16.mxu0 0
    %4256 = vmatpush2.bf16.msra.mxu0 %v3816
    %4257 = vmatprep.subr.bf16.mxu0 0
    %4258 = vmatpush2.bf16.msra.mxu0 %v3813
    %4259 = vmatprep.subr.bf16.mxu0 0
    %4260 = vmatpush2.bf16.msra.mxu0 %v3810
    %4261 = vmatprep.subr.bf16.mxu0 0
    %4262 = vmatpush2.bf16.msra.mxu0 %v3807
    %4263 = vmatprep.subr.bf16.mxu0 0
    %4264 = vmatpush2.bf16.msra.mxu0 %v3804
    %4265 = vmatprep.subr.bf16.mxu0 0
    %4266 = vmatpush2.bf16.msra.mxu0 %v3801
    %4267 = vmatprep.mubr.bf16.mxu0 %v3006
    %4268 = vmatmul.mubr.bf16.gmra.mxu0 %v3005
    %v4269 = vpop.f32.mrf.mxu0
    %v4270 = vadd.f32 %v4230, %v4269
    %v4271 = vpop.f32.mrf.mxu0
    %v4272 = vpop.f32.mrf.mxu0
    %v4273 = vpop.f32.mrf.mxu0
    %4274 = vdwg.mxu0
    %4275 = vmatprep.subr.bf16.mxu0 0
    %4276 = vmatpush1.bf16.msra.mxu0 %v3846
    %4277 = vmatprep.subr.bf16.mxu0 0
    %4278 = vmatpush1.bf16.msra.mxu0 %v3843
    %4279 = vmatprep.subr.bf16.mxu0 0
    %4280 = vmatpush1.bf16.msra.mxu0 %v3840
    %4281 = vmatprep.subr.bf16.mxu0 0
    %4282 = vmatpush1.bf16.msra.mxu0 %v3837
    %4283 = vmatprep.subr.bf16.mxu0 0
    %4284 = vmatpush1.bf16.msra.mxu0 %v3834
    %4285 = vmatprep.subr.bf16.mxu0 0
    %4286 = vmatpush1.bf16.msra.mxu0 %v3831
    %4287 = vmatprep.subr.bf16.mxu0 0
    %4288 = vmatpush1.bf16.msra.mxu0 %v3828
    %4289 = vmatprep.subr.bf16.mxu0 0
    %4290 = vmatpush1.bf16.msra.mxu0 %v3825
    %4291 = vmatprep.subr.bf16.mxu0 0
    %4292 = vmatpush2.bf16.msra.mxu0 %v3870
    %4293 = vmatprep.subr.bf16.mxu0 0
    %4294 = vmatpush2.bf16.msra.mxu0 %v3867
    %4295 = vmatprep.subr.bf16.mxu0 0
    %4296 = vmatpush2.bf16.msra.mxu0 %v3864
    %4297 = vmatprep.subr.bf16.mxu0 0
    %4298 = vmatpush2.bf16.msra.mxu0 %v3861
    %4299 = vmatprep.subr.bf16.mxu0 0
    %4300 = vmatpush2.bf16.msra.mxu0 %v3858
    %4301 = vmatprep.subr.bf16.mxu0 0
    %4302 = vmatpush2.bf16.msra.mxu0 %v3855
    %4303 = vmatprep.subr.bf16.mxu0 0
    %4304 = vmatpush2.bf16.msra.mxu0 %v3852
    %4305 = vmatprep.subr.bf16.mxu0 0
    %4306 = vmatpush2.bf16.msra.mxu0 %v3849
    %4307 = vmatprep.mubr.bf16.mxu0 %v3008
    %4308 = vmatmul.mubr.bf16.gmra.mxu0 %v3007
    %v4309 = vpop.f32.mrf.mxu0
    %v4310 = vadd.f32 %v4270, %v4309
    %v4311 = vpop.f32.mrf.mxu0
    %v4312 = vpop.f32.mrf.mxu0
    %v4313 = vpop.f32.mrf.mxu0
    %4314 = vdwg.mxu0
    %4315 = vmatprep.subr.bf16.mxu0 0
    %4316 = vmatpush1.bf16.msra.mxu0 0
    %4317 = vmatprep.subr.bf16.mxu0 0
    %4318 = vmatpush1.bf16.msra.mxu0 0
    %4319 = vmatprep.subr.bf16.mxu0 0
    %4320 = vmatpush1.bf16.msra.mxu0 0
    %4321 = vmatprep.subr.bf16.mxu0 0
    %4322 = vmatpush1.bf16.msra.mxu0 0
    %4323 = vmatprep.subr.bf16.mxu0 0
    %4324 = vmatpush1.bf16.msra.mxu0 0
    %4325 = vmatprep.subr.bf16.mxu0 0
    %4326 = vmatpush1.bf16.msra.mxu0 0
    %4327 = vmatprep.subr.bf16.mxu0 0
    %4328 = vmatpush1.bf16.msra.mxu0 %v3876
    %4329 = vmatprep.subr.bf16.mxu0 0
    %4330 = vmatpush1.bf16.msra.mxu0 %v3873
    %4331 = vmatprep.subr.bf16.mxu0 0
    %4332 = vmatpush2.bf16.msra.mxu0 0
    %4333 = vmatprep.subr.bf16.mxu0 0
    %4334 = vmatpush2.bf16.msra.mxu0 0
    %4335 = vmatprep.subr.bf16.mxu0 0
    %4336 = vmatpush2.bf16.msra.mxu0 0
    %4337 = vmatprep.subr.bf16.mxu0 0
    %4338 = vmatpush2.bf16.msra.mxu0 0
    %4339 = vmatprep.subr.bf16.mxu0 0
    %4340 = vmatpush2.bf16.msra.mxu0 0
    %4341 = vmatprep.subr.bf16.mxu0 0
    %4342 = vmatpush2.bf16.msra.mxu0 0
    %4343 = vmatprep.subr.bf16.mxu0 0
    %4344 = vmatpush2.bf16.msra.mxu0 0
    %4345 = vmatprep.subr.bf16.mxu0 0
    %4346 = vmatpush2.bf16.msra.mxu0 0
    %4347 = vmatprep.mubr.bf16.mxu0 0
    %4348 = vmatmul.mubr.bf16.gmra.mxu0 %v4029
    %v4349 = vpop.f32.mrf.mxu0
    %v4350 = vadd.f32 %v4310, %v4349
    %v4351 = vpop.f32.mrf.mxu0
    %v4352 = vpop.f32.mrf.mxu0
    %v4353 = vpop.f32.mrf.mxu0
    %4354 = vdwg.mxu0
    %v4355 = vpack.c.bf16 %v4189, %v4189
    %v4356 = vpack.c.bf16 %v4191, %v4191
    %v4357 = vpack.c.bf16 %v4350, %v4350
    %v4358 = vmax.bf16 %v4355, 0
    %v4359 = vmax.bf16 %v4356, 0
    %v4360 = vmax.bf16 %v4357, 0
    %v4361 = vld [vmem:[#allocation10] sm:$0xf]
    %v4362 = vld [vmem:[#allocation10 + $0x4] sm:$0xf]
    %v4363 = vld [vmem:[#allocation10 + $0x8] sm:$0xf]
    %v4364 = vld [vmem:[#allocation10 + $0xc] sm:$0xf]
    %v4365 = vld [vmem:[#allocation10 + $0x10] sm:$0xf]
    %v4366 = vld [vmem:[#allocation10 + $0x14] sm:$0xf]
    %v4367 = vld [vmem:[#allocation10 + $0x18] sm:$0xf]
    %v4368 = vld [vmem:[#allocation10 + $0x1c] sm:$0xf]
    %v4369 = vld [vmem:[#allocation10 + $0x20] sm:$0xf]
    %v4370 = vld [vmem:[#allocation10 + $0x24] sm:$0xf]
    %v4371 = vld [vmem:[#allocation10 + $0x28] sm:$0xf]
    %v4372 = vld [vmem:[#allocation10 + $0x2c] sm:$0xf]
    %v4373 = vld [vmem:[#allocation10 + $0x30] sm:$0xf]
    %v4374 = vld [vmem:[#allocation10 + $0x34] sm:$0xf]
    %v4375 = vld [vmem:[#allocation10 + $0x38] sm:$0xf]
    %v4376 = vld [vmem:[#allocation10 + $0x3c] sm:$0xf]
    %v4377 = vld [vmem:[#allocation10 + $0x40] sm:$0xf]
    %v4378 = vld [vmem:[#allocation10 + $0x44] sm:$0xf]
    %v4379 = vld [vmem:[#allocation10 + $0x48] sm:$0xf]
    %v4380 = vld [vmem:[#allocation10 + $0x4c] sm:$0xf]
    %v4381 = vld [vmem:[#allocation10 + $0x50] sm:$0xf]
    %v4382 = vld [vmem:[#allocation10 + $0x54] sm:$0xf]
    %v4383 = vld [vmem:[#allocation10 + $0x58] sm:$0xf]
    %v4384 = vld [vmem:[#allocation10 + $0x5c] sm:$0xf]
    %v4385 = vld [vmem:[#allocation10 + $0x60] sm:$0xf]
    %v4386 = vld [vmem:[#allocation10 + $0x64] sm:$0xf]
    %v4387 = vld [vmem:[#allocation10 + $0x68] sm:$0xf]
    %v4388 = vld [vmem:[#allocation10 + $0x6c] sm:$0xf]
    %v4389 = vld [vmem:[#allocation10 + $0x70] sm:$0xf]
    %v4390 = vld [vmem:[#allocation10 + $0x74] sm:$0xf]
    %v4391 = vld [vmem:[#allocation10 + $0x78] sm:$0xf]
    %v4392 = vld [vmem:[#allocation10 + $0x7c] sm:$0xf]
    %v4393 = vld [vmem:[#allocation10 + $0x80] sm:$0xf]
    %v4394 = vld [vmem:[#allocation10 + $0x84] sm:$0xf]
    %v4395 = vld [vmem:[#allocation10 + $0x88] sm:$0xf]
    %v4396 = vld [vmem:[#allocation10 + $0x8c] sm:$0xf]
    %v4397 = vld [vmem:[#allocation10 + $0x90] sm:$0xf]
    %v4398 = vld [vmem:[#allocation10 + $0x94] sm:$0xf]
    %v4399 = vld [vmem:[#allocation10 + $0x98] sm:$0xf]
    %v4400 = vld [vmem:[#allocation10 + $0x9c] sm:$0xf]
    %v4401 = vld [vmem:[#allocation11] sm:$0x1]
    %v4403 = vlaneseq
    %v4404 = vshrl.u32 %v4403, 7
    %v4405 = vsub.s32 0, %v4404
    %v4406 = vrot.slane %v4401, %v4405
    %v4448 = vunpack.c.l.b16 %v4361
    %v4449 = vunpack.c.l.b16 %v4362
    %v4450 = vunpack.c.l.b16 %v4363
    %v4451 = vunpack.c.l.b16 %v4364
    %v4452 = vunpack.c.l.b16 %v4365
    %v4453 = vunpack.c.l.b16 %v4366
    %v4454 = vunpack.c.l.b16 %v4367
    %v4455 = vunpack.c.l.b16 %v4368
    %v4456 = vunpack.c.l.b16 %v4369
    %v4457 = vunpack.c.l.b16 %v4370
    %v4458 = vunpack.c.l.b16 %v4371
    %v4459 = vunpack.c.l.b16 %v4372
    %v4460 = vunpack.c.l.b16 %v4373
    %v4461 = vunpack.c.l.b16 %v4374
    %v4462 = vunpack.c.l.b16 %v4375
    %v4463 = vunpack.c.l.b16 %v4376
    %v4464 = vunpack.c.l.b16 %v4377
    %v4465 = vunpack.c.l.b16 %v4378
    %v4466 = vunpack.c.l.b16 %v4379
    %v4467 = vunpack.c.l.b16 %v4380
    %v4468 = vunpack.c.l.b16 %v4381
    %v4469 = vunpack.c.l.b16 %v4382
    %v4470 = vunpack.c.l.b16 %v4383
    %v4471 = vunpack.c.l.b16 %v4384
    %v4472 = vunpack.c.l.b16 %v4385
    %v4473 = vunpack.c.l.b16 %v4386
    %v4474 = vunpack.c.l.b16 %v4387
    %v4475 = vunpack.c.l.b16 %v4388
    %v4476 = vunpack.c.l.b16 %v4389
    %v4477 = vunpack.c.l.b16 %v4390
    %v4478 = vunpack.c.l.b16 %v4391
    %v4479 = vunpack.c.l.b16 %v4392
    %v4480 = vunpack.c.l.b16 %v4393
    %v4481 = vunpack.c.l.b16 %v4394
    %v4482 = vunpack.c.l.b16 %v4395
    %v4483 = vunpack.c.l.b16 %v4396
    %v4484 = vunpack.c.l.b16 %v4397
    %v4485 = vunpack.c.l.b16 %v4398
    %v4486 = vunpack.c.l.b16 %v4399
    %v4487 = vunpack.c.l.b16 %v4400
    %v4488 = vpack.c.b16 %v4449, %v4448
    %v4489 = vpack.c.b16 %v4451, %v4450
    %v4490 = vpack.c.b16 %v4453, %v4452
    %v4491 = vpack.c.b16 %v4455, %v4454
    %v4492 = vpack.c.b16 %v4457, %v4456
    %v4493 = vpack.c.b16 %v4459, %v4458
    %v4494 = vpack.c.b16 %v4461, %v4460
    %v4495 = vpack.c.b16 %v4463, %v4462
    %v4496 = vpack.c.b16 %v4465, %v4464
    %v4497 = vpack.c.b16 %v4467, %v4466
    %v4498 = vpack.c.b16 %v4469, %v4468
    %v4499 = vpack.c.b16 %v4471, %v4470
    %v4500 = vpack.c.b16 %v4473, %v4472
    %v4501 = vpack.c.b16 %v4475, %v4474
    %v4502 = vpack.c.b16 %v4477, %v4476
    %v4503 = vpack.c.b16 %v4479, %v4478
    %v4504 = vpack.c.b16 %v4481, %v4480
    %v4505 = vpack.c.b16 %v4483, %v4482
    %v4506 = vpack.c.b16 %v4485, %v4484
    %v4507 = vpack.c.b16 %v4487, %v4486
    %vm4528 = vcmask 523264
    %v4530 = vsel %vm4528, %v4360, 0
    %4532 = vmatprep.subr.bf16.mxu0 0
    %4533 = vmatpush1.bf16.msra.mxu0 %v4495
    %4534 = vmatprep.subr.bf16.mxu0 0
    %4535 = vmatpush1.bf16.msra.mxu0 %v4494
    %4536 = vmatprep.subr.bf16.mxu0 0
    %4537 = vmatpush1.bf16.msra.mxu0 %v4493
    %4538 = vmatprep.subr.bf16.mxu0 0
    %4539 = vmatpush1.bf16.msra.mxu0 %v4492
    %4540 = vmatprep.subr.bf16.mxu0 0
    %4541 = vmatpush1.bf16.msra.mxu0 %v4491
    %4542 = vmatprep.subr.bf16.mxu0 0
    %4543 = vmatpush1.bf16.msra.mxu0 %v4490
    %4544 = vmatprep.subr.bf16.mxu0 0
    %4545 = vmatpush1.bf16.msra.mxu0 %v4489
    %4546 = vmatprep.subr.bf16.mxu0 0
    %4547 = vmatpush1.bf16.msra.mxu0 %v4488
    %4548 = vmatprep.subr.bf16.mxu0 0
    %4549 = vmatpush2.bf16.msra.mxu0 %v4503
    %4550 = vmatprep.subr.bf16.mxu0 0
    %4551 = vmatpush2.bf16.msra.mxu0 %v4502
    %4552 = vmatprep.subr.bf16.mxu0 0
    %4553 = vmatpush2.bf16.msra.mxu0 %v4501
    %4554 = vmatprep.subr.bf16.mxu0 0
    %4555 = vmatpush2.bf16.msra.mxu0 %v4500
    %4556 = vmatprep.subr.bf16.mxu0 0
    %4557 = vmatpush2.bf16.msra.mxu0 %v4499
    %4558 = vmatprep.subr.bf16.mxu0 0
    %4559 = vmatpush2.bf16.msra.mxu0 %v4498
    %4560 = vmatprep.subr.bf16.mxu0 0
    %4561 = vmatpush2.bf16.msra.mxu0 %v4497
    %4562 = vmatprep.subr.bf16.mxu0 0
    %4563 = vmatpush2.bf16.msra.mxu0 %v4496
    %4564 = vmatprep.mubr.bf16.mxu0 %v4359
    %4565 = vmatmul.mubr.bf16.gmra.mxu0 %v4358
    %v4566 = vpop.f32.mrf.mxu0
    %v4567 = vadd.f32 %v4406, %v4566
    %v4568 = vpop.f32.mrf.mxu0
    %v4569 = vpop.f32.mrf.mxu0
    %v4570 = vpop.f32.mrf.mxu0
    %4571 = vdwg.mxu0
    %4572 = vmatprep.subr.bf16.mxu0 0
    %4573 = vmatpush1.bf16.msra.mxu0 0
    %4574 = vmatprep.subr.bf16.mxu0 0
    %4575 = vmatpush1.bf16.msra.mxu0 0
    %4576 = vmatprep.subr.bf16.mxu0 0
    %4577 = vmatpush1.bf16.msra.mxu0 0
    %4578 = vmatprep.subr.bf16.mxu0 0
    %4579 = vmatpush1.bf16.msra.mxu0 0
    %4580 = vmatprep.subr.bf16.mxu0 0
    %4581 = vmatpush1.bf16.msra.mxu0 %v4507
    %4582 = vmatprep.subr.bf16.mxu0 0
    %4583 = vmatpush1.bf16.msra.mxu0 %v4506
    %4584 = vmatprep.subr.bf16.mxu0 0
    %4585 = vmatpush1.bf16.msra.mxu0 %v4505
    %4586 = vmatprep.subr.bf16.mxu0 0
    %4587 = vmatpush1.bf16.msra.mxu0 %v4504
    %4588 = vmatprep.subr.bf16.mxu0 0
    %4589 = vmatpush2.bf16.msra.mxu0 0
    %4590 = vmatprep.subr.bf16.mxu0 0
    %4591 = vmatpush2.bf16.msra.mxu0 0
    %4592 = vmatprep.subr.bf16.mxu0 0
    %4593 = vmatpush2.bf16.msra.mxu0 0
    %4594 = vmatprep.subr.bf16.mxu0 0
    %4595 = vmatpush2.bf16.msra.mxu0 0
    %4596 = vmatprep.subr.bf16.mxu0 0
    %4597 = vmatpush2.bf16.msra.mxu0 0
    %4598 = vmatprep.subr.bf16.mxu0 0
    %4599 = vmatpush2.bf16.msra.mxu0 0
    %4600 = vmatprep.subr.bf16.mxu0 0
    %4601 = vmatpush2.bf16.msra.mxu0 0
    %4602 = vmatprep.subr.bf16.mxu0 0
    %4603 = vmatpush2.bf16.msra.mxu0 0
    %4604 = vmatprep.mubr.bf16.mxu0 0
    %4605 = vmatmul.mubr.bf16.gmra.mxu0 %v4530
    %v4606 = vpop.f32.mrf.mxu0
    %v4607 = vadd.f32 %v4567, %v4606
    %v4608 = vpop.f32.mrf.mxu0
    %v4609 = vpop.f32.mrf.mxu0
    %v4610 = vpop.f32.mrf.mxu0
    %4611 = vdwg.mxu0
    %v4612 = vmax.f32 %v4607, 0.0
    %v4613 = vpack.c.bf16 %v4612, %v4612
    %v4614 = vld [vmem:[#allocation13] sm:$0xf]
    %v4615 = vld [vmem:[#allocation13 + $0x4] sm:$0xf]
    %v4616 = vld [vmem:[#allocation13 + $0x8] sm:$0xf]
    %v4617 = vld [vmem:[#allocation13 + $0xc] sm:$0xf]
    %v4618 = vld [vmem:[#allocation13 + $0x10] sm:$0xf]
    %v4619 = vld [vmem:[#allocation13 + $0x14] sm:$0xf]
    %v4620 = vld [vmem:[#allocation13 + $0x18] sm:$0xf]
    %v4621 = vld [vmem:[#allocation13 + $0x1c] sm:$0xf]
    %v4622 = vld [vmem:[#allocation13 + $0x20] sm:$0xf]
    %v4623 = vld [vmem:[#allocation13 + $0x24] sm:$0xf]
    %v4624 = vld [vmem:[#allocation13 + $0x28] sm:$0xf]
    %v4625 = vld [vmem:[#allocation13 + $0x2c] sm:$0xf]
    %v4626 = vld [vmem:[#allocation13 + $0x30] sm:$0xf]
    %v4627 = vld [vmem:[#allocation13 + $0x34] sm:$0xf]
    %v4628 = vld [vmem:[#allocation13 + $0x38] sm:$0xf]
    %v4629 = vld [vmem:[#allocation13 + $0x3c] sm:$0xf]
    %v4630 = vld [vmem:[#allocation14] sm:$0x1]
    %v4632 = vlaneseq
    %v4633 = vshrl.u32 %v4632, 7
    %v4634 = vsub.s32 0, %v4633
    %v4635 = vrot.slane %v4630, %v4634
    %v4653 = vunpack.c.l.b16 %v4614
    %v4654 = vunpack.c.l.b16 %v4615
    %v4655 = vunpack.c.l.b16 %v4616
    %v4656 = vunpack.c.l.b16 %v4617
    %v4657 = vunpack.c.l.b16 %v4618
    %v4658 = vunpack.c.l.b16 %v4619
    %v4659 = vunpack.c.l.b16 %v4620
    %v4660 = vunpack.c.l.b16 %v4621
    %v4661 = vunpack.c.l.b16 %v4622
    %v4662 = vunpack.c.l.b16 %v4623
    %v4663 = vunpack.c.l.b16 %v4624
    %v4664 = vunpack.c.l.b16 %v4625
    %v4665 = vunpack.c.l.b16 %v4626
    %v4666 = vunpack.c.l.b16 %v4627
    %v4667 = vunpack.c.l.b16 %v4628
    %v4668 = vunpack.c.l.b16 %v4629
    %v4669 = vpack.c.b16 %v4654, %v4653
    %v4670 = vpack.c.b16 %v4656, %v4655
    %v4671 = vpack.c.b16 %v4658, %v4657
    %v4672 = vpack.c.b16 %v4660, %v4659
    %v4673 = vpack.c.b16 %v4662, %v4661
    %v4674 = vpack.c.b16 %v4664, %v4663
    %v4675 = vpack.c.b16 %v4666, %v4665
    %v4676 = vpack.c.b16 %v4668, %v4667
    %4685 = vmatprep.subr.bf16.mxu0 0
    %4686 = vmatpush1.bf16.msra.mxu0 %v4676
    %4687 = vmatprep.subr.bf16.mxu0 0
    %4688 = vmatpush1.bf16.msra.mxu0 %v4675
    %4689 = vmatprep.subr.bf16.mxu0 0
    %4690 = vmatpush1.bf16.msra.mxu0 %v4674
    %4691 = vmatprep.subr.bf16.mxu0 0
    %4692 = vmatpush1.bf16.msra.mxu0 %v4673
    %4693 = vmatprep.subr.bf16.mxu0 0
    %4694 = vmatpush1.bf16.msra.mxu0 %v4672
    %4695 = vmatprep.subr.bf16.mxu0 0
    %4696 = vmatpush1.bf16.msra.mxu0 %v4671
    %4697 = vmatprep.subr.bf16.mxu0 0
    %4698 = vmatpush1.bf16.msra.mxu0 %v4670
    %4699 = vmatprep.subr.bf16.mxu0 0
    %4700 = vmatpush1.bf16.msra.mxu0 %v4669
    %4701 = vmatprep.subr.bf16.mxu0 0
    %4702 = vmatpush2.bf16.msra.mxu0 0
    %4703 = vmatprep.subr.bf16.mxu0 0
    %4704 = vmatpush2.bf16.msra.mxu0 0
    %4705 = vmatprep.subr.bf16.mxu0 0
    %4706 = vmatpush2.bf16.msra.mxu0 0
    %4707 = vmatprep.subr.bf16.mxu0 0
    %4708 = vmatpush2.bf16.msra.mxu0 0
    %4709 = vmatprep.subr.bf16.mxu0 0
    %4710 = vmatpush2.bf16.msra.mxu0 0
    %4711 = vmatprep.subr.bf16.mxu0 0
    %4712 = vmatpush2.bf16.msra.mxu0 0
    %4713 = vmatprep.subr.bf16.mxu0 0
    %4714 = vmatpush2.bf16.msra.mxu0 0
    %4715 = vmatprep.subr.bf16.mxu0 0
    %4716 = vmatpush2.bf16.msra.mxu0 0
    %4717 = vmatprep.mubr.bf16.mxu0 0
    %4718 = vmatmul.mubr.bf16.gmra.mxu0 %v4613
    %v4719 = vpop.f32.mrf.mxu0
    %v4720 = vadd.f32 %v4635, %v4719
    %v4721 = vpop.f32.mrf.mxu0
    %v4722 = vpop.f32.mrf.mxu0
    %v4723 = vpop.f32.mrf.mxu0
    %4724 = vdwg.mxu0
    %4725 = vmax.xlane.f32.xlu0 %v4720
    %v4726 = vpop.xlane.xlu0 %4725
    %v4727 = vsub.f32 %v4720, %v4726
    %v4728 = vmul.f32 %v4727, 1.442695
    %v4729 = vpow.pop %v4728
    %4730 = vadd.xlane.f32.xlu0 %v4729
    %v4731 = vpop.xlane.xlu0 %4730
    %v4732 = vlog2.pop %v4731
    %v4733 = vmul.f32 %v4732, 0.6931472
    %v4734 = vsub.f32 %v4727, %v4733
    %4735 = vst [vmem:[#allocation16] sm:$0xff] %v4734
    // Predicated region
    $region70: #{tpu_custom_call.1} parent=1 // pred_check
      _
    $region71: #{tpu_custom_call.1} parent=1 // pred_check_branch
      %4737 = sbr.rel (0) target = $region73
    $region72: #{tpu_custom_call.1} parent=1 // pred_region
      %s4739 = ssub.s32 128, 128
      %4740 = vsyncadd [#allocation4], %s4739
      %s4742 = sshll.u32 [#allocation16], 4
      %s4743 = int_to_ptr.vmem [resolvable:$true] %s4742
      %4745 = dma.vmem_to_hbm [thread:$0]  %s4743, 128, %s9, [#allocation4]
    $region73: #{tpu_custom_call.1} parent=1 // pred_fallthru
      _
    // Predicated region
    $region74: #{tpu_custom_call.1} parent=1 // pred_check
      _
    $region75: #{tpu_custom_call.1} parent=1 // pred_check_branch
      %4747 = sbr.rel (0) target = $region77
    $region76: #{tpu_custom_call.1} parent=1 // pred_region
      %4748 = dma.done [#allocation4], 128
    $region77: #{tpu_custom_call.1} parent=1 // pred_fallthru
      _
    %4749 = vsyncpa [#allocation3], 1
    %4750 = vsyncpa [#allocation6], 1
    %4751 = vsyncpa [#allocation9], 1
    %4752 = vsyncpa [#allocation12], 1
    %4753 = vsyncpa [#allocation15], 1
    %4754 = vsyncpa [#allocation4], 1

</llo_original>
